<compile_context>
chip_gen: v6e
topology: v6e:2x2x1
jax: 0.10.0
libtpu: 0.0.40
codegen_flags: <defaults>
</compile_context>

<pallas_src>
import jax
import jax.numpy as jnp
import numpy as np
from jax import lax
from jax.experimental import pallas as pl
from jax.experimental.pallas import tpu as pltpu

EPS = 1e-5


# ------------------------------ Pallas kernel --------------------------------

def _outconv_kernel(x_ref, wt_ref, bt_ref,
                    w1_ref, b1_ref, g1_ref, be1_ref,
                    w2_ref, b2_ref, g2_ref, be2_ref,
                    o_ref, pad1_ref, pad2_ref):
    """Fused OutConv forward, channel-major (length on lanes).

    x_ref : (B, Cin, L)       PyTorch NCL input
    wt_ref: (2, Cout, Cin)    ConvTranspose1d taps, wt[k] = W_pt[:, :, k].T
    w*_ref: (5, Cout, Cout)   Conv1d taps,          w[k]  = W_pt[:, :, k]
    b*/g*/be*: (Cout, 1)      biases / BN gamma / BN beta (lane-broadcastable)
    o_ref : (B, Cout, 2L)     PyTorch NCL output (lane-dense last dim)
    pad*_ref: (B, Cout, 2L+4) VMEM scratch, halo-padded conv inputs
    """
    B, Cin, L = x_ref.shape
    Cout = o_ref.shape[1]
    Lo = 2 * L                 # length after ConvTranspose1d(k=2, s=2)
    Lp = Lo + 4                # halo-padded length for the k=5, pad=2 convs
    inv_n = 1.0 / float(B * Lo)
    f32 = jnp.float32

    # 0/1 scatter matrices for the stride-2 interleave: P_k[t, 2t+k] = 1
    t_idx = lax.broadcasted_iota(jnp.int32, (L, Lo), 0)
    r_idx = lax.broadcasted_iota(jnp.int32, (L, Lo), 1)
    p0 = (r_idx == 2 * t_idx).astype(f32)          # (L, 2L)
    p1 = (r_idx == 2 * t_idx + 1).astype(f32)      # (L, 2L)

    # Zero only the 2-lane halos of both padded scratch buffers.
    zhalo = jnp.zeros((B, Cout, 2), f32)
    pad1_ref[:, :, 0:2] = zhalo
    pad1_ref[:, :, Lo + 2:Lp] = zhalo
    pad2_ref[:, :, 0:2] = zhalo
    pad2_ref[:, :, Lo + 2:Lp] = zhalo

    # ---- ConvTranspose1d(k=2, s=2): up[b, c, 2t+k] = (wt[k] @ x[b])[c,t]+bias
    for b in range(B):
        y0 = jnp.dot(wt_ref[0], x_ref[b], preferred_element_type=f32)   # (Cout, L)
        y1 = jnp.dot(wt_ref[1], x_ref[b], preferred_element_type=f32)   # (Cout, L)
        up_b = (jnp.dot(y0, p0, preferred_element_type=f32) +
                jnp.dot(y1, p1, preferred_element_type=f32) + bt_ref[...])
        pad1_ref[b, :, 2:2 + Lo] = up_b                                  # (Cout, 2L)

    # ---- Conv1d(k=5, pad=2) + bias -> ReLU (per batch, lane-dense tiles) ----
    def conv5_relu(src_ref, w_ref, b_ref):
        outs = []
        for b in range(B):
            acc = jnp.dot(w_ref[0], src_ref[b, :, 0:Lo],
                          preferred_element_type=f32)                    # (Cout, 2L)
            for k in range(1, 5):
                acc = acc + jnp.dot(w_ref[k], src_ref[b, :, k:k + Lo],
                                    preferred_element_type=f32)
            outs.append(jnp.maximum(acc + b_ref[...], 0.0))
        return outs

    # BatchNorm1d (training mode): batch stats over (B, 2L), biased variance.
    def bn_stats(outs):
        mean = sum(r.sum(axis=1, keepdims=True) for r in outs) * inv_n   # (Cout,1)
        var = sum(((r - mean) ** 2).sum(axis=1, keepdims=True)
                  for r in outs) * inv_n                                 # (Cout,1)
        return mean, var

    # Block 1: conv -> ReLU -> BN, write BN output into pad2 interior.
    r1 = conv5_relu(pad1_ref, w1_ref, b1_ref)
    m1, v1 = bn_stats(r1)
    s1 = lax.rsqrt(v1 + EPS) * g1_ref[...]
    for b in range(B):
        pad2_ref[b, :, 2:2 + Lo] = (r1[b] - m1) * s1 + be1_ref[...]

    # Block 2: conv -> ReLU -> BN, single lane-dense store in NCL layout.
    r2 = conv5_relu(pad2_ref, w2_ref, b2_ref)
    m2, v2 = bn_stats(r2)
    s2 = lax.rsqrt(v2 + EPS) * g2_ref[...]
    for b in range(B):
        o_ref[b, :, :] = (r2[b] - m2) * s2 + be2_ref[...]


# ------------------------------ wrapper ---------------------------------------

def outconv_forward(x_ncl, x_o, params):
    """OutConv.forward(x, x_o). x_o is unused (matches the reference module)."""
    del x_o
    B, Cin, L = x_ncl.shape
    Cout = params["wt"].shape[1]
    Lo = 2 * L
    vmem = pl.BlockSpec(memory_space=pltpu.MemorySpace.VMEM)
    call = pl.pallas_call(
        _outconv_kernel,
        out_shape=jax.ShapeDtypeStruct((B, Cout, Lo), jnp.float32),
        in_specs=[vmem] * 11,
        out_specs=vmem,
        scratch_shapes=[pltpu.VMEM((B, Cout, Lo + 4), jnp.float32),
                        pltpu.VMEM((B, Cout, Lo + 4), jnp.float32)],
    )
    c = Cout
    col = lambda v: v.reshape(c, 1)
    return call(x_ncl.astype(jnp.float32),
                params["wt"], col(params["bt"]),
                params["w1"], col(params["b1"]), col(params["g1"]), col(params["be1"]),
                params["w2"], col(params["b2"]), col(params["g2"]), col(params["be2"]))


# ------------------------------ pure-JAX reference ----------------------------

def outconv_reference(x, p):
    hi = lax.Precision.HIGHEST
    B, Cin, L = x.shape
    Cout = p["wt"].shape[1]
    # ConvTranspose1d(k=2, s=2): out[b, c, 2t+k] = sum_i wt[k, c, i] * x[b, i, t]
    y = jnp.einsum('kci,bit->bckt', p["wt"], x, precision=hi)         # (B,C,2,L)
    up = jnp.transpose(y, (0, 1, 3, 2)).reshape(B, Cout, 2 * L)
    up = up + p["bt"].reshape(1, Cout, 1)

    def block(h, w, b, g, be):
        hp = jnp.pad(h, ((0, 0), (0, 0), (2, 2)))
        o = sum(jnp.einsum('dc,bcp->bdp', w[k], hp[:, :, k:k + 2 * L], precision=hi)
                for k in range(5))
        o = jnp.maximum(o + b.reshape(1, Cout, 1), 0.0)
        mean = o.mean(axis=(0, 2), keepdims=True)
        var = ((o - mean) ** 2).mean(axis=(0, 2), keepdims=True)
        return (o - mean) * lax.rsqrt(var + EPS) * g.reshape(1, Cout, 1) \
            + be.reshape(1, Cout, 1)

    h = block(up, p["w1"], p["b1"], p["g1"], p["be1"])
    return block(h, p["w2"], p["b2"], p["g2"], p["be2"])


# ------------------------------ deterministic params --------------------------
# Layout mapping from PyTorch:
#   wt[k]   = ConvTranspose1d.weight[:, :, k].T   -> (Cout, Cin)
#   w1/2[k] = Conv1d.weight[:, :, k]              -> (Cout, Cout)

def init_params(key, cin, cout):
    ks = jax.random.split(key, 10)
    return {
        "wt": 0.3 * jax.random.normal(ks[0], (2, cout, cin), jnp.float32),
        "bt": 0.05 * jax.random.normal(ks[1], (cout,), jnp.float32),
        "w1": 0.3 * jax.random.normal(ks[2], (5, cout, cout), jnp.float32),
        "b1": 0.05 * jax.random.normal(ks[3], (cout,), jnp.float32),
        "g1": 1.0 + 0.1 * jax.random.normal(ks[4], (cout,), jnp.float32),
        "be1": 0.05 * jax.random.normal(ks[5], (cout,), jnp.float32),
        "w2": 0.3 * jax.random.normal(ks[6], (5, cout, cout), jnp.float32),
        "b2": 0.05 * jax.random.normal(ks[7], (cout,), jnp.float32),
        "g2": 1.0 + 0.1 * jax.random.normal(ks[8], (cout,), jnp.float32),
        "be2": 0.05 * jax.random.normal(ks[9], (cout,), jnp.float32),
    }


# ------------------------------ main -------------------------------------------

if __name__ == "__main__":
    B, Cin, Cout, L = 2, 16, 8, 64          # OutConv(16, 8) on length-64 signals
    kx, kp = jax.random.split(jax.random.PRNGKey(0))
    x = jax.random.normal(kx, (B, Cin, L), jnp.float32)
    x_o = jnp.zeros((B, Cout, 2 * L), jnp.float32)   # unused by OutConv.forward
    params = init_params(kp, Cin, Cout)

    fwd = jax.jit(outconv_forward)
    out = fwd(x, x_o, params)
    jax.block_until_ready(out)

    assert out.shape == (B, Cout, 2 * L)
    assert bool(jnp.isfinite(out).all())
    ref = outconv_reference(x, params)
    np.testing.assert_allclose(np.asarray(out), np.asarray(ref), atol=2e-3, rtol=2e-3)
    print("KERNEL_OK")
</pallas_src>

<mosaic_0001>
module attributes {stable_mosaic.version = 11 : i64} {
  func.func @_outconv_kernel(%arg0: memref<2x16x64xf32, #tpu.memory_space<vmem>>, %arg1: memref<2x8x16xf32, #tpu.memory_space<vmem>>, %arg2: memref<8x1xf32, #tpu.memory_space<vmem>>, %arg3: memref<5x8x8xf32, #tpu.memory_space<vmem>>, %arg4: memref<8x1xf32, #tpu.memory_space<vmem>>, %arg5: memref<8x1xf32, #tpu.memory_space<vmem>>, %arg6: memref<8x1xf32, #tpu.memory_space<vmem>>, %arg7: memref<5x8x8xf32, #tpu.memory_space<vmem>>, %arg8: memref<8x1xf32, #tpu.memory_space<vmem>>, %arg9: memref<8x1xf32, #tpu.memory_space<vmem>>, %arg10: memref<8x1xf32, #tpu.memory_space<vmem>>, %arg11: memref<2x8x128xf32, #tpu.memory_space<vmem>>, %arg12: memref<2x8x132xf32, #tpu.memory_space<vmem>>, %arg13: memref<2x8x132xf32, #tpu.memory_space<vmem>>) attributes {dimension_semantics = [], scalar_prefetch = 0 : i64, scratch_operands = 2 : i64, tpu.core_type = #tpu.core_type<tc>} {
    %0 = tpu.iota {dimensions = array<i32: 0>} : vector<64x128xi32>
    %1 = tpu.iota {dimensions = array<i32: 1>} : vector<64x128xi32>
    %c2_i32 = arith.constant 2 : i32
    %2 = vector.broadcast %c2_i32 : i32 to vector<64x128xi32>
    %3 = arith.muli %2, %0 : vector<64x128xi32>
    %4 = arith.cmpi eq, %1, %3 : vector<64x128xi32>
    %5 = arith.extui %4 : vector<64x128xi1> to vector<64x128xi32>
    %6 = arith.sitofp %5 : vector<64x128xi32> to vector<64x128xf32>
    %c2_i32_0 = arith.constant 2 : i32
    %7 = vector.broadcast %c2_i32_0 : i32 to vector<64x128xi32>
    %8 = arith.muli %7, %0 : vector<64x128xi32>
    %c1_i32 = arith.constant 1 : i32
    %9 = vector.broadcast %c1_i32 : i32 to vector<64x128xi32>
    %10 = arith.addi %8, %9 : vector<64x128xi32>
    %11 = arith.cmpi eq, %1, %10 : vector<64x128xi32>
    %12 = arith.extui %11 : vector<64x128xi1> to vector<64x128xi32>
    %13 = arith.sitofp %12 : vector<64x128xi32> to vector<64x128xf32>
    %cst = arith.constant 0.000000e+00 : f32
    %14 = vector.broadcast %cst : f32 to vector<2x8x2xf32>
    %c0 = arith.constant 0 : index
    %c0_1 = arith.constant 0 : index
    %c0_2 = arith.constant 0 : index
    %15 = vector.load %arg12[%c0, %c0_1, %c0_2] : memref<2x8x132xf32, #tpu.memory_space<vmem>>, vector<2x8x2xf32>
    tpu.vector_store %arg12[%c0, %c0_1, %c0_2], %14 {strides = array<i32>} : memref<2x8x132xf32, #tpu.memory_space<vmem>>, vector<2x8x2xf32>,
    %c0_3 = arith.constant 0 : index
    %c0_4 = arith.constant 0 : index
    %c130 = arith.constant 130 : index
    %16 = vector.load %arg12[%c0_3, %c0_4, %c130] : memref<2x8x132xf32, #tpu.memory_space<vmem>>, vector<2x8x2xf32>
    tpu.vector_store %arg12[%c0_3, %c0_4, %c130], %14 {strides = array<i32>} : memref<2x8x132xf32, #tpu.memory_space<vmem>>, vector<2x8x2xf32>,
    %c0_5 = arith.constant 0 : index
    %c0_6 = arith.constant 0 : index
    %c0_7 = arith.constant 0 : index
    %17 = vector.load %arg13[%c0_5, %c0_6, %c0_7] : memref<2x8x132xf32, #tpu.memory_space<vmem>>, vector<2x8x2xf32>
    tpu.vector_store %arg13[%c0_5, %c0_6, %c0_7], %14 {strides = array<i32>} : memref<2x8x132xf32, #tpu.memory_space<vmem>>, vector<2x8x2xf32>,
    %c0_8 = arith.constant 0 : index
    %c0_9 = arith.constant 0 : index
    %c130_10 = arith.constant 130 : index
    %18 = vector.load %arg13[%c0_8, %c0_9, %c130_10] : memref<2x8x132xf32, #tpu.memory_space<vmem>>, vector<2x8x2xf32>
    tpu.vector_store %arg13[%c0_8, %c0_9, %c130_10], %14 {strides = array<i32>} : memref<2x8x132xf32, #tpu.memory_space<vmem>>, vector<2x8x2xf32>,
    %c0_11 = arith.constant 0 : index
    %c0_12 = arith.constant 0 : index
    %c0_13 = arith.constant 0 : index
    %19 = vector.load %arg1[%c0_11, %c0_12, %c0_13] : memref<2x8x16xf32, #tpu.memory_space<vmem>>, vector<1x8x16xf32>
    %20 = vector.shape_cast %19 : vector<1x8x16xf32> to vector<8x16xf32>
    %c0_14 = arith.constant 0 : index
    %c0_15 = arith.constant 0 : index
    %c0_16 = arith.constant 0 : index
    %21 = vector.load %arg0[%c0_14, %c0_15, %c0_16] : memref<2x16x64xf32, #tpu.memory_space<vmem>>, vector<1x16x64xf32>
    %22 = vector.shape_cast %21 : vector<1x16x64xf32> to vector<16x64xf32>
    %cst_17 = arith.constant dense<0.000000e+00> : vector<8x64xf32>
    %23 = tpu.matmul %20, %22, %cst_17 {dimension_numbers = #tpu.dot_dimension_numbers<[1], [0], [0], [1], [0, 0, 1, 1], [], []>} : vector<8x16xf32>, vector<16x64xf32>, vector<8x64xf32> -> vector<8x64xf32>
    %c1 = arith.constant 1 : index
    %c0_18 = arith.constant 0 : index
    %c0_19 = arith.constant 0 : index
    %24 = vector.load %arg1[%c1, %c0_18, %c0_19] : memref<2x8x16xf32, #tpu.memory_space<vmem>>, vector<1x8x16xf32>
    %25 = vector.shape_cast %24 : vector<1x8x16xf32> to vector<8x16xf32>
    %c0_20 = arith.constant 0 : index
    %c0_21 = arith.constant 0 : index
    %c0_22 = arith.constant 0 : index
    %26 = vector.load %arg0[%c0_20, %c0_21, %c0_22] : memref<2x16x64xf32, #tpu.memory_space<vmem>>, vector<1x16x64xf32>
    %27 = vector.shape_cast %26 : vector<1x16x64xf32> to vector<16x64xf32>
    %cst_23 = arith.constant dense<0.000000e+00> : vector<8x64xf32>
    %28 = tpu.matmul %25, %27, %cst_23 {dimension_numbers = #tpu.dot_dimension_numbers<[1], [0], [0], [1], [0, 0, 1, 1], [], []>} : vector<8x16xf32>, vector<16x64xf32>, vector<8x64xf32> -> vector<8x64xf32>
    %cst_24 = arith.constant dense<0.000000e+00> : vector<8x128xf32>
    %29 = tpu.matmul %23, %6, %cst_24 {dimension_numbers = #tpu.dot_dimension_numbers<[1], [0], [0], [1], [0, 0, 1, 1], [], []>} : vector<8x64xf32>, vector<64x128xf32>, vector<8x128xf32> -> vector<8x128xf32>
    %cst_25 = arith.constant dense<0.000000e+00> : vector<8x128xf32>
    %30 = tpu.matmul %28, %13, %cst_25 {dimension_numbers = #tpu.dot_dimension_numbers<[1], [0], [0], [1], [0, 0, 1, 1], [], []>} : vector<8x64xf32>, vector<64x128xf32>, vector<8x128xf32> -> vector<8x128xf32>
    %31 = arith.addf %29, %30 : vector<8x128xf32>
    %c0_26 = arith.constant 0 : index
    %c0_27 = arith.constant 0 : index
    %32 = vector.load %arg2[%c0_26, %c0_27] : memref<8x1xf32, #tpu.memory_space<vmem>>, vector<8x1xf32>
    %33 = vector.broadcast %32 : vector<8x1xf32> to vector<8x128xf32>
    %34 = arith.addf %31, %33 : vector<8x128xf32>
    %c0_28 = arith.constant 0 : index
    %c0_29 = arith.constant 0 : index
    %c2 = arith.constant 2 : index
    %35 = vector.load %arg12[%c0_28, %c0_29, %c2] : memref<2x8x132xf32, #tpu.memory_space<vmem>>, vector<1x8x128xf32>
    %36 = vector.shape_cast %35 : vector<1x8x128xf32> to vector<8x128xf32>
    %37 = vector.shape_cast %34 : vector<8x128xf32> to vector<1x8x128xf32>
    tpu.vector_store %arg12[%c0_28, %c0_29, %c2], %37 {strides = array<i32>} : memref<2x8x132xf32, #tpu.memory_space<vmem>>, vector<1x8x128xf32>,
    %c0_30 = arith.constant 0 : index
    %c0_31 = arith.constant 0 : index
    %c0_32 = arith.constant 0 : index
    %38 = vector.load %arg1[%c0_30, %c0_31, %c0_32] : memref<2x8x16xf32, #tpu.memory_space<vmem>>, vector<1x8x16xf32>
    %39 = vector.shape_cast %38 : vector<1x8x16xf32> to vector<8x16xf32>
    %c1_33 = arith.constant 1 : index
    %c0_34 = arith.constant 0 : index
    %c0_35 = arith.constant 0 : index
    %40 = vector.load %arg0[%c1_33, %c0_34, %c0_35] : memref<2x16x64xf32, #tpu.memory_space<vmem>>, vector<1x16x64xf32>
    %41 = vector.shape_cast %40 : vector<1x16x64xf32> to vector<16x64xf32>
    %cst_36 = arith.constant dense<0.000000e+00> : vector<8x64xf32>
    %42 = tpu.matmul %39, %41, %cst_36 {dimension_numbers = #tpu.dot_dimension_numbers<[1], [0], [0], [1], [0, 0, 1, 1], [], []>} : vector<8x16xf32>, vector<16x64xf32>, vector<8x64xf32> -> vector<8x64xf32>
    %c1_37 = arith.constant 1 : index
    %c0_38 = arith.constant 0 : index
    %c0_39 = arith.constant 0 : index
    %43 = vector.load %arg1[%c1_37, %c0_38, %c0_39] : memref<2x8x16xf32, #tpu.memory_space<vmem>>, vector<1x8x16xf32>
    %44 = vector.shape_cast %43 : vector<1x8x16xf32> to vector<8x16xf32>
    %c1_40 = arith.constant 1 : index
    %c0_41 = arith.constant 0 : index
    %c0_42 = arith.constant 0 : index
    %45 = vector.load %arg0[%c1_40, %c0_41, %c0_42] : memref<2x16x64xf32, #tpu.memory_space<vmem>>, vector<1x16x64xf32>
    %46 = vector.shape_cast %45 : vector<1x16x64xf32> to vector<16x64xf32>
    %cst_43 = arith.constant dense<0.000000e+00> : vector<8x64xf32>
    %47 = tpu.matmul %44, %46, %cst_43 {dimension_numbers = #tpu.dot_dimension_numbers<[1], [0], [0], [1], [0, 0, 1, 1], [], []>} : vector<8x16xf32>, vector<16x64xf32>, vector<8x64xf32> -> vector<8x64xf32>
    %cst_44 = arith.constant dense<0.000000e+00> : vector<8x128xf32>
    %48 = tpu.matmul %42, %6, %cst_44 {dimension_numbers = #tpu.dot_dimension_numbers<[1], [0], [0], [1], [0, 0, 1, 1], [], []>} : vector<8x64xf32>, vector<64x128xf32>, vector<8x128xf32> -> vector<8x128xf32>
    %cst_45 = arith.constant dense<0.000000e+00> : vector<8x128xf32>
    %49 = tpu.matmul %47, %13, %cst_45 {dimension_numbers = #tpu.dot_dimension_numbers<[1], [0], [0], [1], [0, 0, 1, 1], [], []>} : vector<8x64xf32>, vector<64x128xf32>, vector<8x128xf32> -> vector<8x128xf32>
    %50 = arith.addf %48, %49 : vector<8x128xf32>
    %c0_46 = arith.constant 0 : index
    %c0_47 = arith.constant 0 : index
    %51 = vector.load %arg2[%c0_46, %c0_47] : memref<8x1xf32, #tpu.memory_space<vmem>>, vector<8x1xf32>
    %52 = vector.broadcast %51 : vector<8x1xf32> to vector<8x128xf32>
    %53 = arith.addf %50, %52 : vector<8x128xf32>
    %c1_48 = arith.constant 1 : index
    %c0_49 = arith.constant 0 : index
    %c2_50 = arith.constant 2 : index
    %54 = vector.load %arg12[%c1_48, %c0_49, %c2_50] : memref<2x8x132xf32, #tpu.memory_space<vmem>>, vector<1x8x128xf32>
    %55 = vector.shape_cast %54 : vector<1x8x128xf32> to vector<8x128xf32>
    %56 = vector.shape_cast %53 : vector<8x128xf32> to vector<1x8x128xf32>
    tpu.vector_store %arg12[%c1_48, %c0_49, %c2_50], %56 {strides = array<i32>} : memref<2x8x132xf32, #tpu.memory_space<vmem>>, vector<1x8x128xf32>,
    %c0_51 = arith.constant 0 : index
    %c0_52 = arith.constant 0 : index
    %c0_53 = arith.constant 0 : index
    %57 = vector.load %arg3[%c0_51, %c0_52, %c0_53] : memref<5x8x8xf32, #tpu.memory_space<vmem>>, vector<1x8x8xf32>
    %58 = vector.shape_cast %57 : vector<1x8x8xf32> to vector<8x8xf32>
    %c0_54 = arith.constant 0 : index
    %c0_55 = arith.constant 0 : index
    %c0_56 = arith.constant 0 : index
    %59 = vector.load %arg12[%c0_54, %c0_55, %c0_56] : memref<2x8x132xf32, #tpu.memory_space<vmem>>, vector<1x8x128xf32>
    %60 = vector.shape_cast %59 : vector<1x8x128xf32> to vector<8x128xf32>
    %cst_57 = arith.constant dense<0.000000e+00> : vector<8x128xf32>
    %61 = tpu.matmul %58, %60, %cst_57 {dimension_numbers = #tpu.dot_dimension_numbers<[1], [0], [0], [1], [0, 0, 1, 1], [], []>} : vector<8x8xf32>, vector<8x128xf32>, vector<8x128xf32> -> vector<8x128xf32>
    %c1_58 = arith.constant 1 : index
    %c0_59 = arith.constant 0 : index
    %c0_60 = arith.constant 0 : index
    %62 = vector.load %arg3[%c1_58, %c0_59, %c0_60] : memref<5x8x8xf32, #tpu.memory_space<vmem>>, vector<1x8x8xf32>
    %63 = vector.shape_cast %62 : vector<1x8x8xf32> to vector<8x8xf32>
    %c0_61 = arith.constant 0 : index
    %c0_62 = arith.constant 0 : index
    %c1_63 = arith.constant 1 : index
    %64 = vector.load %arg12[%c0_61, %c0_62, %c1_63] : memref<2x8x132xf32, #tpu.memory_space<vmem>>, vector<1x8x128xf32>
    %65 = vector.shape_cast %64 : vector<1x8x128xf32> to vector<8x128xf32>
    %cst_64 = arith.constant dense<0.000000e+00> : vector<8x128xf32>
    %66 = tpu.matmul %63, %65, %cst_64 {dimension_numbers = #tpu.dot_dimension_numbers<[1], [0], [0], [1], [0, 0, 1, 1], [], []>} : vector<8x8xf32>, vector<8x128xf32>, vector<8x128xf32> -> vector<8x128xf32>
    %67 = arith.addf %61, %66 : vector<8x128xf32>
    %c2_65 = arith.constant 2 : index
    %c0_66 = arith.constant 0 : index
    %c0_67 = arith.constant 0 : index
    %68 = vector.load %arg3[%c2_65, %c0_66, %c0_67] : memref<5x8x8xf32, #tpu.memory_space<vmem>>, vector<1x8x8xf32>
    %69 = vector.shape_cast %68 : vector<1x8x8xf32> to vector<8x8xf32>
    %c0_68 = arith.constant 0 : index
    %c0_69 = arith.constant 0 : index
    %c2_70 = arith.constant 2 : index
    %70 = vector.load %arg12[%c0_68, %c0_69, %c2_70] : memref<2x8x132xf32, #tpu.memory_space<vmem>>, vector<1x8x128xf32>
    %71 = vector.shape_cast %70 : vector<1x8x128xf32> to vector<8x128xf32>
    %cst_71 = arith.constant dense<0.000000e+00> : vector<8x128xf32>
    %72 = tpu.matmul %69, %71, %cst_71 {dimension_numbers = #tpu.dot_dimension_numbers<[1], [0], [0], [1], [0, 0, 1, 1], [], []>} : vector<8x8xf32>, vector<8x128xf32>, vector<8x128xf32> -> vector<8x128xf32>
    %73 = arith.addf %67, %72 : vector<8x128xf32>
    %c3 = arith.constant 3 : index
    %c0_72 = arith.constant 0 : index
    %c0_73 = arith.constant 0 : index
    %74 = vector.load %arg3[%c3, %c0_72, %c0_73] : memref<5x8x8xf32, #tpu.memory_space<vmem>>, vector<1x8x8xf32>
    %75 = vector.shape_cast %74 : vector<1x8x8xf32> to vector<8x8xf32>
    %c0_74 = arith.constant 0 : index
    %c0_75 = arith.constant 0 : index
    %c3_76 = arith.constant 3 : index
    %76 = vector.load %arg12[%c0_74, %c0_75, %c3_76] : memref<2x8x132xf32, #tpu.memory_space<vmem>>, vector<1x8x128xf32>
    %77 = vector.shape_cast %76 : vector<1x8x128xf32> to vector<8x128xf32>
    %cst_77 = arith.constant dense<0.000000e+00> : vector<8x128xf32>
    %78 = tpu.matmul %75, %77, %cst_77 {dimension_numbers = #tpu.dot_dimension_numbers<[1], [0], [0], [1], [0, 0, 1, 1], [], []>} : vector<8x8xf32>, vector<8x128xf32>, vector<8x128xf32> -> vector<8x128xf32>
    %79 = arith.addf %73, %78 : vector<8x128xf32>
    %c4 = arith.constant 4 : index
    %c0_78 = arith.constant 0 : index
    %c0_79 = arith.constant 0 : index
    %80 = vector.load %arg3[%c4, %c0_78, %c0_79] : memref<5x8x8xf32, #tpu.memory_space<vmem>>, vector<1x8x8xf32>
    %81 = vector.shape_cast %80 : vector<1x8x8xf32> to vector<8x8xf32>
    %c0_80 = arith.constant 0 : index
    %c0_81 = arith.constant 0 : index
    %c4_82 = arith.constant 4 : index
    %82 = vector.load %arg12[%c0_80, %c0_81, %c4_82] : memref<2x8x132xf32, #tpu.memory_space<vmem>>, vector<1x8x128xf32>
    %83 = vector.shape_cast %82 : vector<1x8x128xf32> to vector<8x128xf32>
    %cst_83 = arith.constant dense<0.000000e+00> : vector<8x128xf32>
    %84 = tpu.matmul %81, %83, %cst_83 {dimension_numbers = #tpu.dot_dimension_numbers<[1], [0], [0], [1], [0, 0, 1, 1], [], []>} : vector<8x8xf32>, vector<8x128xf32>, vector<8x128xf32> -> vector<8x128xf32>
    %85 = arith.addf %79, %84 : vector<8x128xf32>
    %c0_84 = arith.constant 0 : index
    %c0_85 = arith.constant 0 : index
    %86 = vector.load %arg4[%c0_84, %c0_85] : memref<8x1xf32, #tpu.memory_space<vmem>>, vector<8x1xf32>
    %87 = vector.broadcast %86 : vector<8x1xf32> to vector<8x128xf32>
    %88 = arith.addf %85, %87 : vector<8x128xf32>
    %cst_86 = arith.constant 0.000000e+00 : f32
    %89 = vector.broadcast %cst_86 : f32 to vector<8x128xf32>
    %90 = arith.maximumf %88, %89 : vector<8x128xf32>
    %c0_87 = arith.constant 0 : index
    %c0_88 = arith.constant 0 : index
    %c0_89 = arith.constant 0 : index
    %91 = vector.load %arg3[%c0_87, %c0_88, %c0_89] : memref<5x8x8xf32, #tpu.memory_space<vmem>>, vector<1x8x8xf32>
    %92 = vector.shape_cast %91 : vector<1x8x8xf32> to vector<8x8xf32>
    %c1_90 = arith.constant 1 : index
    %c0_91 = arith.constant 0 : index
    %c0_92 = arith.constant 0 : index
    %93 = vector.load %arg12[%c1_90, %c0_91, %c0_92] : memref<2x8x132xf32, #tpu.memory_space<vmem>>, vector<1x8x128xf32>
    %94 = vector.shape_cast %93 : vector<1x8x128xf32> to vector<8x128xf32>
    %cst_93 = arith.constant dense<0.000000e+00> : vector<8x128xf32>
    %95 = tpu.matmul %92, %94, %cst_93 {dimension_numbers = #tpu.dot_dimension_numbers<[1], [0], [0], [1], [0, 0, 1, 1], [], []>} : vector<8x8xf32>, vector<8x128xf32>, vector<8x128xf32> -> vector<8x128xf32>
    %c1_94 = arith.constant 1 : index
    %c0_95 = arith.constant 0 : index
    %c0_96 = arith.constant 0 : index
    %96 = vector.load %arg3[%c1_94, %c0_95, %c0_96] : memref<5x8x8xf32, #tpu.memory_space<vmem>>, vector<1x8x8xf32>
    %97 = vector.shape_cast %96 : vector<1x8x8xf32> to vector<8x8xf32>
    %c1_97 = arith.constant 1 : index
    %c0_98 = arith.constant 0 : index
    %c1_99 = arith.constant 1 : index
    %98 = vector.load %arg12[%c1_97, %c0_98, %c1_99] : memref<2x8x132xf32, #tpu.memory_space<vmem>>, vector<1x8x128xf32>
    %99 = vector.shape_cast %98 : vector<1x8x128xf32> to vector<8x128xf32>
    %cst_100 = arith.constant dense<0.000000e+00> : vector<8x128xf32>
    %100 = tpu.matmul %97, %99, %cst_100 {dimension_numbers = #tpu.dot_dimension_numbers<[1], [0], [0], [1], [0, 0, 1, 1], [], []>} : vector<8x8xf32>, vector<8x128xf32>, vector<8x128xf32> -> vector<8x128xf32>
    %101 = arith.addf %95, %100 : vector<8x128xf32>
    %c2_101 = arith.constant 2 : index
    %c0_102 = arith.constant 0 : index
    %c0_103 = arith.constant 0 : index
    %102 = vector.load %arg3[%c2_101, %c0_102, %c0_103] : memref<5x8x8xf32, #tpu.memory_space<vmem>>, vector<1x8x8xf32>
    %103 = vector.shape_cast %102 : vector<1x8x8xf32> to vector<8x8xf32>
    %c1_104 = arith.constant 1 : index
    %c0_105 = arith.constant 0 : index
    %c2_106 = arith.constant 2 : index
    %104 = vector.load %arg12[%c1_104, %c0_105, %c2_106] : memref<2x8x132xf32, #tpu.memory_space<vmem>>, vector<1x8x128xf32>
    %105 = vector.shape_cast %104 : vector<1x8x128xf32> to vector<8x128xf32>
    %cst_107 = arith.constant dense<0.000000e+00> : vector<8x128xf32>
    %106 = tpu.matmul %103, %105, %cst_107 {dimension_numbers = #tpu.dot_dimension_numbers<[1], [0], [0], [1], [0, 0, 1, 1], [], []>} : vector<8x8xf32>, vector<8x128xf32>, vector<8x128xf32> -> vector<8x128xf32>
    %107 = arith.addf %101, %106 : vector<8x128xf32>
    %c3_108 = arith.constant 3 : index
    %c0_109 = arith.constant 0 : index
    %c0_110 = arith.constant 0 : index
    %108 = vector.load %arg3[%c3_108, %c0_109, %c0_110] : memref<5x8x8xf32, #tpu.memory_space<vmem>>, vector<1x8x8xf32>
    %109 = vector.shape_cast %108 : vector<1x8x8xf32> to vector<8x8xf32>
    %c1_111 = arith.constant 1 : index
    %c0_112 = arith.constant 0 : index
    %c3_113 = arith.constant 3 : index
    %110 = vector.load %arg12[%c1_111, %c0_112, %c3_113] : memref<2x8x132xf32, #tpu.memory_space<vmem>>, vector<1x8x128xf32>
    %111 = vector.shape_cast %110 : vector<1x8x128xf32> to vector<8x128xf32>
    %cst_114 = arith.constant dense<0.000000e+00> : vector<8x128xf32>
    %112 = tpu.matmul %109, %111, %cst_114 {dimension_numbers = #tpu.dot_dimension_numbers<[1], [0], [0], [1], [0, 0, 1, 1], [], []>} : vector<8x8xf32>, vector<8x128xf32>, vector<8x128xf32> -> vector<8x128xf32>
    %113 = arith.addf %107, %112 : vector<8x128xf32>
    %c4_115 = arith.constant 4 : index
    %c0_116 = arith.constant 0 : index
    %c0_117 = arith.constant 0 : index
    %114 = vector.load %arg3[%c4_115, %c0_116, %c0_117] : memref<5x8x8xf32, #tpu.memory_space<vmem>>, vector<1x8x8xf32>
    %115 = vector.shape_cast %114 : vector<1x8x8xf32> to vector<8x8xf32>
    %c1_118 = arith.constant 1 : index
    %c0_119 = arith.constant 0 : index
    %c4_120 = arith.constant 4 : index
    %116 = vector.load %arg12[%c1_118, %c0_119, %c4_120] : memref<2x8x132xf32, #tpu.memory_space<vmem>>, vector<1x8x128xf32>
    %117 = vector.shape_cast %116 : vector<1x8x128xf32> to vector<8x128xf32>
    %cst_121 = arith.constant dense<0.000000e+00> : vector<8x128xf32>
    %118 = tpu.matmul %115, %117, %cst_121 {dimension_numbers = #tpu.dot_dimension_numbers<[1], [0], [0], [1], [0, 0, 1, 1], [], []>} : vector<8x8xf32>, vector<8x128xf32>, vector<8x128xf32> -> vector<8x128xf32>
    %119 = arith.addf %113, %118 : vector<8x128xf32>
    %c0_122 = arith.constant 0 : index
    %c0_123 = arith.constant 0 : index
    %120 = vector.load %arg4[%c0_122, %c0_123] : memref<8x1xf32, #tpu.memory_space<vmem>>, vector<8x1xf32>
    %121 = vector.broadcast %120 : vector<8x1xf32> to vector<8x128xf32>
    %122 = arith.addf %119, %121 : vector<8x128xf32>
    %cst_124 = arith.constant 0.000000e+00 : f32
    %123 = vector.broadcast %cst_124 : f32 to vector<8x128xf32>
    %124 = arith.maximumf %122, %123 : vector<8x128xf32>
    %cst_125 = arith.constant dense<0.000000e+00> : vector<8xf32>
    %125 = vector.multi_reduction <add>, %90, %cst_125 [1] : vector<8x128xf32> to vector<8xf32>
    %126 = vector.shape_cast %125 : vector<8xf32> to vector<8x1xf32>
    %cst_126 = arith.constant 0.000000e+00 : f32
    %127 = vector.broadcast %cst_126 : f32 to vector<8x1xf32>
    %128 = arith.addf %127, %126 : vector<8x1xf32>
    %cst_127 = arith.constant dense<0.000000e+00> : vector<8xf32>
    %129 = vector.multi_reduction <add>, %124, %cst_127 [1] : vector<8x128xf32> to vector<8xf32>
    %130 = vector.shape_cast %129 : vector<8xf32> to vector<8x1xf32>
    %131 = arith.addf %128, %130 : vector<8x1xf32>
    %cst_128 = arith.constant 3.906250e-03 : f32
    %132 = vector.broadcast %cst_128 : f32 to vector<8x1xf32>
    %133 = arith.mulf %131, %132 : vector<8x1xf32>
    %134 = vector.broadcast %133 : vector<8x1xf32> to vector<8x128xf32>
    %135 = arith.subf %90, %134 : vector<8x128xf32>
    %136 = arith.mulf %135, %135 : vector<8x128xf32>
    %cst_129 = arith.constant dense<0.000000e+00> : vector<8xf32>
    %137 = vector.multi_reduction <add>, %136, %cst_129 [1] : vector<8x128xf32> to vector<8xf32>
    %138 = vector.shape_cast %137 : vector<8xf32> to vector<8x1xf32>
    %cst_130 = arith.constant 0.000000e+00 : f32
    %139 = vector.broadcast %cst_130 : f32 to vector<8x1xf32>
    %140 = arith.addf %139, %138 : vector<8x1xf32>
    %141 = vector.broadcast %133 : vector<8x1xf32> to vector<8x128xf32>
    %142 = arith.subf %124, %141 : vector<8x128xf32>
    %143 = arith.mulf %142, %142 : vector<8x128xf32>
    %cst_131 = arith.constant dense<0.000000e+00> : vector<8xf32>
    %144 = vector.multi_reduction <add>, %143, %cst_131 [1] : vector<8x128xf32> to vector<8xf32>
    %145 = vector.shape_cast %144 : vector<8xf32> to vector<8x1xf32>
    %146 = arith.addf %140, %145 : vector<8x1xf32>
    %cst_132 = arith.constant 3.906250e-03 : f32
    %147 = vector.broadcast %cst_132 : f32 to vector<8x1xf32>
    %148 = arith.mulf %146, %147 : vector<8x1xf32>
    %cst_133 = arith.constant 9.99999974E-6 : f32
    %149 = vector.broadcast %cst_133 : f32 to vector<8x1xf32>
    %150 = arith.addf %148, %149 : vector<8x1xf32>
    %151 = math.rsqrt %150 : vector<8x1xf32>
    %c0_134 = arith.constant 0 : index
    %c0_135 = arith.constant 0 : index
    %152 = vector.load %arg5[%c0_134, %c0_135] : memref<8x1xf32, #tpu.memory_space<vmem>>, vector<8x1xf32>
    %153 = arith.mulf %151, %152 : vector<8x1xf32>
    %154 = vector.broadcast %133 : vector<8x1xf32> to vector<8x128xf32>
    %155 = arith.subf %90, %154 : vector<8x128xf32>
    %156 = vector.broadcast %153 : vector<8x1xf32> to vector<8x128xf32>
    %157 = arith.mulf %155, %156 : vector<8x128xf32>
    %c0_136 = arith.constant 0 : index
    %c0_137 = arith.constant 0 : index
    %158 = vector.load %arg6[%c0_136, %c0_137] : memref<8x1xf32, #tpu.memory_space<vmem>>, vector<8x1xf32>
    %159 = vector.broadcast %158 : vector<8x1xf32> to vector<8x128xf32>
    %160 = arith.addf %157, %159 : vector<8x128xf32>
    %c0_138 = arith.constant 0 : index
    %c0_139 = arith.constant 0 : index
    %c2_140 = arith.constant 2 : index
    %161 = vector.load %arg13[%c0_138, %c0_139, %c2_140] : memref<2x8x132xf32, #tpu.memory_space<vmem>>, vector<1x8x128xf32>
    %162 = vector.shape_cast %161 : vector<1x8x128xf32> to vector<8x128xf32>
    %163 = vector.shape_cast %160 : vector<8x128xf32> to vector<1x8x128xf32>
    tpu.vector_store %arg13[%c0_138, %c0_139, %c2_140], %163 {strides = array<i32>} : memref<2x8x132xf32, #tpu.memory_space<vmem>>, vector<1x8x128xf32>,
    %164 = vector.broadcast %133 : vector<8x1xf32> to vector<8x128xf32>
    %165 = arith.subf %124, %164 : vector<8x128xf32>
    %166 = vector.broadcast %153 : vector<8x1xf32> to vector<8x128xf32>
    %167 = arith.mulf %165, %166 : vector<8x128xf32>
    %c0_141 = arith.constant 0 : index
    %c0_142 = arith.constant 0 : index
    %168 = vector.load %arg6[%c0_141, %c0_142] : memref<8x1xf32, #tpu.memory_space<vmem>>, vector<8x1xf32>
    %169 = vector.broadcast %168 : vector<8x1xf32> to vector<8x128xf32>
    %170 = arith.addf %167, %169 : vector<8x128xf32>
    %c1_143 = arith.constant 1 : index
    %c0_144 = arith.constant 0 : index
    %c2_145 = arith.constant 2 : index
    %171 = vector.load %arg13[%c1_143, %c0_144, %c2_145] : memref<2x8x132xf32, #tpu.memory_space<vmem>>, vector<1x8x128xf32>
    %172 = vector.shape_cast %171 : vector<1x8x128xf32> to vector<8x128xf32>
    %173 = vector.shape_cast %170 : vector<8x128xf32> to vector<1x8x128xf32>
    tpu.vector_store %arg13[%c1_143, %c0_144, %c2_145], %173 {strides = array<i32>} : memref<2x8x132xf32, #tpu.memory_space<vmem>>, vector<1x8x128xf32>,
    %c0_146 = arith.constant 0 : index
    %c0_147 = arith.constant 0 : index
    %c0_148 = arith.constant 0 : index
    %174 = vector.load %arg7[%c0_146, %c0_147, %c0_148] : memref<5x8x8xf32, #tpu.memory_space<vmem>>, vector<1x8x8xf32>
    %175 = vector.shape_cast %174 : vector<1x8x8xf32> to vector<8x8xf32>
    %c0_149 = arith.constant 0 : index
    %c0_150 = arith.constant 0 : index
    %c0_151 = arith.constant 0 : index
    %176 = vector.load %arg13[%c0_149, %c0_150, %c0_151] : memref<2x8x132xf32, #tpu.memory_space<vmem>>, vector<1x8x128xf32>
    %177 = vector.shape_cast %176 : vector<1x8x128xf32> to vector<8x128xf32>
    %cst_152 = arith.constant dense<0.000000e+00> : vector<8x128xf32>
    %178 = tpu.matmul %175, %177, %cst_152 {dimension_numbers = #tpu.dot_dimension_numbers<[1], [0], [0], [1], [0, 0, 1, 1], [], []>} : vector<8x8xf32>, vector<8x128xf32>, vector<8x128xf32> -> vector<8x128xf32>
    %c1_153 = arith.constant 1 : index
    %c0_154 = arith.constant 0 : index
    %c0_155 = arith.constant 0 : index
    %179 = vector.load %arg7[%c1_153, %c0_154, %c0_155] : memref<5x8x8xf32, #tpu.memory_space<vmem>>, vector<1x8x8xf32>
    %180 = vector.shape_cast %179 : vector<1x8x8xf32> to vector<8x8xf32>
    %c0_156 = arith.constant 0 : index
    %c0_157 = arith.constant 0 : index
    %c1_158 = arith.constant 1 : index
    %181 = vector.load %arg13[%c0_156, %c0_157, %c1_158] : memref<2x8x132xf32, #tpu.memory_space<vmem>>, vector<1x8x128xf32>
    %182 = vector.shape_cast %181 : vector<1x8x128xf32> to vector<8x128xf32>
    %cst_159 = arith.constant dense<0.000000e+00> : vector<8x128xf32>
    %183 = tpu.matmul %180, %182, %cst_159 {dimension_numbers = #tpu.dot_dimension_numbers<[1], [0], [0], [1], [0, 0, 1, 1], [], []>} : vector<8x8xf32>, vector<8x128xf32>, vector<8x128xf32> -> vector<8x128xf32>
    %184 = arith.addf %178, %183 : vector<8x128xf32>
    %c2_160 = arith.constant 2 : index
    %c0_161 = arith.constant 0 : index
    %c0_162 = arith.constant 0 : index
    %185 = vector.load %arg7[%c2_160, %c0_161, %c0_162] : memref<5x8x8xf32, #tpu.memory_space<vmem>>, vector<1x8x8xf32>
    %186 = vector.shape_cast %185 : vector<1x8x8xf32> to vector<8x8xf32>
    %c0_163 = arith.constant 0 : index
    %c0_164 = arith.constant 0 : index
    %c2_165 = arith.constant 2 : index
    %187 = vector.load %arg13[%c0_163, %c0_164, %c2_165] : memref<2x8x132xf32, #tpu.memory_space<vmem>>, vector<1x8x128xf32>
    %188 = vector.shape_cast %187 : vector<1x8x128xf32> to vector<8x128xf32>
    %cst_166 = arith.constant dense<0.000000e+00> : vector<8x128xf32>
    %189 = tpu.matmul %186, %188, %cst_166 {dimension_numbers = #tpu.dot_dimension_numbers<[1], [0], [0], [1], [0, 0, 1, 1], [], []>} : vector<8x8xf32>, vector<8x128xf32>, vector<8x128xf32> -> vector<8x128xf32>
    %190 = arith.addf %184, %189 : vector<8x128xf32>
    %c3_167 = arith.constant 3 : index
    %c0_168 = arith.constant 0 : index
    %c0_169 = arith.constant 0 : index
    %191 = vector.load %arg7[%c3_167, %c0_168, %c0_169] : memref<5x8x8xf32, #tpu.memory_space<vmem>>, vector<1x8x8xf32>
    %192 = vector.shape_cast %191 : vector<1x8x8xf32> to vector<8x8xf32>
    %c0_170 = arith.constant 0 : index
    %c0_171 = arith.constant 0 : index
    %c3_172 = arith.constant 3 : index
    %193 = vector.load %arg13[%c0_170, %c0_171, %c3_172] : memref<2x8x132xf32, #tpu.memory_space<vmem>>, vector<1x8x128xf32>
    %194 = vector.shape_cast %193 : vector<1x8x128xf32> to vector<8x128xf32>
    %cst_173 = arith.constant dense<0.000000e+00> : vector<8x128xf32>
    %195 = tpu.matmul %192, %194, %cst_173 {dimension_numbers = #tpu.dot_dimension_numbers<[1], [0], [0], [1], [0, 0, 1, 1], [], []>} : vector<8x8xf32>, vector<8x128xf32>, vector<8x128xf32> -> vector<8x128xf32>
    %196 = arith.addf %190, %195 : vector<8x128xf32>
    %c4_174 = arith.constant 4 : index
    %c0_175 = arith.constant 0 : index
    %c0_176 = arith.constant 0 : index
    %197 = vector.load %arg7[%c4_174, %c0_175, %c0_176] : memref<5x8x8xf32, #tpu.memory_space<vmem>>, vector<1x8x8xf32>
    %198 = vector.shape_cast %197 : vector<1x8x8xf32> to vector<8x8xf32>
    %c0_177 = arith.constant 0 : index
    %c0_178 = arith.constant 0 : index
    %c4_179 = arith.constant 4 : index
    %199 = vector.load %arg13[%c0_177, %c0_178, %c4_179] : memref<2x8x132xf32, #tpu.memory_space<vmem>>, vector<1x8x128xf32>
    %200 = vector.shape_cast %199 : vector<1x8x128xf32> to vector<8x128xf32>
    %cst_180 = arith.constant dense<0.000000e+00> : vector<8x128xf32>
    %201 = tpu.matmul %198, %200, %cst_180 {dimension_numbers = #tpu.dot_dimension_numbers<[1], [0], [0], [1], [0, 0, 1, 1], [], []>} : vector<8x8xf32>, vector<8x128xf32>, vector<8x128xf32> -> vector<8x128xf32>
    %202 = arith.addf %196, %201 : vector<8x128xf32>
    %c0_181 = arith.constant 0 : index
    %c0_182 = arith.constant 0 : index
    %203 = vector.load %arg8[%c0_181, %c0_182] : memref<8x1xf32, #tpu.memory_space<vmem>>, vector<8x1xf32>
    %204 = vector.broadcast %203 : vector<8x1xf32> to vector<8x128xf32>
    %205 = arith.addf %202, %204 : vector<8x128xf32>
    %cst_183 = arith.constant 0.000000e+00 : f32
    %206 = vector.broadcast %cst_183 : f32 to vector<8x128xf32>
    %207 = arith.maximumf %205, %206 : vector<8x128xf32>
    %c0_184 = arith.constant 0 : index
    %c0_185 = arith.constant 0 : index
    %c0_186 = arith.constant 0 : index
    %208 = vector.load %arg7[%c0_184, %c0_185, %c0_186] : memref<5x8x8xf32, #tpu.memory_space<vmem>>, vector<1x8x8xf32>
    %209 = vector.shape_cast %208 : vector<1x8x8xf32> to vector<8x8xf32>
    %c1_187 = arith.constant 1 : index
    %c0_188 = arith.constant 0 : index
    %c0_189 = arith.constant 0 : index
    %210 = vector.load %arg13[%c1_187, %c0_188, %c0_189] : memref<2x8x132xf32, #tpu.memory_space<vmem>>, vector<1x8x128xf32>
    %211 = vector.shape_cast %210 : vector<1x8x128xf32> to vector<8x128xf32>
    %cst_190 = arith.constant dense<0.000000e+00> : vector<8x128xf32>
    %212 = tpu.matmul %209, %211, %cst_190 {dimension_numbers = #tpu.dot_dimension_numbers<[1], [0], [0], [1], [0, 0, 1, 1], [], []>} : vector<8x8xf32>, vector<8x128xf32>, vector<8x128xf32> -> vector<8x128xf32>
    %c1_191 = arith.constant 1 : index
    %c0_192 = arith.constant 0 : index
    %c0_193 = arith.constant 0 : index
    %213 = vector.load %arg7[%c1_191, %c0_192, %c0_193] : memref<5x8x8xf32, #tpu.memory_space<vmem>>, vector<1x8x8xf32>
    %214 = vector.shape_cast %213 : vector<1x8x8xf32> to vector<8x8xf32>
    %c1_194 = arith.constant 1 : index
    %c0_195 = arith.constant 0 : index
    %c1_196 = arith.constant 1 : index
    %215 = vector.load %arg13[%c1_194, %c0_195, %c1_196] : memref<2x8x132xf32, #tpu.memory_space<vmem>>, vector<1x8x128xf32>
    %216 = vector.shape_cast %215 : vector<1x8x128xf32> to vector<8x128xf32>
    %cst_197 = arith.constant dense<0.000000e+00> : vector<8x128xf32>
    %217 = tpu.matmul %214, %216, %cst_197 {dimension_numbers = #tpu.dot_dimension_numbers<[1], [0], [0], [1], [0, 0, 1, 1], [], []>} : vector<8x8xf32>, vector<8x128xf32>, vector<8x128xf32> -> vector<8x128xf32>
    %218 = arith.addf %212, %217 : vector<8x128xf32>
    %c2_198 = arith.constant 2 : index
    %c0_199 = arith.constant 0 : index
    %c0_200 = arith.constant 0 : index
    %219 = vector.load %arg7[%c2_198, %c0_199, %c0_200] : memref<5x8x8xf32, #tpu.memory_space<vmem>>, vector<1x8x8xf32>
    %220 = vector.shape_cast %219 : vector<1x8x8xf32> to vector<8x8xf32>
    %c1_201 = arith.constant 1 : index
    %c0_202 = arith.constant 0 : index
    %c2_203 = arith.constant 2 : index
    %221 = vector.load %arg13[%c1_201, %c0_202, %c2_203] : memref<2x8x132xf32, #tpu.memory_space<vmem>>, vector<1x8x128xf32>
    %222 = vector.shape_cast %221 : vector<1x8x128xf32> to vector<8x128xf32>
    %cst_204 = arith.constant dense<0.000000e+00> : vector<8x128xf32>
    %223 = tpu.matmul %220, %222, %cst_204 {dimension_numbers = #tpu.dot_dimension_numbers<[1], [0], [0], [1], [0, 0, 1, 1], [], []>} : vector<8x8xf32>, vector<8x128xf32>, vector<8x128xf32> -> vector<8x128xf32>
    %224 = arith.addf %218, %223 : vector<8x128xf32>
    %c3_205 = arith.constant 3 : index
    %c0_206 = arith.constant 0 : index
    %c0_207 = arith.constant 0 : index
    %225 = vector.load %arg7[%c3_205, %c0_206, %c0_207] : memref<5x8x8xf32, #tpu.memory_space<vmem>>, vector<1x8x8xf32>
    %226 = vector.shape_cast %225 : vector<1x8x8xf32> to vector<8x8xf32>
    %c1_208 = arith.constant 1 : index
    %c0_209 = arith.constant 0 : index
    %c3_210 = arith.constant 3 : index
    %227 = vector.load %arg13[%c1_208, %c0_209, %c3_210] : memref<2x8x132xf32, #tpu.memory_space<vmem>>, vector<1x8x128xf32>
    %228 = vector.shape_cast %227 : vector<1x8x128xf32> to vector<8x128xf32>
    %cst_211 = arith.constant dense<0.000000e+00> : vector<8x128xf32>
    %229 = tpu.matmul %226, %228, %cst_211 {dimension_numbers = #tpu.dot_dimension_numbers<[1], [0], [0], [1], [0, 0, 1, 1], [], []>} : vector<8x8xf32>, vector<8x128xf32>, vector<8x128xf32> -> vector<8x128xf32>
    %230 = arith.addf %224, %229 : vector<8x128xf32>
    %c4_212 = arith.constant 4 : index
    %c0_213 = arith.constant 0 : index
    %c0_214 = arith.constant 0 : index
    %231 = vector.load %arg7[%c4_212, %c0_213, %c0_214] : memref<5x8x8xf32, #tpu.memory_space<vmem>>, vector<1x8x8xf32>
    %232 = vector.shape_cast %231 : vector<1x8x8xf32> to vector<8x8xf32>
    %c1_215 = arith.constant 1 : index
    %c0_216 = arith.constant 0 : index
    %c4_217 = arith.constant 4 : index
    %233 = vector.load %arg13[%c1_215, %c0_216, %c4_217] : memref<2x8x132xf32, #tpu.memory_space<vmem>>, vector<1x8x128xf32>
    %234 = vector.shape_cast %233 : vector<1x8x128xf32> to vector<8x128xf32>
    %cst_218 = arith.constant dense<0.000000e+00> : vector<8x128xf32>
    %235 = tpu.matmul %232, %234, %cst_218 {dimension_numbers = #tpu.dot_dimension_numbers<[1], [0], [0], [1], [0, 0, 1, 1], [], []>} : vector<8x8xf32>, vector<8x128xf32>, vector<8x128xf32> -> vector<8x128xf32>
    %236 = arith.addf %230, %235 : vector<8x128xf32>
    %c0_219 = arith.constant 0 : index
    %c0_220 = arith.constant 0 : index
    %237 = vector.load %arg8[%c0_219, %c0_220] : memref<8x1xf32, #tpu.memory_space<vmem>>, vector<8x1xf32>
    %238 = vector.broadcast %237 : vector<8x1xf32> to vector<8x128xf32>
    %239 = arith.addf %236, %238 : vector<8x128xf32>
    %cst_221 = arith.constant 0.000000e+00 : f32
    %240 = vector.broadcast %cst_221 : f32 to vector<8x128xf32>
    %241 = arith.maximumf %239, %240 : vector<8x128xf32>
    %cst_222 = arith.constant dense<0.000000e+00> : vector<8xf32>
    %242 = vector.multi_reduction <add>, %207, %cst_222 [1] : vector<8x128xf32> to vector<8xf32>
    %243 = vector.shape_cast %242 : vector<8xf32> to vector<8x1xf32>
    %cst_223 = arith.constant 0.000000e+00 : f32
    %244 = vector.broadcast %cst_223 : f32 to vector<8x1xf32>
    %245 = arith.addf %244, %243 : vector<8x1xf32>
    %cst_224 = arith.constant dense<0.000000e+00> : vector<8xf32>
    %246 = vector.multi_reduction <add>, %241, %cst_224 [1] : vector<8x128xf32> to vector<8xf32>
    %247 = vector.shape_cast %246 : vector<8xf32> to vector<8x1xf32>
    %248 = arith.addf %245, %247 : vector<8x1xf32>
    %cst_225 = arith.constant 3.906250e-03 : f32
    %249 = vector.broadcast %cst_225 : f32 to vector<8x1xf32>
    %250 = arith.mulf %248, %249 : vector<8x1xf32>
    %251 = vector.broadcast %250 : vector<8x1xf32> to vector<8x128xf32>
    %252 = arith.subf %207, %251 : vector<8x128xf32>
    %253 = arith.mulf %252, %252 : vector<8x128xf32>
    %cst_226 = arith.constant dense<0.000000e+00> : vector<8xf32>
    %254 = vector.multi_reduction <add>, %253, %cst_226 [1] : vector<8x128xf32> to vector<8xf32>
    %255 = vector.shape_cast %254 : vector<8xf32> to vector<8x1xf32>
    %cst_227 = arith.constant 0.000000e+00 : f32
    %256 = vector.broadcast %cst_227 : f32 to vector<8x1xf32>
    %257 = arith.addf %256, %255 : vector<8x1xf32>
    %258 = vector.broadcast %250 : vector<8x1xf32> to vector<8x128xf32>
    %259 = arith.subf %241, %258 : vector<8x128xf32>
    %260 = arith.mulf %259, %259 : vector<8x128xf32>
    %cst_228 = arith.constant dense<0.000000e+00> : vector<8xf32>
    %261 = vector.multi_reduction <add>, %260, %cst_228 [1] : vector<8x128xf32> to vector<8xf32>
    %262 = vector.shape_cast %261 : vector<8xf32> to vector<8x1xf32>
    %263 = arith.addf %257, %262 : vector<8x1xf32>
    %cst_229 = arith.constant 3.906250e-03 : f32
    %264 = vector.broadcast %cst_229 : f32 to vector<8x1xf32>
    %265 = arith.mulf %263, %264 : vector<8x1xf32>
    %cst_230 = arith.constant 9.99999974E-6 : f32
    %266 = vector.broadcast %cst_230 : f32 to vector<8x1xf32>
    %267 = arith.addf %265, %266 : vector<8x1xf32>
    %268 = math.rsqrt %267 : vector<8x1xf32>
    %c0_231 = arith.constant 0 : index
    %c0_232 = arith.constant 0 : index
    %269 = vector.load %arg9[%c0_231, %c0_232] : memref<8x1xf32, #tpu.memory_space<vmem>>, vector<8x1xf32>
    %270 = arith.mulf %268, %269 : vector<8x1xf32>
    %271 = vector.broadcast %250 : vector<8x1xf32> to vector<8x128xf32>
    %272 = arith.subf %207, %271 : vector<8x128xf32>
    %273 = vector.broadcast %270 : vector<8x1xf32> to vector<8x128xf32>
    %274 = arith.mulf %272, %273 : vector<8x128xf32>
    %c0_233 = arith.constant 0 : index
    %c0_234 = arith.constant 0 : index
    %275 = vector.load %arg10[%c0_233, %c0_234] : memref<8x1xf32, #tpu.memory_space<vmem>>, vector<8x1xf32>
    %276 = vector.broadcast %275 : vector<8x1xf32> to vector<8x128xf32>
    %277 = arith.addf %274, %276 : vector<8x128xf32>
    %c0_235 = arith.constant 0 : index
    %c0_236 = arith.constant 0 : index
    %c0_237 = arith.constant 0 : index
    %278 = vector.load %arg11[%c0_235, %c0_236, %c0_237] : memref<2x8x128xf32, #tpu.memory_space<vmem>>, vector<1x8x128xf32>
    %279 = vector.shape_cast %278 : vector<1x8x128xf32> to vector<8x128xf32>
    %280 = vector.shape_cast %277 : vector<8x128xf32> to vector<1x8x128xf32>
    tpu.vector_store %arg11[%c0_235, %c0_236, %c0_237], %280 {strides = array<i32>} : memref<2x8x128xf32, #tpu.memory_space<vmem>>, vector<1x8x128xf32>,
    %281 = vector.broadcast %250 : vector<8x1xf32> to vector<8x128xf32>
    %282 = arith.subf %241, %281 : vector<8x128xf32>
    %283 = vector.broadcast %270 : vector<8x1xf32> to vector<8x128xf32>
    %284 = arith.mulf %282, %283 : vector<8x128xf32>
    %c0_238 = arith.constant 0 : index
    %c0_239 = arith.constant 0 : index
    %285 = vector.load %arg10[%c0_238, %c0_239] : memref<8x1xf32, #tpu.memory_space<vmem>>, vector<8x1xf32>
    %286 = vector.broadcast %285 : vector<8x1xf32> to vector<8x128xf32>
    %287 = arith.addf %284, %286 : vector<8x128xf32>
    %c1_240 = arith.constant 1 : index
    %c0_241 = arith.constant 0 : index
    %c0_242 = arith.constant 0 : index
    %288 = vector.load %arg11[%c1_240, %c0_241, %c0_242] : memref<2x8x128xf32, #tpu.memory_space<vmem>>, vector<1x8x128xf32>
    %289 = vector.shape_cast %288 : vector<1x8x128xf32> to vector<8x128xf32>
    %290 = vector.shape_cast %287 : vector<8x128xf32> to vector<1x8x128xf32>
    tpu.vector_store %arg11[%c1_240, %c0_241, %c0_242], %290 {strides = array<i32>} : memref<2x8x128xf32, #tpu.memory_space<vmem>>, vector<1x8x128xf32>,
    return
  }
}

</mosaic_0001>

<llo_original>
// kernel: outconv_forward.1
$region0: #{outconv_forward.1}
  #allocation0 [shape = 'u32[]', space=smem, size = 0x4, offset = 0x4, fixed_abs, tag = 'smem constant byte address 0x4 - core index']
  #allocation1 [shape = 'u32[144,128]{1,0:T(1,128)}', space=vmem, size = 0x12000, scoped, tag = 'internal scratch']
  #allocation2 [shape = 'f32[2,8,132]{2,1,0:T(8,128)}', space=vmem, size = 0x4000, scoped, tag = 'scratch operand']
  #allocation3 [shape = 'f32[2,8,132]{2,1,0:T(8,128)}', space=vmem, size = 0x4000, scoped, tag = 'scratch operand']
  %s0 = inlined_call_operand.hbm [shape: f32[2,16,64], index: 0, kind: input, shape index: {}]
  %s1 = inlined_call_operand.hbm [shape: f32[2,8,16], index: 1, kind: input, shape index: {}]
  %s2 = inlined_call_operand.vmem [shape: f32[8,1], index: 2, kind: input, shape index: {}]
  %s3 = inlined_call_operand.vmem [shape: f32[5,8,8], index: 3, kind: input, shape index: {}]
  %s4 = inlined_call_operand.vmem [shape: f32[8,1], index: 4, kind: input, shape index: {}]
  %s5 = inlined_call_operand.vmem [shape: f32[8,1], index: 5, kind: input, shape index: {}]
  %s6 = inlined_call_operand.vmem [shape: f32[8,1], index: 6, kind: input, shape index: {}]
  %s7 = inlined_call_operand.vmem [shape: f32[5,8,8], index: 7, kind: input, shape index: {}]
  %s8 = inlined_call_operand.vmem [shape: f32[8,1], index: 8, kind: input, shape index: {}]
  %s9 = inlined_call_operand.vmem [shape: f32[8,1], index: 9, kind: input, shape index: {}]
  %s10 = inlined_call_operand.vmem [shape: f32[8,1], index: 10, kind: input, shape index: {}]
  %s11 = inlined_call_operand.hbm [shape: f32[2,8,128], index: 11, kind: output, shape index: {}]
  %s12 = sld [smem:[#allocation0]]
  $region62: #{outconv_forward.1} parent=0
    _
  %s14 = ssub.s32 1, %s12
  %s15 = scalar_select 0, %s14, %s12
  $region1: #{outconv_forward.1} parent=0
    #allocation4 [shape = 'u8[16384]{0}', space=vmem, size = 0x4000, scoped, tag = 'input window, operand 0, single buffered']
    #allocation5 [shape = 's32[1]{0}', space=sflag, size = 0x4, scoped, tag = 'scoped memory for outconv_forward.1']
    #allocation6 [shape = 's32[1]{0}', space=sflag, size = 0x4, scoped, tag = 'scoped memory for outconv_forward.1']
    #allocation7 [shape = 'u8[8192]{0}', space=vmem, size = 0x2000, scoped, tag = 'input window, operand 1, single buffered']
    #allocation8 [shape = 's32[1]{0}', space=sflag, size = 0x4, scoped, tag = 'scoped memory for outconv_forward.1']
    #allocation9 [shape = 'u8[8192]{0}', space=vmem, size = 0x2000, scoped, tag = 'output window, operand 0, single buffered']
    %16 = vsyncpa [#allocation5], 0
    %17 = vsyncpa [#allocation8], 0
    %18 = vsyncpa [#allocation6], 0
    // Predicated region
    $region2: #{outconv_forward.1} parent=1 // pred_check
      _
    $region3: #{outconv_forward.1} parent=1 // pred_check_branch
      %20 = sbr.rel (0) target = $region5
    $region4: #{outconv_forward.1} parent=1 // pred_region
      %s22 = ssub.s32 512, 512
      %23 = vsyncadd [#allocation5], %s22
      %s24 = sshll.u32 [#allocation4], 4
      %s25 = int_to_ptr.vmem [resolvable:$true] %s24
      %30 = dma.hbm_to_vmem [thread:$0]  %s0, 512, %s25, [#allocation5], 128, 128, 8
    $region5: #{outconv_forward.1} parent=1 // pred_fallthru
      _
    // Predicated region
    $region6: #{outconv_forward.1} parent=1 // pred_check
      _
    $region7: #{outconv_forward.1} parent=1 // pred_check_branch
      %32 = sbr.rel (0) target = $region9
    $region8: #{outconv_forward.1} parent=1 // pred_region
      %s34 = ssub.s32 256, 256
      %35 = vsyncadd [#allocation8], %s34
      %s36 = sshll.u32 [#allocation7], 4
      %s37 = int_to_ptr.vmem [resolvable:$true] %s36
      %42 = dma.hbm_to_vmem [thread:$0]  %s1, 256, %s37, [#allocation8], 128, 128, 8
    $region9: #{outconv_forward.1} parent=1 // pred_fallthru
      _
    // Predicated region
    $region10: #{outconv_forward.1} parent=1 // pred_check
      _
    $region11: #{outconv_forward.1} parent=1 // pred_check_branch
      %44 = sbr.rel (0) target = $region13
    $region12: #{outconv_forward.1} parent=1 // pred_region
      _
    $region13: #{outconv_forward.1} parent=1 // pred_fallthru
      _
    // Predicated region
    $region14: #{outconv_forward.1} parent=1 // pred_check
      _
    $region15: #{outconv_forward.1} parent=1 // pred_check_branch
      %46 = sbr.rel (0) target = $region17
    $region16: #{outconv_forward.1} parent=1 // pred_region
      _
    $region17: #{outconv_forward.1} parent=1 // pred_fallthru
      _
    // Predicated region
    $region18: #{outconv_forward.1} parent=1 // pred_check
      _
    $region19: #{outconv_forward.1} parent=1 // pred_check_branch
      %48 = sbr.rel (0) target = $region21
    $region20: #{outconv_forward.1} parent=1 // pred_region
      _
    $region21: #{outconv_forward.1} parent=1 // pred_fallthru
      _
    // Predicated region
    $region22: #{outconv_forward.1} parent=1 // pred_check
      _
    $region23: #{outconv_forward.1} parent=1 // pred_check_branch
      %50 = sbr.rel (0) target = $region25
    $region24: #{outconv_forward.1} parent=1 // pred_region
      _
    $region25: #{outconv_forward.1} parent=1 // pred_fallthru
      _
    // Predicated region
    $region26: #{outconv_forward.1} parent=1 // pred_check
      _
    $region27: #{outconv_forward.1} parent=1 // pred_check_branch
      %52 = sbr.rel (0) target = $region29
    $region28: #{outconv_forward.1} parent=1 // pred_region
      _
    $region29: #{outconv_forward.1} parent=1 // pred_fallthru
      _
    // Predicated region
    $region30: #{outconv_forward.1} parent=1 // pred_check
      _
    $region31: #{outconv_forward.1} parent=1 // pred_check_branch
      %54 = sbr.rel (0) target = $region33
    $region32: #{outconv_forward.1} parent=1 // pred_region
      _
    $region33: #{outconv_forward.1} parent=1 // pred_fallthru
      _
    // Predicated region
    $region34: #{outconv_forward.1} parent=1 // pred_check
      _
    $region35: #{outconv_forward.1} parent=1 // pred_check_branch
      %56 = sbr.rel (0) target = $region37
    $region36: #{outconv_forward.1} parent=1 // pred_region
      _
    $region37: #{outconv_forward.1} parent=1 // pred_fallthru
      _
    // Predicated region
    $region38: #{outconv_forward.1} parent=1 // pred_check
      _
    $region39: #{outconv_forward.1} parent=1 // pred_check_branch
      %58 = sbr.rel (0) target = $region41
    $region40: #{outconv_forward.1} parent=1 // pred_region
      _
    $region41: #{outconv_forward.1} parent=1 // pred_fallthru
      _
    // Predicated region
    $region42: #{outconv_forward.1} parent=1 // pred_check
      _
    $region43: #{outconv_forward.1} parent=1 // pred_check_branch
      %60 = sbr.rel (0) target = $region45
    $region44: #{outconv_forward.1} parent=1 // pred_region
      _
    $region45: #{outconv_forward.1} parent=1 // pred_fallthru
      _
    // Predicated region
    $region46: #{outconv_forward.1} parent=1 // pred_check
      _
    $region47: #{outconv_forward.1} parent=1 // pred_check_branch
      %62 = sbr.rel (0) target = $region49
    $region48: #{outconv_forward.1} parent=1 // pred_region
      %63 = dma.done [#allocation5], 512
    $region49: #{outconv_forward.1} parent=1 // pred_fallthru
      _
    // Predicated region
    $region50: #{outconv_forward.1} parent=1 // pred_check
      _
    $region51: #{outconv_forward.1} parent=1 // pred_check_branch
      %65 = sbr.rel (0) target = $region53
    $region52: #{outconv_forward.1} parent=1 // pred_region
      %66 = dma.done [#allocation8], 256
    $region53: #{outconv_forward.1} parent=1 // pred_fallthru
      _
    %v67 = vlaneseq
    %v68 = vshrl.u32 %v67, 7
    %v69 = vadd.s32 %v68, 8
    %v70 = vadd.s32 %v68, 16
    %v71 = vadd.s32 %v68, 24
    %v72 = vadd.s32 %v68, 32
    %v73 = vadd.s32 %v68, 40
    %v74 = vadd.s32 %v68, 48
    %v75 = vadd.s32 %v68, 56
    %v76 = vlaneseq
    %v77 = vand.u32 %v76, 127
    %v78 = vmul.u32 %v68, 2
    %v79 = vmul.u32 %v69, 2
    %v80 = vmul.u32 %v70, 2
    %v81 = vmul.u32 %v71, 2
    %v82 = vmul.u32 %v72, 2
    %v83 = vmul.u32 %v73, 2
    %v84 = vmul.u32 %v74, 2
    %v85 = vmul.u32 %v75, 2
    %vm86 = vcmp.eq.s32.totalorder %v77, %v78
    %vm87 = vcmp.eq.s32.totalorder %v77, %v79
    %vm88 = vcmp.eq.s32.totalorder %v77, %v80
    %vm89 = vcmp.eq.s32.totalorder %v77, %v81
    %vm90 = vcmp.eq.s32.totalorder %v77, %v82
    %vm91 = vcmp.eq.s32.totalorder %v77, %v83
    %vm92 = vcmp.eq.s32.totalorder %v77, %v84
    %vm93 = vcmp.eq.s32.totalorder %v77, %v85
    %v94 = vsel %vm86, 1, 0
    %v95 = vsel %vm87, 1, 0
    %v96 = vsel %vm88, 1, 0
    %v97 = vsel %vm89, 1, 0
    %v98 = vsel %vm90, 1, 0
    %v99 = vsel %vm91, 1, 0
    %v100 = vsel %vm92, 1, 0
    %v101 = vsel %vm93, 1, 0
    %v102 = vcvt.s32.f32 %v94
    %v103 = vcvt.s32.f32 %v95
    %v104 = vcvt.s32.f32 %v96
    %v105 = vcvt.s32.f32 %v97
    %v106 = vcvt.s32.f32 %v98
    %v107 = vcvt.s32.f32 %v99
    %v108 = vcvt.s32.f32 %v100
    %v109 = vcvt.s32.f32 %v101
    %v110 = vadd.s32 %v78, 1
    %v111 = vadd.s32 %v79, 1
    %v112 = vadd.s32 %v80, 1
    %v113 = vadd.s32 %v81, 1
    %v114 = vadd.s32 %v82, 1
    %v115 = vadd.s32 %v83, 1
    %v116 = vadd.s32 %v84, 1
    %v117 = vadd.s32 %v85, 1
    %vm118 = vcmp.eq.s32.totalorder %v77, %v110
    %vm119 = vcmp.eq.s32.totalorder %v77, %v111
    %vm120 = vcmp.eq.s32.totalorder %v77, %v112
    %vm121 = vcmp.eq.s32.totalorder %v77, %v113
    %vm122 = vcmp.eq.s32.totalorder %v77, %v114
    %vm123 = vcmp.eq.s32.totalorder %v77, %v115
    %vm124 = vcmp.eq.s32.totalorder %v77, %v116
    %vm125 = vcmp.eq.s32.totalorder %v77, %v117
    %v126 = vsel %vm118, 1, 0
    %v127 = vsel %vm119, 1, 0
    %v128 = vsel %vm120, 1, 0
    %v129 = vsel %vm121, 1, 0
    %v130 = vsel %vm122, 1, 0
    %v131 = vsel %vm123, 1, 0
    %v132 = vsel %vm124, 1, 0
    %v133 = vsel %vm125, 1, 0
    %v134 = vcvt.s32.f32 %v126
    %v135 = vcvt.s32.f32 %v127
    %v136 = vcvt.s32.f32 %v128
    %v137 = vcvt.s32.f32 %v129
    %v138 = vcvt.s32.f32 %v130
    %v139 = vcvt.s32.f32 %v131
    %v140 = vcvt.s32.f32 %v132
    %v141 = vcvt.s32.f32 %v133
    %vm142 = vcmask 15360
    %143 = vst.msk [vmem:[#allocation2] sm:$0xff] %vm142, 0.0
    %144 = vst.msk [vmem:[#allocation2 + $0x10] sm:$0xff] %vm142, 0.0
    %vm145 = vcmask 31760
    %146 = vst.msk [vmem:[#allocation2 + $0x8] sm:$0xff] %vm145, 0.0
    %147 = vst.msk [vmem:[#allocation2 + $0x18] sm:$0xff] %vm145, 0.0
    %148 = vst.msk [vmem:[#allocation3] sm:$0xff] %vm142, 0.0
    %149 = vst.msk [vmem:[#allocation3 + $0x10] sm:$0xff] %vm142, 0.0
    %150 = vst.msk [vmem:[#allocation3 + $0x8] sm:$0xff] %vm145, 0.0
    %151 = vst.msk [vmem:[#allocation3 + $0x18] sm:$0xff] %vm145, 0.0
    %v152 = vld [vmem:[#allocation7] sm:$0xff]
    %v153 = vld [vmem:[#allocation4] sm:$0xff]
    %v154 = vld [vmem:[#allocation4 + $0x8] sm:$0xff]
    %vm155 = vcmask 130048
    %v157 = vsel %vm155, %v152, 0
    %159 = vmatprep.subr.mxu0 0.0
    %160 = vmatpush1.msra.mxu0 0.0
    %161 = vmatprep.subr.mxu0 0.0
    %162 = vmatpush1.msra.mxu0 0.0
    %163 = vmatprep.subr.mxu0 0.0
    %164 = vmatpush1.msra.mxu0 0.0
    %165 = vmatprep.subr.mxu0 0.0
    %166 = vmatpush1.msra.mxu0 0.0
    %167 = vmatprep.subr.mxu0 0.0
    %168 = vmatpush1.msra.mxu0 0.0
    %169 = vmatprep.subr.mxu0 0.0
    %170 = vmatpush1.msra.mxu0 0.0
    %171 = vmatprep.subr.mxu0 0.0
    %172 = vmatpush1.msra.mxu0 0.0
    %173 = vmatprep.subr.mxu0 0.0
    %174 = vmatpush1.msra.mxu0 0.0
    %175 = vmatprep.subr.mxu0 0.0
    %176 = vmatpush1.msra.mxu0 0.0
    %177 = vmatprep.subr.mxu0 0.0
    %178 = vmatpush1.msra.mxu0 0.0
    %179 = vmatprep.subr.mxu0 0.0
    %180 = vmatpush1.msra.mxu0 0.0
    %181 = vmatprep.subr.mxu0 0.0
    %182 = vmatpush1.msra.mxu0 0.0
    %183 = vmatprep.subr.mxu0 0.0
    %184 = vmatpush1.msra.mxu0 0.0
    %185 = vmatprep.subr.mxu0 0.0
    %186 = vmatpush1.msra.mxu0 0.0
    %187 = vmatprep.subr.mxu0 0.0
    %188 = vmatpush1.msra.mxu0 %v154
    %189 = vmatprep.subr.mxu0 0.0
    %190 = vmatpush1.msra.mxu0 %v153
    %191 = vmatprep.subr.mxu0 0.0
    %192 = vmatpush2.msra.mxu0 0.0
    %193 = vmatprep.subr.mxu0 0.0
    %194 = vmatpush2.msra.mxu0 0.0
    %195 = vmatprep.subr.mxu0 0.0
    %196 = vmatpush2.msra.mxu0 0.0
    %197 = vmatprep.subr.mxu0 0.0
    %198 = vmatpush2.msra.mxu0 0.0
    %199 = vmatprep.subr.mxu0 0.0
    %200 = vmatpush2.msra.mxu0 0.0
    %201 = vmatprep.subr.mxu0 0.0
    %202 = vmatpush2.msra.mxu0 0.0
    %203 = vmatprep.subr.mxu0 0.0
    %204 = vmatpush2.msra.mxu0 0.0
    %205 = vmatprep.subr.mxu0 0.0
    %206 = vmatpush2.msra.mxu0 0.0
    %207 = vmatprep.subr.mxu0 0.0
    %208 = vmatpush2.msra.mxu0 0.0
    %209 = vmatprep.subr.mxu0 0.0
    %210 = vmatpush2.msra.mxu0 0.0
    %211 = vmatprep.subr.mxu0 0.0
    %212 = vmatpush2.msra.mxu0 0.0
    %213 = vmatprep.subr.mxu0 0.0
    %214 = vmatpush2.msra.mxu0 0.0
    %215 = vmatprep.subr.mxu0 0.0
    %216 = vmatpush2.msra.mxu0 0.0
    %217 = vmatprep.subr.mxu0 0.0
    %218 = vmatpush2.msra.mxu0 0.0
    %219 = vmatprep.subr.mxu0 0.0
    %220 = vmatpush2.msra.mxu0 0.0
    %221 = vmatprep.subr.mxu0 0.0
    %222 = vmatpush2.msra.mxu0 0.0
    %223 = vmatprep.mubr.f32.mxu0 0.0
    %224 = vmatmul.mubr.f32.gmra.mxu0 %v157
    %v225 = vpop.f32.mrf.mxu0
    %v226 = vadd.f32 0.0, %v225
    %v227 = vpop.f32.mrf.mxu0
    %228 = vdwg.mxu0
    %s229 = scalar_lea.vmem [#allocation7], 8
    %v230 = vld [vmem:[%s229] sm:$0xff]
    %v232 = vsel %vm155, %v230, 0
    %234 = vmatprep.subr.mxu0 0.0
    %235 = vmatpush1.msra.mxu0 0.0
    %236 = vmatprep.subr.mxu0 0.0
    %237 = vmatpush1.msra.mxu0 0.0
    %238 = vmatprep.subr.mxu0 0.0
    %239 = vmatpush1.msra.mxu0 0.0
    %240 = vmatprep.subr.mxu0 0.0
    %241 = vmatpush1.msra.mxu0 0.0
    %242 = vmatprep.subr.mxu0 0.0
    %243 = vmatpush1.msra.mxu0 0.0
    %244 = vmatprep.subr.mxu0 0.0
    %245 = vmatpush1.msra.mxu0 0.0
    %246 = vmatprep.subr.mxu0 0.0
    %247 = vmatpush1.msra.mxu0 0.0
    %248 = vmatprep.subr.mxu0 0.0
    %249 = vmatpush1.msra.mxu0 0.0
    %250 = vmatprep.subr.mxu0 0.0
    %251 = vmatpush1.msra.mxu0 0.0
    %252 = vmatprep.subr.mxu0 0.0
    %253 = vmatpush1.msra.mxu0 0.0
    %254 = vmatprep.subr.mxu0 0.0
    %255 = vmatpush1.msra.mxu0 0.0
    %256 = vmatprep.subr.mxu0 0.0
    %257 = vmatpush1.msra.mxu0 0.0
    %258 = vmatprep.subr.mxu0 0.0
    %259 = vmatpush1.msra.mxu0 0.0
    %260 = vmatprep.subr.mxu0 0.0
    %261 = vmatpush1.msra.mxu0 0.0
    %262 = vmatprep.subr.mxu0 0.0
    %263 = vmatpush1.msra.mxu0 %v154
    %264 = vmatprep.subr.mxu0 0.0
    %265 = vmatpush1.msra.mxu0 %v153
    %266 = vmatprep.subr.mxu0 0.0
    %267 = vmatpush2.msra.mxu0 0.0
    %268 = vmatprep.subr.mxu0 0.0
    %269 = vmatpush2.msra.mxu0 0.0
    %270 = vmatprep.subr.mxu0 0.0
    %271 = vmatpush2.msra.mxu0 0.0
    %272 = vmatprep.subr.mxu0 0.0
    %273 = vmatpush2.msra.mxu0 0.0
    %274 = vmatprep.subr.mxu0 0.0
    %275 = vmatpush2.msra.mxu0 0.0
    %276 = vmatprep.subr.mxu0 0.0
    %277 = vmatpush2.msra.mxu0 0.0
    %278 = vmatprep.subr.mxu0 0.0
    %279 = vmatpush2.msra.mxu0 0.0
    %280 = vmatprep.subr.mxu0 0.0
    %281 = vmatpush2.msra.mxu0 0.0
    %282 = vmatprep.subr.mxu0 0.0
    %283 = vmatpush2.msra.mxu0 0.0
    %284 = vmatprep.subr.mxu0 0.0
    %285 = vmatpush2.msra.mxu0 0.0
    %286 = vmatprep.subr.mxu0 0.0
    %287 = vmatpush2.msra.mxu0 0.0
    %288 = vmatprep.subr.mxu0 0.0
    %289 = vmatpush2.msra.mxu0 0.0
    %290 = vmatprep.subr.mxu0 0.0
    %291 = vmatpush2.msra.mxu0 0.0
    %292 = vmatprep.subr.mxu0 0.0
    %293 = vmatpush2.msra.mxu0 0.0
    %294 = vmatprep.subr.mxu0 0.0
    %295 = vmatpush2.msra.mxu0 0.0
    %296 = vmatprep.subr.mxu0 0.0
    %297 = vmatpush2.msra.mxu0 0.0
    %298 = vmatprep.mubr.f32.mxu0 0.0
    %299 = vmatmul.mubr.f32.gmra.mxu0 %v232
    %v300 = vpop.f32.mrf.mxu0
    %v301 = vadd.f32 0.0, %v300
    %v302 = vpop.f32.mrf.mxu0
    %303 = vdwg.mxu0
    %vm304 = vcmask 523264
    %v306 = vsel %vm304, %v301, 0
    %308 = vmatprep.subr.mxu0 0.0
    %309 = vmatpush1.msra.mxu0 0.0
    %310 = vmatprep.subr.mxu0 0.0
    %311 = vmatpush1.msra.mxu0 0.0
    %312 = vmatprep.subr.mxu0 0.0
    %313 = vmatpush1.msra.mxu0 0.0
    %314 = vmatprep.subr.mxu0 0.0
    %315 = vmatpush1.msra.mxu0 0.0
    %316 = vmatprep.subr.mxu0 0.0
    %317 = vmatpush1.msra.mxu0 0.0
    %318 = vmatprep.subr.mxu0 0.0
    %319 = vmatpush1.msra.mxu0 0.0
    %320 = vmatprep.subr.mxu0 0.0
    %321 = vmatpush1.msra.mxu0 0.0
    %322 = vmatprep.subr.mxu0 0.0
    %323 = vmatpush1.msra.mxu0 0.0
    %324 = vmatprep.subr.mxu0 0.0
    %325 = vmatpush1.msra.mxu0 %v141
    %326 = vmatprep.subr.mxu0 0.0
    %327 = vmatpush1.msra.mxu0 %v140
    %328 = vmatprep.subr.mxu0 0.0
    %329 = vmatpush1.msra.mxu0 %v139
    %330 = vmatprep.subr.mxu0 0.0
    %331 = vmatpush1.msra.mxu0 %v138
    %332 = vmatprep.subr.mxu0 0.0
    %333 = vmatpush1.msra.mxu0 %v137
    %334 = vmatprep.subr.mxu0 0.0
    %335 = vmatpush1.msra.mxu0 %v136
    %336 = vmatprep.subr.mxu0 0.0
    %337 = vmatpush1.msra.mxu0 %v135
    %338 = vmatprep.subr.mxu0 0.0
    %339 = vmatpush1.msra.mxu0 %v134
    %340 = vmatprep.subr.mxu0 0.0
    %341 = vmatpush2.msra.mxu0 0.0
    %342 = vmatprep.subr.mxu0 0.0
    %343 = vmatpush2.msra.mxu0 0.0
    %344 = vmatprep.subr.mxu0 0.0
    %345 = vmatpush2.msra.mxu0 0.0
    %346 = vmatprep.subr.mxu0 0.0
    %347 = vmatpush2.msra.mxu0 0.0
    %348 = vmatprep.subr.mxu0 0.0
    %349 = vmatpush2.msra.mxu0 0.0
    %350 = vmatprep.subr.mxu0 0.0
    %351 = vmatpush2.msra.mxu0 0.0
    %352 = vmatprep.subr.mxu0 0.0
    %353 = vmatpush2.msra.mxu0 0.0
    %354 = vmatprep.subr.mxu0 0.0
    %355 = vmatpush2.msra.mxu0 0.0
    %356 = vmatprep.subr.mxu0 0.0
    %357 = vmatpush2.msra.mxu0 0.0
    %358 = vmatprep.subr.mxu0 0.0
    %359 = vmatpush2.msra.mxu0 0.0
    %360 = vmatprep.subr.mxu0 0.0
    %361 = vmatpush2.msra.mxu0 0.0
    %362 = vmatprep.subr.mxu0 0.0
    %363 = vmatpush2.msra.mxu0 0.0
    %364 = vmatprep.subr.mxu0 0.0
    %365 = vmatpush2.msra.mxu0 0.0
    %366 = vmatprep.subr.mxu0 0.0
    %367 = vmatpush2.msra.mxu0 0.0
    %368 = vmatprep.subr.mxu0 0.0
    %369 = vmatpush2.msra.mxu0 0.0
    %370 = vmatprep.subr.mxu0 0.0
    %371 = vmatpush2.msra.mxu0 0.0
    %372 = vmatprep.mubr.f32.mxu0 0.0
    %373 = vmatmul.mubr.f32.gmra.mxu0 %v306
    %v374 = vpop.f32.mrf.mxu0
    %v375 = vadd.f32 0.0, %v374
    %v376 = vpop.f32.mrf.mxu0
    %377 = vdwg.mxu0
    %v379 = vsel %vm304, %v226, 0
    %381 = vmatprep.subr.mxu0 0.0
    %382 = vmatpush1.msra.mxu0 0.0
    %383 = vmatprep.subr.mxu0 0.0
    %384 = vmatpush1.msra.mxu0 0.0
    %385 = vmatprep.subr.mxu0 0.0
    %386 = vmatpush1.msra.mxu0 0.0
    %387 = vmatprep.subr.mxu0 0.0
    %388 = vmatpush1.msra.mxu0 0.0
    %389 = vmatprep.subr.mxu0 0.0
    %390 = vmatpush1.msra.mxu0 0.0
    %391 = vmatprep.subr.mxu0 0.0
    %392 = vmatpush1.msra.mxu0 0.0
    %393 = vmatprep.subr.mxu0 0.0
    %394 = vmatpush1.msra.mxu0 0.0
    %395 = vmatprep.subr.mxu0 0.0
    %396 = vmatpush1.msra.mxu0 0.0
    %397 = vmatprep.subr.mxu0 0.0
    %398 = vmatpush1.msra.mxu0 %v109
    %399 = vmatprep.subr.mxu0 0.0
    %400 = vmatpush1.msra.mxu0 %v108
    %401 = vmatprep.subr.mxu0 0.0
    %402 = vmatpush1.msra.mxu0 %v107
    %403 = vmatprep.subr.mxu0 0.0
    %404 = vmatpush1.msra.mxu0 %v106
    %405 = vmatprep.subr.mxu0 0.0
    %406 = vmatpush1.msra.mxu0 %v105
    %407 = vmatprep.subr.mxu0 0.0
    %408 = vmatpush1.msra.mxu0 %v104
    %409 = vmatprep.subr.mxu0 0.0
    %410 = vmatpush1.msra.mxu0 %v103
    %411 = vmatprep.subr.mxu0 0.0
    %412 = vmatpush1.msra.mxu0 %v102
    %413 = vmatprep.subr.mxu0 0.0
    %414 = vmatpush2.msra.mxu0 0.0
    %415 = vmatprep.subr.mxu0 0.0
    %416 = vmatpush2.msra.mxu0 0.0
    %417 = vmatprep.subr.mxu0 0.0
    %418 = vmatpush2.msra.mxu0 0.0
    %419 = vmatprep.subr.mxu0 0.0
    %420 = vmatpush2.msra.mxu0 0.0
    %421 = vmatprep.subr.mxu0 0.0
    %422 = vmatpush2.msra.mxu0 0.0
    %423 = vmatprep.subr.mxu0 0.0
    %424 = vmatpush2.msra.mxu0 0.0
    %425 = vmatprep.subr.mxu0 0.0
    %426 = vmatpush2.msra.mxu0 0.0
    %427 = vmatprep.subr.mxu0 0.0
    %428 = vmatpush2.msra.mxu0 0.0
    %429 = vmatprep.subr.mxu0 0.0
    %430 = vmatpush2.msra.mxu0 0.0
    %431 = vmatprep.subr.mxu0 0.0
    %432 = vmatpush2.msra.mxu0 0.0
    %433 = vmatprep.subr.mxu0 0.0
    %434 = vmatpush2.msra.mxu0 0.0
    %435 = vmatprep.subr.mxu0 0.0
    %436 = vmatpush2.msra.mxu0 0.0
    %437 = vmatprep.subr.mxu0 0.0
    %438 = vmatpush2.msra.mxu0 0.0
    %439 = vmatprep.subr.mxu0 0.0
    %440 = vmatpush2.msra.mxu0 0.0
    %441 = vmatprep.subr.mxu0 0.0
    %442 = vmatpush2.msra.mxu0 0.0
    %443 = vmatprep.subr.mxu0 0.0
    %444 = vmatpush2.msra.mxu0 0.0
    %445 = vmatprep.mubr.f32.mxu0 0.0
    %446 = vmatmul.mubr.f32.gmra.mxu0 %v379
    %v447 = vpop.f32.mrf.mxu0
    %v448 = vadd.f32 %v375, %v447
    %v449 = vpop.f32.mrf.mxu0
    %450 = vdwg.mxu0
    %v451 = vld [vmem:[%s2] sm:$0xff]
    %453 = vset.pattern.permute.xlu0 0
    %454 = vperm.xlu0 %453, %v451
    %v455 = vpop.permute.xlu0 %454
    %v457 = vadd.f32 %v448, %v455
    %459 = vrot.lane.b32.xlu0 %v457, 2
    %v460 = vpop.permute.xlu0 %459
    %vm462 = vcmask 1047568
    %463 = vst.msk [vmem:[#allocation2] sm:$0xff] %vm462, %v460
    %464 = vst.msk [vmem:[#allocation2 + $0x8] sm:$0xff] %vm142, %v460
    %v465 = vld [vmem:[#allocation7] sm:$0xff]
    %s466 = scalar_lea.vmem [#allocation4], 16
    %v467 = vld [vmem:[%s466] sm:$0xff]
    %v468 = vld [vmem:[%s466 + $0x8] sm:$0xff]
    %v470 = vsel %vm155, %v465, 0
    %472 = vmatprep.subr.mxu0 0.0
    %473 = vmatpush1.msra.mxu0 0.0
    %474 = vmatprep.subr.mxu0 0.0
    %475 = vmatpush1.msra.mxu0 0.0
    %476 = vmatprep.subr.mxu0 0.0
    %477 = vmatpush1.msra.mxu0 0.0
    %478 = vmatprep.subr.mxu0 0.0
    %479 = vmatpush1.msra.mxu0 0.0
    %480 = vmatprep.subr.mxu0 0.0
    %481 = vmatpush1.msra.mxu0 0.0
    %482 = vmatprep.subr.mxu0 0.0
    %483 = vmatpush1.msra.mxu0 0.0
    %484 = vmatprep.subr.mxu0 0.0
    %485 = vmatpush1.msra.mxu0 0.0
    %486 = vmatprep.subr.mxu0 0.0
    %487 = vmatpush1.msra.mxu0 0.0
    %488 = vmatprep.subr.mxu0 0.0
    %489 = vmatpush1.msra.mxu0 0.0
    %490 = vmatprep.subr.mxu0 0.0
    %491 = vmatpush1.msra.mxu0 0.0
    %492 = vmatprep.subr.mxu0 0.0
    %493 = vmatpush1.msra.mxu0 0.0
    %494 = vmatprep.subr.mxu0 0.0
    %495 = vmatpush1.msra.mxu0 0.0
    %496 = vmatprep.subr.mxu0 0.0
    %497 = vmatpush1.msra.mxu0 0.0
    %498 = vmatprep.subr.mxu0 0.0
    %499 = vmatpush1.msra.mxu0 0.0
    %500 = vmatprep.subr.mxu0 0.0
    %501 = vmatpush1.msra.mxu0 %v468
    %502 = vmatprep.subr.mxu0 0.0
    %503 = vmatpush1.msra.mxu0 %v467
    %504 = vmatprep.subr.mxu0 0.0
    %505 = vmatpush2.msra.mxu0 0.0
    %506 = vmatprep.subr.mxu0 0.0
    %507 = vmatpush2.msra.mxu0 0.0
    %508 = vmatprep.subr.mxu0 0.0
    %509 = vmatpush2.msra.mxu0 0.0
    %510 = vmatprep.subr.mxu0 0.0
    %511 = vmatpush2.msra.mxu0 0.0
    %512 = vmatprep.subr.mxu0 0.0
    %513 = vmatpush2.msra.mxu0 0.0
    %514 = vmatprep.subr.mxu0 0.0
    %515 = vmatpush2.msra.mxu0 0.0
    %516 = vmatprep.subr.mxu0 0.0
    %517 = vmatpush2.msra.mxu0 0.0
    %518 = vmatprep.subr.mxu0 0.0
    %519 = vmatpush2.msra.mxu0 0.0
    %520 = vmatprep.subr.mxu0 0.0
    %521 = vmatpush2.msra.mxu0 0.0
    %522 = vmatprep.subr.mxu0 0.0
    %523 = vmatpush2.msra.mxu0 0.0
    %524 = vmatprep.subr.mxu0 0.0
    %525 = vmatpush2.msra.mxu0 0.0
    %526 = vmatprep.subr.mxu0 0.0
    %527 = vmatpush2.msra.mxu0 0.0
    %528 = vmatprep.subr.mxu0 0.0
    %529 = vmatpush2.msra.mxu0 0.0
    %530 = vmatprep.subr.mxu0 0.0
    %531 = vmatpush2.msra.mxu0 0.0
    %532 = vmatprep.subr.mxu0 0.0
    %533 = vmatpush2.msra.mxu0 0.0
    %534 = vmatprep.subr.mxu0 0.0
    %535 = vmatpush2.msra.mxu0 0.0
    %536 = vmatprep.mubr.f32.mxu0 0.0
    %537 = vmatmul.mubr.f32.gmra.mxu0 %v470
    %v538 = vpop.f32.mrf.mxu0
    %v539 = vadd.f32 0.0, %v538
    %v540 = vpop.f32.mrf.mxu0
    %541 = vdwg.mxu0
    %v542 = vld [vmem:[%s229] sm:$0xff]
    %v544 = vsel %vm155, %v542, 0
    %546 = vmatprep.subr.mxu0 0.0
    %547 = vmatpush1.msra.mxu0 0.0
    %548 = vmatprep.subr.mxu0 0.0
    %549 = vmatpush1.msra.mxu0 0.0
    %550 = vmatprep.subr.mxu0 0.0
    %551 = vmatpush1.msra.mxu0 0.0
    %552 = vmatprep.subr.mxu0 0.0
    %553 = vmatpush1.msra.mxu0 0.0
    %554 = vmatprep.subr.mxu0 0.0
    %555 = vmatpush1.msra.mxu0 0.0
    %556 = vmatprep.subr.mxu0 0.0
    %557 = vmatpush1.msra.mxu0 0.0
    %558 = vmatprep.subr.mxu0 0.0
    %559 = vmatpush1.msra.mxu0 0.0
    %560 = vmatprep.subr.mxu0 0.0
    %561 = vmatpush1.msra.mxu0 0.0
    %562 = vmatprep.subr.mxu0 0.0
    %563 = vmatpush1.msra.mxu0 0.0
    %564 = vmatprep.subr.mxu0 0.0
    %565 = vmatpush1.msra.mxu0 0.0
    %566 = vmatprep.subr.mxu0 0.0
    %567 = vmatpush1.msra.mxu0 0.0
    %568 = vmatprep.subr.mxu0 0.0
    %569 = vmatpush1.msra.mxu0 0.0
    %570 = vmatprep.subr.mxu0 0.0
    %571 = vmatpush1.msra.mxu0 0.0
    %572 = vmatprep.subr.mxu0 0.0
    %573 = vmatpush1.msra.mxu0 0.0
    %574 = vmatprep.subr.mxu0 0.0
    %575 = vmatpush1.msra.mxu0 %v468
    %576 = vmatprep.subr.mxu0 0.0
    %577 = vmatpush1.msra.mxu0 %v467
    %578 = vmatprep.subr.mxu0 0.0
    %579 = vmatpush2.msra.mxu0 0.0
    %580 = vmatprep.subr.mxu0 0.0
    %581 = vmatpush2.msra.mxu0 0.0
    %582 = vmatprep.subr.mxu0 0.0
    %583 = vmatpush2.msra.mxu0 0.0
    %584 = vmatprep.subr.mxu0 0.0
    %585 = vmatpush2.msra.mxu0 0.0
    %586 = vmatprep.subr.mxu0 0.0
    %587 = vmatpush2.msra.mxu0 0.0
    %588 = vmatprep.subr.mxu0 0.0
    %589 = vmatpush2.msra.mxu0 0.0
    %590 = vmatprep.subr.mxu0 0.0
    %591 = vmatpush2.msra.mxu0 0.0
    %592 = vmatprep.subr.mxu0 0.0
    %593 = vmatpush2.msra.mxu0 0.0
    %594 = vmatprep.subr.mxu0 0.0
    %595 = vmatpush2.msra.mxu0 0.0
    %596 = vmatprep.subr.mxu0 0.0
    %597 = vmatpush2.msra.mxu0 0.0
    %598 = vmatprep.subr.mxu0 0.0
    %599 = vmatpush2.msra.mxu0 0.0
    %600 = vmatprep.subr.mxu0 0.0
    %601 = vmatpush2.msra.mxu0 0.0
    %602 = vmatprep.subr.mxu0 0.0
    %603 = vmatpush2.msra.mxu0 0.0
    %604 = vmatprep.subr.mxu0 0.0
    %605 = vmatpush2.msra.mxu0 0.0
    %606 = vmatprep.subr.mxu0 0.0
    %607 = vmatpush2.msra.mxu0 0.0
    %608 = vmatprep.subr.mxu0 0.0
    %609 = vmatpush2.msra.mxu0 0.0
    %610 = vmatprep.mubr.f32.mxu0 0.0
    %611 = vmatmul.mubr.f32.gmra.mxu0 %v544
    %v612 = vpop.f32.mrf.mxu0
    %v613 = vadd.f32 0.0, %v612
    %v614 = vpop.f32.mrf.mxu0
    %615 = vdwg.mxu0
    %v617 = vsel %vm304, %v613, 0
    %619 = vmatprep.subr.mxu0 0.0
    %620 = vmatpush1.msra.mxu0 0.0
    %621 = vmatprep.subr.mxu0 0.0
    %622 = vmatpush1.msra.mxu0 0.0
    %623 = vmatprep.subr.mxu0 0.0
    %624 = vmatpush1.msra.mxu0 0.0
    %625 = vmatprep.subr.mxu0 0.0
    %626 = vmatpush1.msra.mxu0 0.0
    %627 = vmatprep.subr.mxu0 0.0
    %628 = vmatpush1.msra.mxu0 0.0
    %629 = vmatprep.subr.mxu0 0.0
    %630 = vmatpush1.msra.mxu0 0.0
    %631 = vmatprep.subr.mxu0 0.0
    %632 = vmatpush1.msra.mxu0 0.0
    %633 = vmatprep.subr.mxu0 0.0
    %634 = vmatpush1.msra.mxu0 0.0
    %635 = vmatprep.subr.mxu0 0.0
    %636 = vmatpush1.msra.mxu0 %v141
    %637 = vmatprep.subr.mxu0 0.0
    %638 = vmatpush1.msra.mxu0 %v140
    %639 = vmatprep.subr.mxu0 0.0
    %640 = vmatpush1.msra.mxu0 %v139
    %641 = vmatprep.subr.mxu0 0.0
    %642 = vmatpush1.msra.mxu0 %v138
    %643 = vmatprep.subr.mxu0 0.0
    %644 = vmatpush1.msra.mxu0 %v137
    %645 = vmatprep.subr.mxu0 0.0
    %646 = vmatpush1.msra.mxu0 %v136
    %647 = vmatprep.subr.mxu0 0.0
    %648 = vmatpush1.msra.mxu0 %v135
    %649 = vmatprep.subr.mxu0 0.0
    %650 = vmatpush1.msra.mxu0 %v134
    %651 = vmatprep.subr.mxu0 0.0
    %652 = vmatpush2.msra.mxu0 0.0
    %653 = vmatprep.subr.mxu0 0.0
    %654 = vmatpush2.msra.mxu0 0.0
    %655 = vmatprep.subr.mxu0 0.0
    %656 = vmatpush2.msra.mxu0 0.0
    %657 = vmatprep.subr.mxu0 0.0
    %658 = vmatpush2.msra.mxu0 0.0
    %659 = vmatprep.subr.mxu0 0.0
    %660 = vmatpush2.msra.mxu0 0.0
    %661 = vmatprep.subr.mxu0 0.0
    %662 = vmatpush2.msra.mxu0 0.0
    %663 = vmatprep.subr.mxu0 0.0
    %664 = vmatpush2.msra.mxu0 0.0
    %665 = vmatprep.subr.mxu0 0.0
    %666 = vmatpush2.msra.mxu0 0.0
    %667 = vmatprep.subr.mxu0 0.0
    %668 = vmatpush2.msra.mxu0 0.0
    %669 = vmatprep.subr.mxu0 0.0
    %670 = vmatpush2.msra.mxu0 0.0
    %671 = vmatprep.subr.mxu0 0.0
    %672 = vmatpush2.msra.mxu0 0.0
    %673 = vmatprep.subr.mxu0 0.0
    %674 = vmatpush2.msra.mxu0 0.0
    %675 = vmatprep.subr.mxu0 0.0
    %676 = vmatpush2.msra.mxu0 0.0
    %677 = vmatprep.subr.mxu0 0.0
    %678 = vmatpush2.msra.mxu0 0.0
    %679 = vmatprep.subr.mxu0 0.0
    %680 = vmatpush2.msra.mxu0 0.0
    %681 = vmatprep.subr.mxu0 0.0
    %682 = vmatpush2.msra.mxu0 0.0
    %683 = vmatprep.mubr.f32.mxu0 0.0
    %684 = vmatmul.mubr.f32.gmra.mxu0 %v617
    %v685 = vpop.f32.mrf.mxu0
    %v686 = vadd.f32 0.0, %v685
    %v687 = vpop.f32.mrf.mxu0
    %688 = vdwg.mxu0
    %v690 = vsel %vm304, %v539, 0
    %692 = vmatprep.subr.mxu0 0.0
    %693 = vmatpush1.msra.mxu0 0.0
    %694 = vmatprep.subr.mxu0 0.0
    %695 = vmatpush1.msra.mxu0 0.0
    %696 = vmatprep.subr.mxu0 0.0
    %697 = vmatpush1.msra.mxu0 0.0
    %698 = vmatprep.subr.mxu0 0.0
    %699 = vmatpush1.msra.mxu0 0.0
    %700 = vmatprep.subr.mxu0 0.0
    %701 = vmatpush1.msra.mxu0 0.0
    %702 = vmatprep.subr.mxu0 0.0
    %703 = vmatpush1.msra.mxu0 0.0
    %704 = vmatprep.subr.mxu0 0.0
    %705 = vmatpush1.msra.mxu0 0.0
    %706 = vmatprep.subr.mxu0 0.0
    %707 = vmatpush1.msra.mxu0 0.0
    %708 = vmatprep.subr.mxu0 0.0
    %709 = vmatpush1.msra.mxu0 %v109
    %710 = vmatprep.subr.mxu0 0.0
    %711 = vmatpush1.msra.mxu0 %v108
    %712 = vmatprep.subr.mxu0 0.0
    %713 = vmatpush1.msra.mxu0 %v107
    %714 = vmatprep.subr.mxu0 0.0
    %715 = vmatpush1.msra.mxu0 %v106
    %716 = vmatprep.subr.mxu0 0.0
    %717 = vmatpush1.msra.mxu0 %v105
    %718 = vmatprep.subr.mxu0 0.0
    %719 = vmatpush1.msra.mxu0 %v104
    %720 = vmatprep.subr.mxu0 0.0
    %721 = vmatpush1.msra.mxu0 %v103
    %722 = vmatprep.subr.mxu0 0.0
    %723 = vmatpush1.msra.mxu0 %v102
    %724 = vmatprep.subr.mxu0 0.0
    %725 = vmatpush2.msra.mxu0 0.0
    %726 = vmatprep.subr.mxu0 0.0
    %727 = vmatpush2.msra.mxu0 0.0
    %728 = vmatprep.subr.mxu0 0.0
    %729 = vmatpush2.msra.mxu0 0.0
    %730 = vmatprep.subr.mxu0 0.0
    %731 = vmatpush2.msra.mxu0 0.0
    %732 = vmatprep.subr.mxu0 0.0
    %733 = vmatpush2.msra.mxu0 0.0
    %734 = vmatprep.subr.mxu0 0.0
    %735 = vmatpush2.msra.mxu0 0.0
    %736 = vmatprep.subr.mxu0 0.0
    %737 = vmatpush2.msra.mxu0 0.0
    %738 = vmatprep.subr.mxu0 0.0
    %739 = vmatpush2.msra.mxu0 0.0
    %740 = vmatprep.subr.mxu0 0.0
    %741 = vmatpush2.msra.mxu0 0.0
    %742 = vmatprep.subr.mxu0 0.0
    %743 = vmatpush2.msra.mxu0 0.0
    %744 = vmatprep.subr.mxu0 0.0
    %745 = vmatpush2.msra.mxu0 0.0
    %746 = vmatprep.subr.mxu0 0.0
    %747 = vmatpush2.msra.mxu0 0.0
    %748 = vmatprep.subr.mxu0 0.0
    %749 = vmatpush2.msra.mxu0 0.0
    %750 = vmatprep.subr.mxu0 0.0
    %751 = vmatpush2.msra.mxu0 0.0
    %752 = vmatprep.subr.mxu0 0.0
    %753 = vmatpush2.msra.mxu0 0.0
    %754 = vmatprep.subr.mxu0 0.0
    %755 = vmatpush2.msra.mxu0 0.0
    %756 = vmatprep.mubr.f32.mxu0 0.0
    %757 = vmatmul.mubr.f32.gmra.mxu0 %v690
    %v758 = vpop.f32.mrf.mxu0
    %v759 = vadd.f32 %v686, %v758
    %v760 = vpop.f32.mrf.mxu0
    %761 = vdwg.mxu0
    %v762 = vld [vmem:[%s2] sm:$0xff]
    %764 = vset.pattern.permute.xlu0 0
    %765 = vperm.xlu0 %764, %v762
    %v766 = vpop.permute.xlu0 %765
    %v768 = vadd.f32 %v759, %v766
    %770 = vrot.lane.b32.xlu0 %v768, 2
    %v771 = vpop.permute.xlu0 %770
    %s773 = scalar_lea.vmem [#allocation2], 16
    %774 = vst.msk [vmem:[%s773] sm:$0xff] %vm462, %v771
    %775 = vst.msk [vmem:[%s773 + $0x8] sm:$0xff] %vm142, %v771
    %v776 = vld [vmem:[%s3] sm:$0xff]
    %v777 = vld [vmem:[#allocation2] sm:$0xff]
    %s778 = scalar_lea.vmem %s3, 8
    %v779 = vld [vmem:[%s778] sm:$0xff]
    %v780 = vld [vmem:[#allocation2 + $0x8] sm:$0xff]
    %783 = vrot.lane.b32.xlu0 %v777, 127
    %v784 = vpop.permute.xlu0 %783
    %785 = vrot.lane.b32.xlu0 %v780, 127
    %v786 = vpop.permute.xlu0 %785
    %vm787 = vcmask 1039360
    %v788 = vsel %vm787, %v784, %v786
    %vm790 = vcmask 64512
    %v792 = vsel %vm790, %v779, 0
    %794 = vmatprep.subr.mxu0 0.0
    %795 = vmatpush1.msra.mxu0 0.0
    %796 = vmatprep.subr.mxu0 0.0
    %797 = vmatpush1.msra.mxu0 0.0
    %798 = vmatprep.subr.mxu0 0.0
    %799 = vmatpush1.msra.mxu0 0.0
    %800 = vmatprep.subr.mxu0 0.0
    %801 = vmatpush1.msra.mxu0 0.0
    %802 = vmatprep.subr.mxu0 0.0
    %803 = vmatpush1.msra.mxu0 0.0
    %804 = vmatprep.subr.mxu0 0.0
    %805 = vmatpush1.msra.mxu0 0.0
    %806 = vmatprep.subr.mxu0 0.0
    %807 = vmatpush1.msra.mxu0 0.0
    %808 = vmatprep.subr.mxu0 0.0
    %809 = vmatpush1.msra.mxu0 0.0
    %810 = vmatprep.subr.mxu0 0.0
    %811 = vmatpush1.msra.mxu0 0.0
    %812 = vmatprep.subr.mxu0 0.0
    %813 = vmatpush1.msra.mxu0 0.0
    %814 = vmatprep.subr.mxu0 0.0
    %815 = vmatpush1.msra.mxu0 0.0
    %816 = vmatprep.subr.mxu0 0.0
    %817 = vmatpush1.msra.mxu0 0.0
    %818 = vmatprep.subr.mxu0 0.0
    %819 = vmatpush1.msra.mxu0 0.0
    %820 = vmatprep.subr.mxu0 0.0
    %821 = vmatpush1.msra.mxu0 0.0
    %822 = vmatprep.subr.mxu0 0.0
    %823 = vmatpush1.msra.mxu0 0.0
    %824 = vmatprep.subr.mxu0 0.0
    %825 = vmatpush1.msra.mxu0 %v788
    %826 = vmatprep.subr.mxu0 0.0
    %827 = vmatpush2.msra.mxu0 0.0
    %828 = vmatprep.subr.mxu0 0.0
    %829 = vmatpush2.msra.mxu0 0.0
    %830 = vmatprep.subr.mxu0 0.0
    %831 = vmatpush2.msra.mxu0 0.0
    %832 = vmatprep.subr.mxu0 0.0
    %833 = vmatpush2.msra.mxu0 0.0
    %834 = vmatprep.subr.mxu0 0.0
    %835 = vmatpush2.msra.mxu0 0.0
    %836 = vmatprep.subr.mxu0 0.0
    %837 = vmatpush2.msra.mxu0 0.0
    %838 = vmatprep.subr.mxu0 0.0
    %839 = vmatpush2.msra.mxu0 0.0
    %840 = vmatprep.subr.mxu0 0.0
    %841 = vmatpush2.msra.mxu0 0.0
    %842 = vmatprep.subr.mxu0 0.0
    %843 = vmatpush2.msra.mxu0 0.0
    %844 = vmatprep.subr.mxu0 0.0
    %845 = vmatpush2.msra.mxu0 0.0
    %846 = vmatprep.subr.mxu0 0.0
    %847 = vmatpush2.msra.mxu0 0.0
    %848 = vmatprep.subr.mxu0 0.0
    %849 = vmatpush2.msra.mxu0 0.0
    %850 = vmatprep.subr.mxu0 0.0
    %851 = vmatpush2.msra.mxu0 0.0
    %852 = vmatprep.subr.mxu0 0.0
    %853 = vmatpush2.msra.mxu0 0.0
    %854 = vmatprep.subr.mxu0 0.0
    %855 = vmatpush2.msra.mxu0 0.0
    %856 = vmatprep.subr.mxu0 0.0
    %857 = vmatpush2.msra.mxu0 0.0
    %858 = vmatprep.mubr.f32.mxu0 0.0
    %859 = vmatmul.mubr.f32.gmra.mxu0 %v792
    %v860 = vpop.f32.mrf.mxu0
    %v861 = vadd.f32 0.0, %v860
    %v862 = vpop.f32.mrf.mxu0
    %863 = vdwg.mxu0
    %v865 = vsel %vm790, %v776, 0
    %867 = vmatprep.subr.mxu0 0.0
    %868 = vmatpush1.msra.mxu0 0.0
    %869 = vmatprep.subr.mxu0 0.0
    %870 = vmatpush1.msra.mxu0 0.0
    %871 = vmatprep.subr.mxu0 0.0
    %872 = vmatpush1.msra.mxu0 0.0
    %873 = vmatprep.subr.mxu0 0.0
    %874 = vmatpush1.msra.mxu0 0.0
    %875 = vmatprep.subr.mxu0 0.0
    %876 = vmatpush1.msra.mxu0 0.0
    %877 = vmatprep.subr.mxu0 0.0
    %878 = vmatpush1.msra.mxu0 0.0
    %879 = vmatprep.subr.mxu0 0.0
    %880 = vmatpush1.msra.mxu0 0.0
    %881 = vmatprep.subr.mxu0 0.0
    %882 = vmatpush1.msra.mxu0 0.0
    %883 = vmatprep.subr.mxu0 0.0
    %884 = vmatpush1.msra.mxu0 0.0
    %885 = vmatprep.subr.mxu0 0.0
    %886 = vmatpush1.msra.mxu0 0.0
    %887 = vmatprep.subr.mxu0 0.0
    %888 = vmatpush1.msra.mxu0 0.0
    %889 = vmatprep.subr.mxu0 0.0
    %890 = vmatpush1.msra.mxu0 0.0
    %891 = vmatprep.subr.mxu0 0.0
    %892 = vmatpush1.msra.mxu0 0.0
    %893 = vmatprep.subr.mxu0 0.0
    %894 = vmatpush1.msra.mxu0 0.0
    %895 = vmatprep.subr.mxu0 0.0
    %896 = vmatpush1.msra.mxu0 0.0
    %897 = vmatprep.subr.mxu0 0.0
    %898 = vmatpush1.msra.mxu0 %v777
    %899 = vmatprep.subr.mxu0 0.0
    %900 = vmatpush2.msra.mxu0 0.0
    %901 = vmatprep.subr.mxu0 0.0
    %902 = vmatpush2.msra.mxu0 0.0
    %903 = vmatprep.subr.mxu0 0.0
    %904 = vmatpush2.msra.mxu0 0.0
    %905 = vmatprep.subr.mxu0 0.0
    %906 = vmatpush2.msra.mxu0 0.0
    %907 = vmatprep.subr.mxu0 0.0
    %908 = vmatpush2.msra.mxu0 0.0
    %909 = vmatprep.subr.mxu0 0.0
    %910 = vmatpush2.msra.mxu0 0.0
    %911 = vmatprep.subr.mxu0 0.0
    %912 = vmatpush2.msra.mxu0 0.0
    %913 = vmatprep.subr.mxu0 0.0
    %914 = vmatpush2.msra.mxu0 0.0
    %915 = vmatprep.subr.mxu0 0.0
    %916 = vmatpush2.msra.mxu0 0.0
    %917 = vmatprep.subr.mxu0 0.0
    %918 = vmatpush2.msra.mxu0 0.0
    %919 = vmatprep.subr.mxu0 0.0
    %920 = vmatpush2.msra.mxu0 0.0
    %921 = vmatprep.subr.mxu0 0.0
    %922 = vmatpush2.msra.mxu0 0.0
    %923 = vmatprep.subr.mxu0 0.0
    %924 = vmatpush2.msra.mxu0 0.0
    %925 = vmatprep.subr.mxu0 0.0
    %926 = vmatpush2.msra.mxu0 0.0
    %927 = vmatprep.subr.mxu0 0.0
    %928 = vmatpush2.msra.mxu0 0.0
    %929 = vmatprep.subr.mxu0 0.0
    %930 = vmatpush2.msra.mxu0 0.0
    %931 = vmatprep.mubr.f32.mxu0 0.0
    %932 = vmatmul.mubr.f32.gmra.mxu0 %v865
    %v933 = vpop.f32.mrf.mxu0
    %v934 = vadd.f32 %v861, %v933
    %v935 = vpop.f32.mrf.mxu0
    %936 = vdwg.mxu0
    %s937 = scalar_lea.vmem %s3, 16
    %v938 = vld [vmem:[%s937] sm:$0xff]
    %939 = vrot.lane.b32.xlu0 %v777, 126
    %v940 = vpop.permute.xlu0 %939
    %941 = vrot.lane.b32.xlu0 %v780, 126
    %v942 = vpop.permute.xlu0 %941
    %vm943 = vcmask 1031168
    %v944 = vsel %vm943, %v940, %v942
    %v947 = vsel %vm790, %v938, 0
    %949 = vmatprep.subr.mxu0 0.0
    %950 = vmatpush1.msra.mxu0 0.0
    %951 = vmatprep.subr.mxu0 0.0
    %952 = vmatpush1.msra.mxu0 0.0
    %953 = vmatprep.subr.mxu0 0.0
    %954 = vmatpush1.msra.mxu0 0.0
    %955 = vmatprep.subr.mxu0 0.0
    %956 = vmatpush1.msra.mxu0 0.0
    %957 = vmatprep.subr.mxu0 0.0
    %958 = vmatpush1.msra.mxu0 0.0
    %959 = vmatprep.subr.mxu0 0.0
    %960 = vmatpush1.msra.mxu0 0.0
    %961 = vmatprep.subr.mxu0 0.0
    %962 = vmatpush1.msra.mxu0 0.0
    %963 = vmatprep.subr.mxu0 0.0
    %964 = vmatpush1.msra.mxu0 0.0
    %965 = vmatprep.subr.mxu0 0.0
    %966 = vmatpush1.msra.mxu0 0.0
    %967 = vmatprep.subr.mxu0 0.0
    %968 = vmatpush1.msra.mxu0 0.0
    %969 = vmatprep.subr.mxu0 0.0
    %970 = vmatpush1.msra.mxu0 0.0
    %971 = vmatprep.subr.mxu0 0.0
    %972 = vmatpush1.msra.mxu0 0.0
    %973 = vmatprep.subr.mxu0 0.0
    %974 = vmatpush1.msra.mxu0 0.0
    %975 = vmatprep.subr.mxu0 0.0
    %976 = vmatpush1.msra.mxu0 0.0
    %977 = vmatprep.subr.mxu0 0.0
    %978 = vmatpush1.msra.mxu0 0.0
    %979 = vmatprep.subr.mxu0 0.0
    %980 = vmatpush1.msra.mxu0 %v944
    %981 = vmatprep.subr.mxu0 0.0
    %982 = vmatpush2.msra.mxu0 0.0
    %983 = vmatprep.subr.mxu0 0.0
    %984 = vmatpush2.msra.mxu0 0.0
    %985 = vmatprep.subr.mxu0 0.0
    %986 = vmatpush2.msra.mxu0 0.0
    %987 = vmatprep.subr.mxu0 0.0
    %988 = vmatpush2.msra.mxu0 0.0
    %989 = vmatprep.subr.mxu0 0.0
    %990 = vmatpush2.msra.mxu0 0.0
    %991 = vmatprep.subr.mxu0 0.0
    %992 = vmatpush2.msra.mxu0 0.0
    %993 = vmatprep.subr.mxu0 0.0
    %994 = vmatpush2.msra.mxu0 0.0
    %995 = vmatprep.subr.mxu0 0.0
    %996 = vmatpush2.msra.mxu0 0.0
    %997 = vmatprep.subr.mxu0 0.0
    %998 = vmatpush2.msra.mxu0 0.0
    %999 = vmatprep.subr.mxu0 0.0
    %1000 = vmatpush2.msra.mxu0 0.0
    %1001 = vmatprep.subr.mxu0 0.0
    %1002 = vmatpush2.msra.mxu0 0.0
    %1003 = vmatprep.subr.mxu0 0.0
    %1004 = vmatpush2.msra.mxu0 0.0
    %1005 = vmatprep.subr.mxu0 0.0
    %1006 = vmatpush2.msra.mxu0 0.0
    %1007 = vmatprep.subr.mxu0 0.0
    %1008 = vmatpush2.msra.mxu0 0.0
    %1009 = vmatprep.subr.mxu0 0.0
    %1010 = vmatpush2.msra.mxu0 0.0
    %1011 = vmatprep.subr.mxu0 0.0
    %1012 = vmatpush2.msra.mxu0 0.0
    %1013 = vmatprep.mubr.f32.mxu0 0.0
    %1014 = vmatmul.mubr.f32.gmra.mxu0 %v947
    %v1015 = vpop.f32.mrf.mxu0
    %v1016 = vadd.f32 0.0, %v1015
    %v1017 = vpop.f32.mrf.mxu0
    %1018 = vdwg.mxu0
    %v1019 = vadd.f32 %v934, %v1016
    %s1020 = scalar_lea.vmem %s3, 24
    %v1021 = vld [vmem:[%s1020] sm:$0xff]
    %1022 = vrot.lane.b32.xlu0 %v777, 125
    %v1023 = vpop.permute.xlu0 %1022
    %1024 = vrot.lane.b32.xlu0 %v780, 125
    %v1025 = vpop.permute.xlu0 %1024
    %vm1026 = vcmask 1022976
    %v1027 = vsel %vm1026, %v1023, %v1025
    %v1030 = vsel %vm790, %v1021, 0
    %1032 = vmatprep.subr.mxu0 0.0
    %1033 = vmatpush1.msra.mxu0 0.0
    %1034 = vmatprep.subr.mxu0 0.0
    %1035 = vmatpush1.msra.mxu0 0.0
    %1036 = vmatprep.subr.mxu0 0.0
    %1037 = vmatpush1.msra.mxu0 0.0
    %1038 = vmatprep.subr.mxu0 0.0
    %1039 = vmatpush1.msra.mxu0 0.0
    %1040 = vmatprep.subr.mxu0 0.0
    %1041 = vmatpush1.msra.mxu0 0.0
    %1042 = vmatprep.subr.mxu0 0.0
    %1043 = vmatpush1.msra.mxu0 0.0
    %1044 = vmatprep.subr.mxu0 0.0
    %1045 = vmatpush1.msra.mxu0 0.0
    %1046 = vmatprep.subr.mxu0 0.0
    %1047 = vmatpush1.msra.mxu0 0.0
    %1048 = vmatprep.subr.mxu0 0.0
    %1049 = vmatpush1.msra.mxu0 0.0
    %1050 = vmatprep.subr.mxu0 0.0
    %1051 = vmatpush1.msra.mxu0 0.0
    %1052 = vmatprep.subr.mxu0 0.0
    %1053 = vmatpush1.msra.mxu0 0.0
    %1054 = vmatprep.subr.mxu0 0.0
    %1055 = vmatpush1.msra.mxu0 0.0
    %1056 = vmatprep.subr.mxu0 0.0
    %1057 = vmatpush1.msra.mxu0 0.0
    %1058 = vmatprep.subr.mxu0 0.0
    %1059 = vmatpush1.msra.mxu0 0.0
    %1060 = vmatprep.subr.mxu0 0.0
    %1061 = vmatpush1.msra.mxu0 0.0
    %1062 = vmatprep.subr.mxu0 0.0
    %1063 = vmatpush1.msra.mxu0 %v1027
    %1064 = vmatprep.subr.mxu0 0.0
    %1065 = vmatpush2.msra.mxu0 0.0
    %1066 = vmatprep.subr.mxu0 0.0
    %1067 = vmatpush2.msra.mxu0 0.0
    %1068 = vmatprep.subr.mxu0 0.0
    %1069 = vmatpush2.msra.mxu0 0.0
    %1070 = vmatprep.subr.mxu0 0.0
    %1071 = vmatpush2.msra.mxu0 0.0
    %1072 = vmatprep.subr.mxu0 0.0
    %1073 = vmatpush2.msra.mxu0 0.0
    %1074 = vmatprep.subr.mxu0 0.0
    %1075 = vmatpush2.msra.mxu0 0.0
    %1076 = vmatprep.subr.mxu0 0.0
    %1077 = vmatpush2.msra.mxu0 0.0
    %1078 = vmatprep.subr.mxu0 0.0
    %1079 = vmatpush2.msra.mxu0 0.0
    %1080 = vmatprep.subr.mxu0 0.0
    %1081 = vmatpush2.msra.mxu0 0.0
    %1082 = vmatprep.subr.mxu0 0.0
    %1083 = vmatpush2.msra.mxu0 0.0
    %1084 = vmatprep.subr.mxu0 0.0
    %1085 = vmatpush2.msra.mxu0 0.0
    %1086 = vmatprep.subr.mxu0 0.0
    %1087 = vmatpush2.msra.mxu0 0.0
    %1088 = vmatprep.subr.mxu0 0.0
    %1089 = vmatpush2.msra.mxu0 0.0
    %1090 = vmatprep.subr.mxu0 0.0
    %1091 = vmatpush2.msra.mxu0 0.0
    %1092 = vmatprep.subr.mxu0 0.0
    %1093 = vmatpush2.msra.mxu0 0.0
    %1094 = vmatprep.subr.mxu0 0.0
    %1095 = vmatpush2.msra.mxu0 0.0
    %1096 = vmatprep.mubr.f32.mxu0 0.0
    %1097 = vmatmul.mubr.f32.gmra.mxu0 %v1030
    %v1098 = vpop.f32.mrf.mxu0
    %v1099 = vadd.f32 0.0, %v1098
    %v1100 = vpop.f32.mrf.mxu0
    %1101 = vdwg.mxu0
    %v1102 = vadd.f32 %v1019, %v1099
    %s1103 = scalar_lea.vmem %s3, 32
    %v1104 = vld [vmem:[%s1103] sm:$0xff]
    %1105 = vrot.lane.b32.xlu0 %v777, 124
    %v1106 = vpop.permute.xlu0 %1105
    %1107 = vrot.lane.b32.xlu0 %v780, 124
    %v1108 = vpop.permute.xlu0 %1107
    %vm1109 = vcmask 1014784
    %v1110 = vsel %vm1109, %v1106, %v1108
    %v1113 = vsel %vm790, %v1104, 0
    %1115 = vmatprep.subr.mxu0 0.0
    %1116 = vmatpush1.msra.mxu0 0.0
    %1117 = vmatprep.subr.mxu0 0.0
    %1118 = vmatpush1.msra.mxu0 0.0
    %1119 = vmatprep.subr.mxu0 0.0
    %1120 = vmatpush1.msra.mxu0 0.0
    %1121 = vmatprep.subr.mxu0 0.0
    %1122 = vmatpush1.msra.mxu0 0.0
    %1123 = vmatprep.subr.mxu0 0.0
    %1124 = vmatpush1.msra.mxu0 0.0
    %1125 = vmatprep.subr.mxu0 0.0
    %1126 = vmatpush1.msra.mxu0 0.0
    %1127 = vmatprep.subr.mxu0 0.0
    %1128 = vmatpush1.msra.mxu0 0.0
    %1129 = vmatprep.subr.mxu0 0.0
    %1130 = vmatpush1.msra.mxu0 0.0
    %1131 = vmatprep.subr.mxu0 0.0
    %1132 = vmatpush1.msra.mxu0 0.0
    %1133 = vmatprep.subr.mxu0 0.0
    %1134 = vmatpush1.msra.mxu0 0.0
    %1135 = vmatprep.subr.mxu0 0.0
    %1136 = vmatpush1.msra.mxu0 0.0
    %1137 = vmatprep.subr.mxu0 0.0
    %1138 = vmatpush1.msra.mxu0 0.0
    %1139 = vmatprep.subr.mxu0 0.0
    %1140 = vmatpush1.msra.mxu0 0.0
    %1141 = vmatprep.subr.mxu0 0.0
    %1142 = vmatpush1.msra.mxu0 0.0
    %1143 = vmatprep.subr.mxu0 0.0
    %1144 = vmatpush1.msra.mxu0 0.0
    %1145 = vmatprep.subr.mxu0 0.0
    %1146 = vmatpush1.msra.mxu0 %v1110
    %1147 = vmatprep.subr.mxu0 0.0
    %1148 = vmatpush2.msra.mxu0 0.0
    %1149 = vmatprep.subr.mxu0 0.0
    %1150 = vmatpush2.msra.mxu0 0.0
    %1151 = vmatprep.subr.mxu0 0.0
    %1152 = vmatpush2.msra.mxu0 0.0
    %1153 = vmatprep.subr.mxu0 0.0
    %1154 = vmatpush2.msra.mxu0 0.0
    %1155 = vmatprep.subr.mxu0 0.0
    %1156 = vmatpush2.msra.mxu0 0.0
    %1157 = vmatprep.subr.mxu0 0.0
    %1158 = vmatpush2.msra.mxu0 0.0
    %1159 = vmatprep.subr.mxu0 0.0
    %1160 = vmatpush2.msra.mxu0 0.0
    %1161 = vmatprep.subr.mxu0 0.0
    %1162 = vmatpush2.msra.mxu0 0.0
    %1163 = vmatprep.subr.mxu0 0.0
    %1164 = vmatpush2.msra.mxu0 0.0
    %1165 = vmatprep.subr.mxu0 0.0
    %1166 = vmatpush2.msra.mxu0 0.0
    %1167 = vmatprep.subr.mxu0 0.0
    %1168 = vmatpush2.msra.mxu0 0.0
    %1169 = vmatprep.subr.mxu0 0.0
    %1170 = vmatpush2.msra.mxu0 0.0
    %1171 = vmatprep.subr.mxu0 0.0
    %1172 = vmatpush2.msra.mxu0 0.0
    %1173 = vmatprep.subr.mxu0 0.0
    %1174 = vmatpush2.msra.mxu0 0.0
    %1175 = vmatprep.subr.mxu0 0.0
    %1176 = vmatpush2.msra.mxu0 0.0
    %1177 = vmatprep.subr.mxu0 0.0
    %1178 = vmatpush2.msra.mxu0 0.0
    %1179 = vmatprep.mubr.f32.mxu0 0.0
    %1180 = vmatmul.mubr.f32.gmra.mxu0 %v1113
    %v1181 = vpop.f32.mrf.mxu0
    %v1182 = vadd.f32 0.0, %v1181
    %v1183 = vpop.f32.mrf.mxu0
    %1184 = vdwg.mxu0
    %v1185 = vadd.f32 %v1102, %v1182
    %v1186 = vld [vmem:[%s4] sm:$0xff]
    %1188 = vset.pattern.permute.xlu0 0
    %1189 = vperm.xlu0 %1188, %v1186
    %v1190 = vpop.permute.xlu0 %1189
    %v1192 = vadd.f32 %v1185, %v1190
    %v1193 = vmax.f32 %v1192, 0.0
    %v1194 = vld [vmem:[%s773] sm:$0xff]
    %v1195 = vld [vmem:[%s773 + $0x8] sm:$0xff]
    %1198 = vrot.lane.b32.xlu0 %v1194, 127
    %v1199 = vpop.permute.xlu0 %1198
    %1200 = vrot.lane.b32.xlu0 %v1195, 127
    %v1201 = vpop.permute.xlu0 %1200
    %v1202 = vsel %vm787, %v1199, %v1201
    %1204 = vmatprep.subr.mxu0 0.0
    %1205 = vmatpush1.msra.mxu0 0.0
    %1206 = vmatprep.subr.mxu0 0.0
    %1207 = vmatpush1.msra.mxu0 0.0
    %1208 = vmatprep.subr.mxu0 0.0
    %1209 = vmatpush1.msra.mxu0 0.0
    %1210 = vmatprep.subr.mxu0 0.0
    %1211 = vmatpush1.msra.mxu0 0.0
    %1212 = vmatprep.subr.mxu0 0.0
    %1213 = vmatpush1.msra.mxu0 0.0
    %1214 = vmatprep.subr.mxu0 0.0
    %1215 = vmatpush1.msra.mxu0 0.0
    %1216 = vmatprep.subr.mxu0 0.0
    %1217 = vmatpush1.msra.mxu0 0.0
    %1218 = vmatprep.subr.mxu0 0.0
    %1219 = vmatpush1.msra.mxu0 0.0
    %1220 = vmatprep.subr.mxu0 0.0
    %1221 = vmatpush1.msra.mxu0 0.0
    %1222 = vmatprep.subr.mxu0 0.0
    %1223 = vmatpush1.msra.mxu0 0.0
    %1224 = vmatprep.subr.mxu0 0.0
    %1225 = vmatpush1.msra.mxu0 0.0
    %1226 = vmatprep.subr.mxu0 0.0
    %1227 = vmatpush1.msra.mxu0 0.0
    %1228 = vmatprep.subr.mxu0 0.0
    %1229 = vmatpush1.msra.mxu0 0.0
    %1230 = vmatprep.subr.mxu0 0.0
    %1231 = vmatpush1.msra.mxu0 0.0
    %1232 = vmatprep.subr.mxu0 0.0
    %1233 = vmatpush1.msra.mxu0 0.0
    %1234 = vmatprep.subr.mxu0 0.0
    %1235 = vmatpush1.msra.mxu0 %v1202
    %1236 = vmatprep.subr.mxu0 0.0
    %1237 = vmatpush2.msra.mxu0 0.0
    %1238 = vmatprep.subr.mxu0 0.0
    %1239 = vmatpush2.msra.mxu0 0.0
    %1240 = vmatprep.subr.mxu0 0.0
    %1241 = vmatpush2.msra.mxu0 0.0
    %1242 = vmatprep.subr.mxu0 0.0
    %1243 = vmatpush2.msra.mxu0 0.0
    %1244 = vmatprep.subr.mxu0 0.0
    %1245 = vmatpush2.msra.mxu0 0.0
    %1246 = vmatprep.subr.mxu0 0.0
    %1247 = vmatpush2.msra.mxu0 0.0
    %1248 = vmatprep.subr.mxu0 0.0
    %1249 = vmatpush2.msra.mxu0 0.0
    %1250 = vmatprep.subr.mxu0 0.0
    %1251 = vmatpush2.msra.mxu0 0.0
    %1252 = vmatprep.subr.mxu0 0.0
    %1253 = vmatpush2.msra.mxu0 0.0
    %1254 = vmatprep.subr.mxu0 0.0
    %1255 = vmatpush2.msra.mxu0 0.0
    %1256 = vmatprep.subr.mxu0 0.0
    %1257 = vmatpush2.msra.mxu0 0.0
    %1258 = vmatprep.subr.mxu0 0.0
    %1259 = vmatpush2.msra.mxu0 0.0
    %1260 = vmatprep.subr.mxu0 0.0
    %1261 = vmatpush2.msra.mxu0 0.0
    %1262 = vmatprep.subr.mxu0 0.0
    %1263 = vmatpush2.msra.mxu0 0.0
    %1264 = vmatprep.subr.mxu0 0.0
    %1265 = vmatpush2.msra.mxu0 0.0
    %1266 = vmatprep.subr.mxu0 0.0
    %1267 = vmatpush2.msra.mxu0 0.0
    %1268 = vmatprep.mubr.f32.mxu0 0.0
    %1269 = vmatmul.mubr.f32.gmra.mxu0 %v792
    %v1270 = vpop.f32.mrf.mxu0
    %v1271 = vadd.f32 0.0, %v1270
    %v1272 = vpop.f32.mrf.mxu0
    %1273 = vdwg.mxu0
    %1274 = vmatprep.subr.mxu0 0.0
    %1275 = vmatpush1.msra.mxu0 0.0
    %1276 = vmatprep.subr.mxu0 0.0
    %1277 = vmatpush1.msra.mxu0 0.0
    %1278 = vmatprep.subr.mxu0 0.0
    %1279 = vmatpush1.msra.mxu0 0.0
    %1280 = vmatprep.subr.mxu0 0.0
    %1281 = vmatpush1.msra.mxu0 0.0
    %1282 = vmatprep.subr.mxu0 0.0
    %1283 = vmatpush1.msra.mxu0 0.0
    %1284 = vmatprep.subr.mxu0 0.0
    %1285 = vmatpush1.msra.mxu0 0.0
    %1286 = vmatprep.subr.mxu0 0.0
    %1287 = vmatpush1.msra.mxu0 0.0
    %1288 = vmatprep.subr.mxu0 0.0
    %1289 = vmatpush1.msra.mxu0 0.0
    %1290 = vmatprep.subr.mxu0 0.0
    %1291 = vmatpush1.msra.mxu0 0.0
    %1292 = vmatprep.subr.mxu0 0.0
    %1293 = vmatpush1.msra.mxu0 0.0
    %1294 = vmatprep.subr.mxu0 0.0
    %1295 = vmatpush1.msra.mxu0 0.0
    %1296 = vmatprep.subr.mxu0 0.0
    %1297 = vmatpush1.msra.mxu0 0.0
    %1298 = vmatprep.subr.mxu0 0.0
    %1299 = vmatpush1.msra.mxu0 0.0
    %1300 = vmatprep.subr.mxu0 0.0
    %1301 = vmatpush1.msra.mxu0 0.0
    %1302 = vmatprep.subr.mxu0 0.0
    %1303 = vmatpush1.msra.mxu0 0.0
    %1304 = vmatprep.subr.mxu0 0.0
    %1305 = vmatpush1.msra.mxu0 %v1194
    %1306 = vmatprep.subr.mxu0 0.0
    %1307 = vmatpush2.msra.mxu0 0.0
    %1308 = vmatprep.subr.mxu0 0.0
    %1309 = vmatpush2.msra.mxu0 0.0
    %1310 = vmatprep.subr.mxu0 0.0
    %1311 = vmatpush2.msra.mxu0 0.0
    %1312 = vmatprep.subr.mxu0 0.0
    %1313 = vmatpush2.msra.mxu0 0.0
    %1314 = vmatprep.subr.mxu0 0.0
    %1315 = vmatpush2.msra.mxu0 0.0
    %1316 = vmatprep.subr.mxu0 0.0
    %1317 = vmatpush2.msra.mxu0 0.0
    %1318 = vmatprep.subr.mxu0 0.0
    %1319 = vmatpush2.msra.mxu0 0.0
    %1320 = vmatprep.subr.mxu0 0.0
    %1321 = vmatpush2.msra.mxu0 0.0
    %1322 = vmatprep.subr.mxu0 0.0
    %1323 = vmatpush2.msra.mxu0 0.0
    %1324 = vmatprep.subr.mxu0 0.0
    %1325 = vmatpush2.msra.mxu0 0.0
    %1326 = vmatprep.subr.mxu0 0.0
    %1327 = vmatpush2.msra.mxu0 0.0
    %1328 = vmatprep.subr.mxu0 0.0
    %1329 = vmatpush2.msra.mxu0 0.0
    %1330 = vmatprep.subr.mxu0 0.0
    %1331 = vmatpush2.msra.mxu0 0.0
    %1332 = vmatprep.subr.mxu0 0.0
    %1333 = vmatpush2.msra.mxu0 0.0
    %1334 = vmatprep.subr.mxu0 0.0
    %1335 = vmatpush2.msra.mxu0 0.0
    %1336 = vmatprep.subr.mxu0 0.0
    %1337 = vmatpush2.msra.mxu0 0.0
    %1338 = vmatprep.mubr.f32.mxu0 0.0
    %1339 = vmatmul.mubr.f32.gmra.mxu0 %v865
    %v1340 = vpop.f32.mrf.mxu0
    %v1341 = vadd.f32 %v1271, %v1340
    %v1342 = vpop.f32.mrf.mxu0
    %1343 = vdwg.mxu0
    %1344 = vrot.lane.b32.xlu0 %v1194, 126
    %v1345 = vpop.permute.xlu0 %1344
    %1346 = vrot.lane.b32.xlu0 %v1195, 126
    %v1347 = vpop.permute.xlu0 %1346
    %v1348 = vsel %vm943, %v1345, %v1347
    %1350 = vmatprep.subr.mxu0 0.0
    %1351 = vmatpush1.msra.mxu0 0.0
    %1352 = vmatprep.subr.mxu0 0.0
    %1353 = vmatpush1.msra.mxu0 0.0
    %1354 = vmatprep.subr.mxu0 0.0
    %1355 = vmatpush1.msra.mxu0 0.0
    %1356 = vmatprep.subr.mxu0 0.0
    %1357 = vmatpush1.msra.mxu0 0.0
    %1358 = vmatprep.subr.mxu0 0.0
    %1359 = vmatpush1.msra.mxu0 0.0
    %1360 = vmatprep.subr.mxu0 0.0
    %1361 = vmatpush1.msra.mxu0 0.0
    %1362 = vmatprep.subr.mxu0 0.0
    %1363 = vmatpush1.msra.mxu0 0.0
    %1364 = vmatprep.subr.mxu0 0.0
    %1365 = vmatpush1.msra.mxu0 0.0
    %1366 = vmatprep.subr.mxu0 0.0
    %1367 = vmatpush1.msra.mxu0 0.0
    %1368 = vmatprep.subr.mxu0 0.0
    %1369 = vmatpush1.msra.mxu0 0.0
    %1370 = vmatprep.subr.mxu0 0.0
    %1371 = vmatpush1.msra.mxu0 0.0
    %1372 = vmatprep.subr.mxu0 0.0
    %1373 = vmatpush1.msra.mxu0 0.0
    %1374 = vmatprep.subr.mxu0 0.0
    %1375 = vmatpush1.msra.mxu0 0.0
    %1376 = vmatprep.subr.mxu0 0.0
    %1377 = vmatpush1.msra.mxu0 0.0
    %1378 = vmatprep.subr.mxu0 0.0
    %1379 = vmatpush1.msra.mxu0 0.0
    %1380 = vmatprep.subr.mxu0 0.0
    %1381 = vmatpush1.msra.mxu0 %v1348
    %1382 = vmatprep.subr.mxu0 0.0
    %1383 = vmatpush2.msra.mxu0 0.0
    %1384 = vmatprep.subr.mxu0 0.0
    %1385 = vmatpush2.msra.mxu0 0.0
    %1386 = vmatprep.subr.mxu0 0.0
    %1387 = vmatpush2.msra.mxu0 0.0
    %1388 = vmatprep.subr.mxu0 0.0
    %1389 = vmatpush2.msra.mxu0 0.0
    %1390 = vmatprep.subr.mxu0 0.0
    %1391 = vmatpush2.msra.mxu0 0.0
    %1392 = vmatprep.subr.mxu0 0.0
    %1393 = vmatpush2.msra.mxu0 0.0
    %1394 = vmatprep.subr.mxu0 0.0
    %1395 = vmatpush2.msra.mxu0 0.0
    %1396 = vmatprep.subr.mxu0 0.0
    %1397 = vmatpush2.msra.mxu0 0.0
    %1398 = vmatprep.subr.mxu0 0.0
    %1399 = vmatpush2.msra.mxu0 0.0
    %1400 = vmatprep.subr.mxu0 0.0
    %1401 = vmatpush2.msra.mxu0 0.0
    %1402 = vmatprep.subr.mxu0 0.0
    %1403 = vmatpush2.msra.mxu0 0.0
    %1404 = vmatprep.subr.mxu0 0.0
    %1405 = vmatpush2.msra.mxu0 0.0
    %1406 = vmatprep.subr.mxu0 0.0
    %1407 = vmatpush2.msra.mxu0 0.0
    %1408 = vmatprep.subr.mxu0 0.0
    %1409 = vmatpush2.msra.mxu0 0.0
    %1410 = vmatprep.subr.mxu0 0.0
    %1411 = vmatpush2.msra.mxu0 0.0
    %1412 = vmatprep.subr.mxu0 0.0
    %1413 = vmatpush2.msra.mxu0 0.0
    %1414 = vmatprep.mubr.f32.mxu0 0.0
    %1415 = vmatmul.mubr.f32.gmra.mxu0 %v947
    %v1416 = vpop.f32.mrf.mxu0
    %v1417 = vadd.f32 0.0, %v1416
    %v1418 = vpop.f32.mrf.mxu0
    %1419 = vdwg.mxu0
    %v1420 = vadd.f32 %v1341, %v1417
    %1421 = vrot.lane.b32.xlu0 %v1194, 125
    %v1422 = vpop.permute.xlu0 %1421
    %1423 = vrot.lane.b32.xlu0 %v1195, 125
    %v1424 = vpop.permute.xlu0 %1423
    %v1425 = vsel %vm1026, %v1422, %v1424
    %1427 = vmatprep.subr.mxu0 0.0
    %1428 = vmatpush1.msra.mxu0 0.0
    %1429 = vmatprep.subr.mxu0 0.0
    %1430 = vmatpush1.msra.mxu0 0.0
    %1431 = vmatprep.subr.mxu0 0.0
    %1432 = vmatpush1.msra.mxu0 0.0
    %1433 = vmatprep.subr.mxu0 0.0
    %1434 = vmatpush1.msra.mxu0 0.0
    %1435 = vmatprep.subr.mxu0 0.0
    %1436 = vmatpush1.msra.mxu0 0.0
    %1437 = vmatprep.subr.mxu0 0.0
    %1438 = vmatpush1.msra.mxu0 0.0
    %1439 = vmatprep.subr.mxu0 0.0
    %1440 = vmatpush1.msra.mxu0 0.0
    %1441 = vmatprep.subr.mxu0 0.0
    %1442 = vmatpush1.msra.mxu0 0.0
    %1443 = vmatprep.subr.mxu0 0.0
    %1444 = vmatpush1.msra.mxu0 0.0
    %1445 = vmatprep.subr.mxu0 0.0
    %1446 = vmatpush1.msra.mxu0 0.0
    %1447 = vmatprep.subr.mxu0 0.0
    %1448 = vmatpush1.msra.mxu0 0.0
    %1449 = vmatprep.subr.mxu0 0.0
    %1450 = vmatpush1.msra.mxu0 0.0
    %1451 = vmatprep.subr.mxu0 0.0
    %1452 = vmatpush1.msra.mxu0 0.0
    %1453 = vmatprep.subr.mxu0 0.0
    %1454 = vmatpush1.msra.mxu0 0.0
    %1455 = vmatprep.subr.mxu0 0.0
    %1456 = vmatpush1.msra.mxu0 0.0
    %1457 = vmatprep.subr.mxu0 0.0
    %1458 = vmatpush1.msra.mxu0 %v1425
    %1459 = vmatprep.subr.mxu0 0.0
    %1460 = vmatpush2.msra.mxu0 0.0
    %1461 = vmatprep.subr.mxu0 0.0
    %1462 = vmatpush2.msra.mxu0 0.0
    %1463 = vmatprep.subr.mxu0 0.0
    %1464 = vmatpush2.msra.mxu0 0.0
    %1465 = vmatprep.subr.mxu0 0.0
    %1466 = vmatpush2.msra.mxu0 0.0
    %1467 = vmatprep.subr.mxu0 0.0
    %1468 = vmatpush2.msra.mxu0 0.0
    %1469 = vmatprep.subr.mxu0 0.0
    %1470 = vmatpush2.msra.mxu0 0.0
    %1471 = vmatprep.subr.mxu0 0.0
    %1472 = vmatpush2.msra.mxu0 0.0
    %1473 = vmatprep.subr.mxu0 0.0
    %1474 = vmatpush2.msra.mxu0 0.0
    %1475 = vmatprep.subr.mxu0 0.0
    %1476 = vmatpush2.msra.mxu0 0.0
    %1477 = vmatprep.subr.mxu0 0.0
    %1478 = vmatpush2.msra.mxu0 0.0
    %1479 = vmatprep.subr.mxu0 0.0
    %1480 = vmatpush2.msra.mxu0 0.0
    %1481 = vmatprep.subr.mxu0 0.0
    %1482 = vmatpush2.msra.mxu0 0.0
    %1483 = vmatprep.subr.mxu0 0.0
    %1484 = vmatpush2.msra.mxu0 0.0
    %1485 = vmatprep.subr.mxu0 0.0
    %1486 = vmatpush2.msra.mxu0 0.0
    %1487 = vmatprep.subr.mxu0 0.0
    %1488 = vmatpush2.msra.mxu0 0.0
    %1489 = vmatprep.subr.mxu0 0.0
    %1490 = vmatpush2.msra.mxu0 0.0
    %1491 = vmatprep.mubr.f32.mxu0 0.0
    %1492 = vmatmul.mubr.f32.gmra.mxu0 %v1030
    %v1493 = vpop.f32.mrf.mxu0
    %v1494 = vadd.f32 0.0, %v1493
    %v1495 = vpop.f32.mrf.mxu0
    %1496 = vdwg.mxu0
    %v1497 = vadd.f32 %v1420, %v1494
    %1498 = vrot.lane.b32.xlu0 %v1194, 124
    %v1499 = vpop.permute.xlu0 %1498
    %1500 = vrot.lane.b32.xlu0 %v1195, 124
    %v1501 = vpop.permute.xlu0 %1500
    %v1502 = vsel %vm1109, %v1499, %v1501
    %1504 = vmatprep.subr.mxu0 0.0
    %1505 = vmatpush1.msra.mxu0 0.0
    %1506 = vmatprep.subr.mxu0 0.0
    %1507 = vmatpush1.msra.mxu0 0.0
    %1508 = vmatprep.subr.mxu0 0.0
    %1509 = vmatpush1.msra.mxu0 0.0
    %1510 = vmatprep.subr.mxu0 0.0
    %1511 = vmatpush1.msra.mxu0 0.0
    %1512 = vmatprep.subr.mxu0 0.0
    %1513 = vmatpush1.msra.mxu0 0.0
    %1514 = vmatprep.subr.mxu0 0.0
    %1515 = vmatpush1.msra.mxu0 0.0
    %1516 = vmatprep.subr.mxu0 0.0
    %1517 = vmatpush1.msra.mxu0 0.0
    %1518 = vmatprep.subr.mxu0 0.0
    %1519 = vmatpush1.msra.mxu0 0.0
    %1520 = vmatprep.subr.mxu0 0.0
    %1521 = vmatpush1.msra.mxu0 0.0
    %1522 = vmatprep.subr.mxu0 0.0
    %1523 = vmatpush1.msra.mxu0 0.0
    %1524 = vmatprep.subr.mxu0 0.0
    %1525 = vmatpush1.msra.mxu0 0.0
    %1526 = vmatprep.subr.mxu0 0.0
    %1527 = vmatpush1.msra.mxu0 0.0
    %1528 = vmatprep.subr.mxu0 0.0
    %1529 = vmatpush1.msra.mxu0 0.0
    %1530 = vmatprep.subr.mxu0 0.0
    %1531 = vmatpush1.msra.mxu0 0.0
    %1532 = vmatprep.subr.mxu0 0.0
    %1533 = vmatpush1.msra.mxu0 0.0
    %1534 = vmatprep.subr.mxu0 0.0
    %1535 = vmatpush1.msra.mxu0 %v1502
    %1536 = vmatprep.subr.mxu0 0.0
    %1537 = vmatpush2.msra.mxu0 0.0
    %1538 = vmatprep.subr.mxu0 0.0
    %1539 = vmatpush2.msra.mxu0 0.0
    %1540 = vmatprep.subr.mxu0 0.0
    %1541 = vmatpush2.msra.mxu0 0.0
    %1542 = vmatprep.subr.mxu0 0.0
    %1543 = vmatpush2.msra.mxu0 0.0
    %1544 = vmatprep.subr.mxu0 0.0
    %1545 = vmatpush2.msra.mxu0 0.0
    %1546 = vmatprep.subr.mxu0 0.0
    %1547 = vmatpush2.msra.mxu0 0.0
    %1548 = vmatprep.subr.mxu0 0.0
    %1549 = vmatpush2.msra.mxu0 0.0
    %1550 = vmatprep.subr.mxu0 0.0
    %1551 = vmatpush2.msra.mxu0 0.0
    %1552 = vmatprep.subr.mxu0 0.0
    %1553 = vmatpush2.msra.mxu0 0.0
    %1554 = vmatprep.subr.mxu0 0.0
    %1555 = vmatpush2.msra.mxu0 0.0
    %1556 = vmatprep.subr.mxu0 0.0
    %1557 = vmatpush2.msra.mxu0 0.0
    %1558 = vmatprep.subr.mxu0 0.0
    %1559 = vmatpush2.msra.mxu0 0.0
    %1560 = vmatprep.subr.mxu0 0.0
    %1561 = vmatpush2.msra.mxu0 0.0
    %1562 = vmatprep.subr.mxu0 0.0
    %1563 = vmatpush2.msra.mxu0 0.0
    %1564 = vmatprep.subr.mxu0 0.0
    %1565 = vmatpush2.msra.mxu0 0.0
    %1566 = vmatprep.subr.mxu0 0.0
    %1567 = vmatpush2.msra.mxu0 0.0
    %1568 = vmatprep.mubr.f32.mxu0 0.0
    %1569 = vmatmul.mubr.f32.gmra.mxu0 %v1113
    %v1570 = vpop.f32.mrf.mxu0
    %v1571 = vadd.f32 0.0, %v1570
    %v1572 = vpop.f32.mrf.mxu0
    %1573 = vdwg.mxu0
    %v1574 = vadd.f32 %v1497, %v1571
    %v1575 = vadd.f32 %v1574, %v1190
    %v1576 = vmax.f32 %v1575, 0.0
    %1577 = vadd.xlane.f32.xlu0 %v1193
    %v1578 = vpop.xlane.xlu0 %1577
    %v1579 = vadd.f32 %v1578, 0.0
    %1580 = vadd.xlane.f32.xlu0 %v1576
    %v1581 = vpop.xlane.xlu0 %1580
    %v1582 = vadd.f32 %v1579, %v1581
    %v1583 = vmul.f32 %v1582, 0.00390625
    %v1584 = vsub.f32 %v1193, %v1583
    %v1585 = vmul.f32 %v1584, %v1584
    %1586 = vadd.xlane.f32.xlu0 %v1585
    %v1587 = vpop.xlane.xlu0 %1586
    %v1588 = vadd.f32 %v1587, 0.0
    %v1589 = vsub.f32 %v1576, %v1583
    %v1590 = vmul.f32 %v1589, %v1589
    %1591 = vadd.xlane.f32.xlu0 %v1590
    %v1592 = vpop.xlane.xlu0 %1591
    %v1593 = vadd.f32 %v1588, %v1592
    %v1594 = vmul.f32 %v1593, 0.00390625
    %v1595 = vadd.f32 %v1594, 1e-05
    %v1596 = vrsqrt.pop %v1595
    %v1597 = vld [vmem:[%s5] sm:$0xff]
    %v1598 = vmul.f32 %v1596, %v1597
    %1600 = vset.pattern.permute.xlu0 0
    %1601 = vperm.xlu0 %1600, %v1598
    %v1602 = vpop.permute.xlu0 %1601
    %v1604 = vmul.f32 %v1584, %v1602
    %v1605 = vld [vmem:[%s6] sm:$0xff]
    %1607 = vset.pattern.permute.xlu0 0
    %1608 = vperm.xlu0 %1607, %v1605
    %v1609 = vpop.permute.xlu0 %1608
    %v1611 = vadd.f32 %v1604, %v1609
    %1613 = vrot.lane.b32.xlu0 %v1611, 2
    %v1614 = vpop.permute.xlu0 %1613
    %1616 = vst.msk [vmem:[#allocation3] sm:$0xff] %vm462, %v1614
    %1617 = vst.msk [vmem:[#allocation3 + $0x8] sm:$0xff] %vm142, %v1614
    %v1618 = vmul.f32 %v1589, %v1602
    %v1619 = vld [vmem:[%s6] sm:$0xff]
    %1621 = vset.pattern.permute.xlu0 0
    %1622 = vperm.xlu0 %1621, %v1619
    %v1623 = vpop.permute.xlu0 %1622
    %v1625 = vadd.f32 %v1618, %v1623
    %1627 = vrot.lane.b32.xlu0 %v1625, 2
    %v1628 = vpop.permute.xlu0 %1627
    %s1630 = scalar_lea.vmem [#allocation3], 16
    %1631 = vst.msk [vmem:[%s1630] sm:$0xff] %vm462, %v1628
    %1632 = vst.msk [vmem:[%s1630 + $0x8] sm:$0xff] %vm142, %v1628
    %v1633 = vld [vmem:[%s7] sm:$0xff]
    %v1634 = vld [vmem:[#allocation3] sm:$0xff]
    %s1635 = scalar_lea.vmem %s7, 8
    %v1636 = vld [vmem:[%s1635] sm:$0xff]
    %v1637 = vld [vmem:[#allocation3 + $0x8] sm:$0xff]
    %1640 = vrot.lane.b32.xlu0 %v1634, 127
    %v1641 = vpop.permute.xlu0 %1640
    %1642 = vrot.lane.b32.xlu0 %v1637, 127
    %v1643 = vpop.permute.xlu0 %1642
    %v1644 = vsel %vm787, %v1641, %v1643
    %v1647 = vsel %vm790, %v1636, 0
    %1649 = vmatprep.subr.mxu0 0.0
    %1650 = vmatpush1.msra.mxu0 0.0
    %1651 = vmatprep.subr.mxu0 0.0
    %1652 = vmatpush1.msra.mxu0 0.0
    %1653 = vmatprep.subr.mxu0 0.0
    %1654 = vmatpush1.msra.mxu0 0.0
    %1655 = vmatprep.subr.mxu0 0.0
    %1656 = vmatpush1.msra.mxu0 0.0
    %1657 = vmatprep.subr.mxu0 0.0
    %1658 = vmatpush1.msra.mxu0 0.0
    %1659 = vmatprep.subr.mxu0 0.0
    %1660 = vmatpush1.msra.mxu0 0.0
    %1661 = vmatprep.subr.mxu0 0.0
    %1662 = vmatpush1.msra.mxu0 0.0
    %1663 = vmatprep.subr.mxu0 0.0
    %1664 = vmatpush1.msra.mxu0 0.0
    %1665 = vmatprep.subr.mxu0 0.0
    %1666 = vmatpush1.msra.mxu0 0.0
    %1667 = vmatprep.subr.mxu0 0.0
    %1668 = vmatpush1.msra.mxu0 0.0
    %1669 = vmatprep.subr.mxu0 0.0
    %1670 = vmatpush1.msra.mxu0 0.0
    %1671 = vmatprep.subr.mxu0 0.0
    %1672 = vmatpush1.msra.mxu0 0.0
    %1673 = vmatprep.subr.mxu0 0.0
    %1674 = vmatpush1.msra.mxu0 0.0
    %1675 = vmatprep.subr.mxu0 0.0
    %1676 = vmatpush1.msra.mxu0 0.0
    %1677 = vmatprep.subr.mxu0 0.0
    %1678 = vmatpush1.msra.mxu0 0.0
    %1679 = vmatprep.subr.mxu0 0.0
    %1680 = vmatpush1.msra.mxu0 %v1644
    %1681 = vmatprep.subr.mxu0 0.0
    %1682 = vmatpush2.msra.mxu0 0.0
    %1683 = vmatprep.subr.mxu0 0.0
    %1684 = vmatpush2.msra.mxu0 0.0
    %1685 = vmatprep.subr.mxu0 0.0
    %1686 = vmatpush2.msra.mxu0 0.0
    %1687 = vmatprep.subr.mxu0 0.0
    %1688 = vmatpush2.msra.mxu0 0.0
    %1689 = vmatprep.subr.mxu0 0.0
    %1690 = vmatpush2.msra.mxu0 0.0
    %1691 = vmatprep.subr.mxu0 0.0
    %1692 = vmatpush2.msra.mxu0 0.0
    %1693 = vmatprep.subr.mxu0 0.0
    %1694 = vmatpush2.msra.mxu0 0.0
    %1695 = vmatprep.subr.mxu0 0.0
    %1696 = vmatpush2.msra.mxu0 0.0
    %1697 = vmatprep.subr.mxu0 0.0
    %1698 = vmatpush2.msra.mxu0 0.0
    %1699 = vmatprep.subr.mxu0 0.0
    %1700 = vmatpush2.msra.mxu0 0.0
    %1701 = vmatprep.subr.mxu0 0.0
    %1702 = vmatpush2.msra.mxu0 0.0
    %1703 = vmatprep.subr.mxu0 0.0
    %1704 = vmatpush2.msra.mxu0 0.0
    %1705 = vmatprep.subr.mxu0 0.0
    %1706 = vmatpush2.msra.mxu0 0.0
    %1707 = vmatprep.subr.mxu0 0.0
    %1708 = vmatpush2.msra.mxu0 0.0
    %1709 = vmatprep.subr.mxu0 0.0
    %1710 = vmatpush2.msra.mxu0 0.0
    %1711 = vmatprep.subr.mxu0 0.0
    %1712 = vmatpush2.msra.mxu0 0.0
    %1713 = vmatprep.mubr.f32.mxu0 0.0
    %1714 = vmatmul.mubr.f32.gmra.mxu0 %v1647
    %v1715 = vpop.f32.mrf.mxu0
    %v1716 = vadd.f32 0.0, %v1715
    %v1717 = vpop.f32.mrf.mxu0
    %1718 = vdwg.mxu0
    %v1720 = vsel %vm790, %v1633, 0
    %1722 = vmatprep.subr.mxu0 0.0
    %1723 = vmatpush1.msra.mxu0 0.0
    %1724 = vmatprep.subr.mxu0 0.0
    %1725 = vmatpush1.msra.mxu0 0.0
    %1726 = vmatprep.subr.mxu0 0.0
    %1727 = vmatpush1.msra.mxu0 0.0
    %1728 = vmatprep.subr.mxu0 0.0
    %1729 = vmatpush1.msra.mxu0 0.0
    %1730 = vmatprep.subr.mxu0 0.0
    %1731 = vmatpush1.msra.mxu0 0.0
    %1732 = vmatprep.subr.mxu0 0.0
    %1733 = vmatpush1.msra.mxu0 0.0
    %1734 = vmatprep.subr.mxu0 0.0
    %1735 = vmatpush1.msra.mxu0 0.0
    %1736 = vmatprep.subr.mxu0 0.0
    %1737 = vmatpush1.msra.mxu0 0.0
    %1738 = vmatprep.subr.mxu0 0.0
    %1739 = vmatpush1.msra.mxu0 0.0
    %1740 = vmatprep.subr.mxu0 0.0
    %1741 = vmatpush1.msra.mxu0 0.0
    %1742 = vmatprep.subr.mxu0 0.0
    %1743 = vmatpush1.msra.mxu0 0.0
    %1744 = vmatprep.subr.mxu0 0.0
    %1745 = vmatpush1.msra.mxu0 0.0
    %1746 = vmatprep.subr.mxu0 0.0
    %1747 = vmatpush1.msra.mxu0 0.0
    %1748 = vmatprep.subr.mxu0 0.0
    %1749 = vmatpush1.msra.mxu0 0.0
    %1750 = vmatprep.subr.mxu0 0.0
    %1751 = vmatpush1.msra.mxu0 0.0
    %1752 = vmatprep.subr.mxu0 0.0
    %1753 = vmatpush1.msra.mxu0 %v1634
    %1754 = vmatprep.subr.mxu0 0.0
    %1755 = vmatpush2.msra.mxu0 0.0
    %1756 = vmatprep.subr.mxu0 0.0
    %1757 = vmatpush2.msra.mxu0 0.0
    %1758 = vmatprep.subr.mxu0 0.0
    %1759 = vmatpush2.msra.mxu0 0.0
    %1760 = vmatprep.subr.mxu0 0.0
    %1761 = vmatpush2.msra.mxu0 0.0
    %1762 = vmatprep.subr.mxu0 0.0
    %1763 = vmatpush2.msra.mxu0 0.0
    %1764 = vmatprep.subr.mxu0 0.0
    %1765 = vmatpush2.msra.mxu0 0.0
    %1766 = vmatprep.subr.mxu0 0.0
    %1767 = vmatpush2.msra.mxu0 0.0
    %1768 = vmatprep.subr.mxu0 0.0
    %1769 = vmatpush2.msra.mxu0 0.0
    %1770 = vmatprep.subr.mxu0 0.0
    %1771 = vmatpush2.msra.mxu0 0.0
    %1772 = vmatprep.subr.mxu0 0.0
    %1773 = vmatpush2.msra.mxu0 0.0
    %1774 = vmatprep.subr.mxu0 0.0
    %1775 = vmatpush2.msra.mxu0 0.0
    %1776 = vmatprep.subr.mxu0 0.0
    %1777 = vmatpush2.msra.mxu0 0.0
    %1778 = vmatprep.subr.mxu0 0.0
    %1779 = vmatpush2.msra.mxu0 0.0
    %1780 = vmatprep.subr.mxu0 0.0
    %1781 = vmatpush2.msra.mxu0 0.0
    %1782 = vmatprep.subr.mxu0 0.0
    %1783 = vmatpush2.msra.mxu0 0.0
    %1784 = vmatprep.subr.mxu0 0.0
    %1785 = vmatpush2.msra.mxu0 0.0
    %1786 = vmatprep.mubr.f32.mxu0 0.0
    %1787 = vmatmul.mubr.f32.gmra.mxu0 %v1720
    %v1788 = vpop.f32.mrf.mxu0
    %v1789 = vadd.f32 %v1716, %v1788
    %v1790 = vpop.f32.mrf.mxu0
    %1791 = vdwg.mxu0
    %s1792 = scalar_lea.vmem %s7, 16
    %v1793 = vld [vmem:[%s1792] sm:$0xff]
    %1794 = vrot.lane.b32.xlu0 %v1634, 126
    %v1795 = vpop.permute.xlu0 %1794
    %1796 = vrot.lane.b32.xlu0 %v1637, 126
    %v1797 = vpop.permute.xlu0 %1796
    %v1798 = vsel %vm943, %v1795, %v1797
    %v1801 = vsel %vm790, %v1793, 0
    %1803 = vmatprep.subr.mxu0 0.0
    %1804 = vmatpush1.msra.mxu0 0.0
    %1805 = vmatprep.subr.mxu0 0.0
    %1806 = vmatpush1.msra.mxu0 0.0
    %1807 = vmatprep.subr.mxu0 0.0
    %1808 = vmatpush1.msra.mxu0 0.0
    %1809 = vmatprep.subr.mxu0 0.0
    %1810 = vmatpush1.msra.mxu0 0.0
    %1811 = vmatprep.subr.mxu0 0.0
    %1812 = vmatpush1.msra.mxu0 0.0
    %1813 = vmatprep.subr.mxu0 0.0
    %1814 = vmatpush1.msra.mxu0 0.0
    %1815 = vmatprep.subr.mxu0 0.0
    %1816 = vmatpush1.msra.mxu0 0.0
    %1817 = vmatprep.subr.mxu0 0.0
    %1818 = vmatpush1.msra.mxu0 0.0
    %1819 = vmatprep.subr.mxu0 0.0
    %1820 = vmatpush1.msra.mxu0 0.0
    %1821 = vmatprep.subr.mxu0 0.0
    %1822 = vmatpush1.msra.mxu0 0.0
    %1823 = vmatprep.subr.mxu0 0.0
    %1824 = vmatpush1.msra.mxu0 0.0
    %1825 = vmatprep.subr.mxu0 0.0
    %1826 = vmatpush1.msra.mxu0 0.0
    %1827 = vmatprep.subr.mxu0 0.0
    %1828 = vmatpush1.msra.mxu0 0.0
    %1829 = vmatprep.subr.mxu0 0.0
    %1830 = vmatpush1.msra.mxu0 0.0
    %1831 = vmatprep.subr.mxu0 0.0
    %1832 = vmatpush1.msra.mxu0 0.0
    %1833 = vmatprep.subr.mxu0 0.0
    %1834 = vmatpush1.msra.mxu0 %v1798
    %1835 = vmatprep.subr.mxu0 0.0
    %1836 = vmatpush2.msra.mxu0 0.0
    %1837 = vmatprep.subr.mxu0 0.0
    %1838 = vmatpush2.msra.mxu0 0.0
    %1839 = vmatprep.subr.mxu0 0.0
    %1840 = vmatpush2.msra.mxu0 0.0
    %1841 = vmatprep.subr.mxu0 0.0
    %1842 = vmatpush2.msra.mxu0 0.0
    %1843 = vmatprep.subr.mxu0 0.0
    %1844 = vmatpush2.msra.mxu0 0.0
    %1845 = vmatprep.subr.mxu0 0.0
    %1846 = vmatpush2.msra.mxu0 0.0
    %1847 = vmatprep.subr.mxu0 0.0
    %1848 = vmatpush2.msra.mxu0 0.0
    %1849 = vmatprep.subr.mxu0 0.0
    %1850 = vmatpush2.msra.mxu0 0.0
    %1851 = vmatprep.subr.mxu0 0.0
    %1852 = vmatpush2.msra.mxu0 0.0
    %1853 = vmatprep.subr.mxu0 0.0
    %1854 = vmatpush2.msra.mxu0 0.0
    %1855 = vmatprep.subr.mxu0 0.0
    %1856 = vmatpush2.msra.mxu0 0.0
    %1857 = vmatprep.subr.mxu0 0.0
    %1858 = vmatpush2.msra.mxu0 0.0
    %1859 = vmatprep.subr.mxu0 0.0
    %1860 = vmatpush2.msra.mxu0 0.0
    %1861 = vmatprep.subr.mxu0 0.0
    %1862 = vmatpush2.msra.mxu0 0.0
    %1863 = vmatprep.subr.mxu0 0.0
    %1864 = vmatpush2.msra.mxu0 0.0
    %1865 = vmatprep.subr.mxu0 0.0
    %1866 = vmatpush2.msra.mxu0 0.0
    %1867 = vmatprep.mubr.f32.mxu0 0.0
    %1868 = vmatmul.mubr.f32.gmra.mxu0 %v1801
    %v1869 = vpop.f32.mrf.mxu0
    %v1870 = vadd.f32 0.0, %v1869
    %v1871 = vpop.f32.mrf.mxu0
    %1872 = vdwg.mxu0
    %v1873 = vadd.f32 %v1789, %v1870
    %s1874 = scalar_lea.vmem %s7, 24
    %v1875 = vld [vmem:[%s1874] sm:$0xff]
    %1876 = vrot.lane.b32.xlu0 %v1634, 125
    %v1877 = vpop.permute.xlu0 %1876
    %1878 = vrot.lane.b32.xlu0 %v1637, 125
    %v1879 = vpop.permute.xlu0 %1878
    %v1880 = vsel %vm1026, %v1877, %v1879
    %v1883 = vsel %vm790, %v1875, 0
    %1885 = vmatprep.subr.mxu0 0.0
    %1886 = vmatpush1.msra.mxu0 0.0
    %1887 = vmatprep.subr.mxu0 0.0
    %1888 = vmatpush1.msra.mxu0 0.0
    %1889 = vmatprep.subr.mxu0 0.0
    %1890 = vmatpush1.msra.mxu0 0.0
    %1891 = vmatprep.subr.mxu0 0.0
    %1892 = vmatpush1.msra.mxu0 0.0
    %1893 = vmatprep.subr.mxu0 0.0
    %1894 = vmatpush1.msra.mxu0 0.0
    %1895 = vmatprep.subr.mxu0 0.0
    %1896 = vmatpush1.msra.mxu0 0.0
    %1897 = vmatprep.subr.mxu0 0.0
    %1898 = vmatpush1.msra.mxu0 0.0
    %1899 = vmatprep.subr.mxu0 0.0
    %1900 = vmatpush1.msra.mxu0 0.0
    %1901 = vmatprep.subr.mxu0 0.0
    %1902 = vmatpush1.msra.mxu0 0.0
    %1903 = vmatprep.subr.mxu0 0.0
    %1904 = vmatpush1.msra.mxu0 0.0
    %1905 = vmatprep.subr.mxu0 0.0
    %1906 = vmatpush1.msra.mxu0 0.0
    %1907 = vmatprep.subr.mxu0 0.0
    %1908 = vmatpush1.msra.mxu0 0.0
    %1909 = vmatprep.subr.mxu0 0.0
    %1910 = vmatpush1.msra.mxu0 0.0
    %1911 = vmatprep.subr.mxu0 0.0
    %1912 = vmatpush1.msra.mxu0 0.0
    %1913 = vmatprep.subr.mxu0 0.0
    %1914 = vmatpush1.msra.mxu0 0.0
    %1915 = vmatprep.subr.mxu0 0.0
    %1916 = vmatpush1.msra.mxu0 %v1880
    %1917 = vmatprep.subr.mxu0 0.0
    %1918 = vmatpush2.msra.mxu0 0.0
    %1919 = vmatprep.subr.mxu0 0.0
    %1920 = vmatpush2.msra.mxu0 0.0
    %1921 = vmatprep.subr.mxu0 0.0
    %1922 = vmatpush2.msra.mxu0 0.0
    %1923 = vmatprep.subr.mxu0 0.0
    %1924 = vmatpush2.msra.mxu0 0.0
    %1925 = vmatprep.subr.mxu0 0.0
    %1926 = vmatpush2.msra.mxu0 0.0
    %1927 = vmatprep.subr.mxu0 0.0
    %1928 = vmatpush2.msra.mxu0 0.0
    %1929 = vmatprep.subr.mxu0 0.0
    %1930 = vmatpush2.msra.mxu0 0.0
    %1931 = vmatprep.subr.mxu0 0.0
    %1932 = vmatpush2.msra.mxu0 0.0
    %1933 = vmatprep.subr.mxu0 0.0
    %1934 = vmatpush2.msra.mxu0 0.0
    %1935 = vmatprep.subr.mxu0 0.0
    %1936 = vmatpush2.msra.mxu0 0.0
    %1937 = vmatprep.subr.mxu0 0.0
    %1938 = vmatpush2.msra.mxu0 0.0
    %1939 = vmatprep.subr.mxu0 0.0
    %1940 = vmatpush2.msra.mxu0 0.0
    %1941 = vmatprep.subr.mxu0 0.0
    %1942 = vmatpush2.msra.mxu0 0.0
    %1943 = vmatprep.subr.mxu0 0.0
    %1944 = vmatpush2.msra.mxu0 0.0
    %1945 = vmatprep.subr.mxu0 0.0
    %1946 = vmatpush2.msra.mxu0 0.0
    %1947 = vmatprep.subr.mxu0 0.0
    %1948 = vmatpush2.msra.mxu0 0.0
    %1949 = vmatprep.mubr.f32.mxu0 0.0
    %1950 = vmatmul.mubr.f32.gmra.mxu0 %v1883
    %v1951 = vpop.f32.mrf.mxu0
    %v1952 = vadd.f32 0.0, %v1951
    %v1953 = vpop.f32.mrf.mxu0
    %1954 = vdwg.mxu0
    %v1955 = vadd.f32 %v1873, %v1952
    %s1956 = scalar_lea.vmem %s7, 32
    %v1957 = vld [vmem:[%s1956] sm:$0xff]
    %1958 = vrot.lane.b32.xlu0 %v1634, 124
    %v1959 = vpop.permute.xlu0 %1958
    %1960 = vrot.lane.b32.xlu0 %v1637, 124
    %v1961 = vpop.permute.xlu0 %1960
    %v1962 = vsel %vm1109, %v1959, %v1961
    %v1965 = vsel %vm790, %v1957, 0
    %1967 = vmatprep.subr.mxu0 0.0
    %1968 = vmatpush1.msra.mxu0 0.0
    %1969 = vmatprep.subr.mxu0 0.0
    %1970 = vmatpush1.msra.mxu0 0.0
    %1971 = vmatprep.subr.mxu0 0.0
    %1972 = vmatpush1.msra.mxu0 0.0
    %1973 = vmatprep.subr.mxu0 0.0
    %1974 = vmatpush1.msra.mxu0 0.0
    %1975 = vmatprep.subr.mxu0 0.0
    %1976 = vmatpush1.msra.mxu0 0.0
    %1977 = vmatprep.subr.mxu0 0.0
    %1978 = vmatpush1.msra.mxu0 0.0
    %1979 = vmatprep.subr.mxu0 0.0
    %1980 = vmatpush1.msra.mxu0 0.0
    %1981 = vmatprep.subr.mxu0 0.0
    %1982 = vmatpush1.msra.mxu0 0.0
    %1983 = vmatprep.subr.mxu0 0.0
    %1984 = vmatpush1.msra.mxu0 0.0
    %1985 = vmatprep.subr.mxu0 0.0
    %1986 = vmatpush1.msra.mxu0 0.0
    %1987 = vmatprep.subr.mxu0 0.0
    %1988 = vmatpush1.msra.mxu0 0.0
    %1989 = vmatprep.subr.mxu0 0.0
    %1990 = vmatpush1.msra.mxu0 0.0
    %1991 = vmatprep.subr.mxu0 0.0
    %1992 = vmatpush1.msra.mxu0 0.0
    %1993 = vmatprep.subr.mxu0 0.0
    %1994 = vmatpush1.msra.mxu0 0.0
    %1995 = vmatprep.subr.mxu0 0.0
    %1996 = vmatpush1.msra.mxu0 0.0
    %1997 = vmatprep.subr.mxu0 0.0
    %1998 = vmatpush1.msra.mxu0 %v1962
    %1999 = vmatprep.subr.mxu0 0.0
    %2000 = vmatpush2.msra.mxu0 0.0
    %2001 = vmatprep.subr.mxu0 0.0
    %2002 = vmatpush2.msra.mxu0 0.0
    %2003 = vmatprep.subr.mxu0 0.0
    %2004 = vmatpush2.msra.mxu0 0.0
    %2005 = vmatprep.subr.mxu0 0.0
    %2006 = vmatpush2.msra.mxu0 0.0
    %2007 = vmatprep.subr.mxu0 0.0
    %2008 = vmatpush2.msra.mxu0 0.0
    %2009 = vmatprep.subr.mxu0 0.0
    %2010 = vmatpush2.msra.mxu0 0.0
    %2011 = vmatprep.subr.mxu0 0.0
    %2012 = vmatpush2.msra.mxu0 0.0
    %2013 = vmatprep.subr.mxu0 0.0
    %2014 = vmatpush2.msra.mxu0 0.0
    %2015 = vmatprep.subr.mxu0 0.0
    %2016 = vmatpush2.msra.mxu0 0.0
    %2017 = vmatprep.subr.mxu0 0.0
    %2018 = vmatpush2.msra.mxu0 0.0
    %2019 = vmatprep.subr.mxu0 0.0
    %2020 = vmatpush2.msra.mxu0 0.0
    %2021 = vmatprep.subr.mxu0 0.0
    %2022 = vmatpush2.msra.mxu0 0.0
    %2023 = vmatprep.subr.mxu0 0.0
    %2024 = vmatpush2.msra.mxu0 0.0
    %2025 = vmatprep.subr.mxu0 0.0
    %2026 = vmatpush2.msra.mxu0 0.0
    %2027 = vmatprep.subr.mxu0 0.0
    %2028 = vmatpush2.msra.mxu0 0.0
    %2029 = vmatprep.subr.mxu0 0.0
    %2030 = vmatpush2.msra.mxu0 0.0
    %2031 = vmatprep.mubr.f32.mxu0 0.0
    %2032 = vmatmul.mubr.f32.gmra.mxu0 %v1965
    %v2033 = vpop.f32.mrf.mxu0
    %v2034 = vadd.f32 0.0, %v2033
    %v2035 = vpop.f32.mrf.mxu0
    %2036 = vdwg.mxu0
    %v2037 = vadd.f32 %v1955, %v2034
    %v2038 = vld [vmem:[%s8] sm:$0xff]
    %2040 = vset.pattern.permute.xlu0 0
    %2041 = vperm.xlu0 %2040, %v2038
    %v2042 = vpop.permute.xlu0 %2041
    %v2044 = vadd.f32 %v2037, %v2042
    %v2045 = vmax.f32 %v2044, 0.0
    %v2046 = vld [vmem:[%s1630] sm:$0xff]
    %v2047 = vld [vmem:[%s1630 + $0x8] sm:$0xff]
    %2050 = vrot.lane.b32.xlu0 %v2046, 127
    %v2051 = vpop.permute.xlu0 %2050
    %2052 = vrot.lane.b32.xlu0 %v2047, 127
    %v2053 = vpop.permute.xlu0 %2052
    %v2054 = vsel %vm787, %v2051, %v2053
    %2056 = vmatprep.subr.mxu0 0.0
    %2057 = vmatpush1.msra.mxu0 0.0
    %2058 = vmatprep.subr.mxu0 0.0
    %2059 = vmatpush1.msra.mxu0 0.0
    %2060 = vmatprep.subr.mxu0 0.0
    %2061 = vmatpush1.msra.mxu0 0.0
    %2062 = vmatprep.subr.mxu0 0.0
    %2063 = vmatpush1.msra.mxu0 0.0
    %2064 = vmatprep.subr.mxu0 0.0
    %2065 = vmatpush1.msra.mxu0 0.0
    %2066 = vmatprep.subr.mxu0 0.0
    %2067 = vmatpush1.msra.mxu0 0.0
    %2068 = vmatprep.subr.mxu0 0.0
    %2069 = vmatpush1.msra.mxu0 0.0
    %2070 = vmatprep.subr.mxu0 0.0
    %2071 = vmatpush1.msra.mxu0 0.0
    %2072 = vmatprep.subr.mxu0 0.0
    %2073 = vmatpush1.msra.mxu0 0.0
    %2074 = vmatprep.subr.mxu0 0.0
    %2075 = vmatpush1.msra.mxu0 0.0
    %2076 = vmatprep.subr.mxu0 0.0
    %2077 = vmatpush1.msra.mxu0 0.0
    %2078 = vmatprep.subr.mxu0 0.0
    %2079 = vmatpush1.msra.mxu0 0.0
    %2080 = vmatprep.subr.mxu0 0.0
    %2081 = vmatpush1.msra.mxu0 0.0
    %2082 = vmatprep.subr.mxu0 0.0
    %2083 = vmatpush1.msra.mxu0 0.0
    %2084 = vmatprep.subr.mxu0 0.0
    %2085 = vmatpush1.msra.mxu0 0.0
    %2086 = vmatprep.subr.mxu0 0.0
    %2087 = vmatpush1.msra.mxu0 %v2054
    %2088 = vmatprep.subr.mxu0 0.0
    %2089 = vmatpush2.msra.mxu0 0.0
    %2090 = vmatprep.subr.mxu0 0.0
    %2091 = vmatpush2.msra.mxu0 0.0
    %2092 = vmatprep.subr.mxu0 0.0
    %2093 = vmatpush2.msra.mxu0 0.0
    %2094 = vmatprep.subr.mxu0 0.0
    %2095 = vmatpush2.msra.mxu0 0.0
    %2096 = vmatprep.subr.mxu0 0.0
    %2097 = vmatpush2.msra.mxu0 0.0
    %2098 = vmatprep.subr.mxu0 0.0
    %2099 = vmatpush2.msra.mxu0 0.0
    %2100 = vmatprep.subr.mxu0 0.0
    %2101 = vmatpush2.msra.mxu0 0.0
    %2102 = vmatprep.subr.mxu0 0.0
    %2103 = vmatpush2.msra.mxu0 0.0
    %2104 = vmatprep.subr.mxu0 0.0
    %2105 = vmatpush2.msra.mxu0 0.0
    %2106 = vmatprep.subr.mxu0 0.0
    %2107 = vmatpush2.msra.mxu0 0.0
    %2108 = vmatprep.subr.mxu0 0.0
    %2109 = vmatpush2.msra.mxu0 0.0
    %2110 = vmatprep.subr.mxu0 0.0
    %2111 = vmatpush2.msra.mxu0 0.0
    %2112 = vmatprep.subr.mxu0 0.0
    %2113 = vmatpush2.msra.mxu0 0.0
    %2114 = vmatprep.subr.mxu0 0.0
    %2115 = vmatpush2.msra.mxu0 0.0
    %2116 = vmatprep.subr.mxu0 0.0
    %2117 = vmatpush2.msra.mxu0 0.0
    %2118 = vmatprep.subr.mxu0 0.0
    %2119 = vmatpush2.msra.mxu0 0.0
    %2120 = vmatprep.mubr.f32.mxu0 0.0
    %2121 = vmatmul.mubr.f32.gmra.mxu0 %v1647
    %v2122 = vpop.f32.mrf.mxu0
    %v2123 = vadd.f32 0.0, %v2122
    %v2124 = vpop.f32.mrf.mxu0
    %2125 = vdwg.mxu0
    %2126 = vmatprep.subr.mxu0 0.0
    %2127 = vmatpush1.msra.mxu0 0.0
    %2128 = vmatprep.subr.mxu0 0.0
    %2129 = vmatpush1.msra.mxu0 0.0
    %2130 = vmatprep.subr.mxu0 0.0
    %2131 = vmatpush1.msra.mxu0 0.0
    %2132 = vmatprep.subr.mxu0 0.0
    %2133 = vmatpush1.msra.mxu0 0.0
    %2134 = vmatprep.subr.mxu0 0.0
    %2135 = vmatpush1.msra.mxu0 0.0
    %2136 = vmatprep.subr.mxu0 0.0
    %2137 = vmatpush1.msra.mxu0 0.0
    %2138 = vmatprep.subr.mxu0 0.0
    %2139 = vmatpush1.msra.mxu0 0.0
    %2140 = vmatprep.subr.mxu0 0.0
    %2141 = vmatpush1.msra.mxu0 0.0
    %2142 = vmatprep.subr.mxu0 0.0
    %2143 = vmatpush1.msra.mxu0 0.0
    %2144 = vmatprep.subr.mxu0 0.0
    %2145 = vmatpush1.msra.mxu0 0.0
    %2146 = vmatprep.subr.mxu0 0.0
    %2147 = vmatpush1.msra.mxu0 0.0
    %2148 = vmatprep.subr.mxu0 0.0
    %2149 = vmatpush1.msra.mxu0 0.0
    %2150 = vmatprep.subr.mxu0 0.0
    %2151 = vmatpush1.msra.mxu0 0.0
    %2152 = vmatprep.subr.mxu0 0.0
    %2153 = vmatpush1.msra.mxu0 0.0
    %2154 = vmatprep.subr.mxu0 0.0
    %2155 = vmatpush1.msra.mxu0 0.0
    %2156 = vmatprep.subr.mxu0 0.0
    %2157 = vmatpush1.msra.mxu0 %v2046
    %2158 = vmatprep.subr.mxu0 0.0
    %2159 = vmatpush2.msra.mxu0 0.0
    %2160 = vmatprep.subr.mxu0 0.0
    %2161 = vmatpush2.msra.mxu0 0.0
    %2162 = vmatprep.subr.mxu0 0.0
    %2163 = vmatpush2.msra.mxu0 0.0
    %2164 = vmatprep.subr.mxu0 0.0
    %2165 = vmatpush2.msra.mxu0 0.0
    %2166 = vmatprep.subr.mxu0 0.0
    %2167 = vmatpush2.msra.mxu0 0.0
    %2168 = vmatprep.subr.mxu0 0.0
    %2169 = vmatpush2.msra.mxu0 0.0
    %2170 = vmatprep.subr.mxu0 0.0
    %2171 = vmatpush2.msra.mxu0 0.0
    %2172 = vmatprep.subr.mxu0 0.0
    %2173 = vmatpush2.msra.mxu0 0.0
    %2174 = vmatprep.subr.mxu0 0.0
    %2175 = vmatpush2.msra.mxu0 0.0
    %2176 = vmatprep.subr.mxu0 0.0
    %2177 = vmatpush2.msra.mxu0 0.0
    %2178 = vmatprep.subr.mxu0 0.0
    %2179 = vmatpush2.msra.mxu0 0.0
    %2180 = vmatprep.subr.mxu0 0.0
    %2181 = vmatpush2.msra.mxu0 0.0
    %2182 = vmatprep.subr.mxu0 0.0
    %2183 = vmatpush2.msra.mxu0 0.0
    %2184 = vmatprep.subr.mxu0 0.0
    %2185 = vmatpush2.msra.mxu0 0.0
    %2186 = vmatprep.subr.mxu0 0.0
    %2187 = vmatpush2.msra.mxu0 0.0
    %2188 = vmatprep.subr.mxu0 0.0
    %2189 = vmatpush2.msra.mxu0 0.0
    %2190 = vmatprep.mubr.f32.mxu0 0.0
    %2191 = vmatmul.mubr.f32.gmra.mxu0 %v1720
    %v2192 = vpop.f32.mrf.mxu0
    %v2193 = vadd.f32 %v2123, %v2192
    %v2194 = vpop.f32.mrf.mxu0
    %2195 = vdwg.mxu0
    %2196 = vrot.lane.b32.xlu0 %v2046, 126
    %v2197 = vpop.permute.xlu0 %2196
    %2198 = vrot.lane.b32.xlu0 %v2047, 126
    %v2199 = vpop.permute.xlu0 %2198
    %v2200 = vsel %vm943, %v2197, %v2199
    %2202 = vmatprep.subr.mxu0 0.0
    %2203 = vmatpush1.msra.mxu0 0.0
    %2204 = vmatprep.subr.mxu0 0.0
    %2205 = vmatpush1.msra.mxu0 0.0
    %2206 = vmatprep.subr.mxu0 0.0
    %2207 = vmatpush1.msra.mxu0 0.0
    %2208 = vmatprep.subr.mxu0 0.0
    %2209 = vmatpush1.msra.mxu0 0.0
    %2210 = vmatprep.subr.mxu0 0.0
    %2211 = vmatpush1.msra.mxu0 0.0
    %2212 = vmatprep.subr.mxu0 0.0
    %2213 = vmatpush1.msra.mxu0 0.0
    %2214 = vmatprep.subr.mxu0 0.0
    %2215 = vmatpush1.msra.mxu0 0.0
    %2216 = vmatprep.subr.mxu0 0.0
    %2217 = vmatpush1.msra.mxu0 0.0
    %2218 = vmatprep.subr.mxu0 0.0
    %2219 = vmatpush1.msra.mxu0 0.0
    %2220 = vmatprep.subr.mxu0 0.0
    %2221 = vmatpush1.msra.mxu0 0.0
    %2222 = vmatprep.subr.mxu0 0.0
    %2223 = vmatpush1.msra.mxu0 0.0
    %2224 = vmatprep.subr.mxu0 0.0
    %2225 = vmatpush1.msra.mxu0 0.0
    %2226 = vmatprep.subr.mxu0 0.0
    %2227 = vmatpush1.msra.mxu0 0.0
    %2228 = vmatprep.subr.mxu0 0.0
    %2229 = vmatpush1.msra.mxu0 0.0
    %2230 = vmatprep.subr.mxu0 0.0
    %2231 = vmatpush1.msra.mxu0 0.0
    %2232 = vmatprep.subr.mxu0 0.0
    %2233 = vmatpush1.msra.mxu0 %v2200
    %2234 = vmatprep.subr.mxu0 0.0
    %2235 = vmatpush2.msra.mxu0 0.0
    %2236 = vmatprep.subr.mxu0 0.0
    %2237 = vmatpush2.msra.mxu0 0.0
    %2238 = vmatprep.subr.mxu0 0.0
    %2239 = vmatpush2.msra.mxu0 0.0
    %2240 = vmatprep.subr.mxu0 0.0
    %2241 = vmatpush2.msra.mxu0 0.0
    %2242 = vmatprep.subr.mxu0 0.0
    %2243 = vmatpush2.msra.mxu0 0.0
    %2244 = vmatprep.subr.mxu0 0.0
    %2245 = vmatpush2.msra.mxu0 0.0
    %2246 = vmatprep.subr.mxu0 0.0
    %2247 = vmatpush2.msra.mxu0 0.0
    %2248 = vmatprep.subr.mxu0 0.0
    %2249 = vmatpush2.msra.mxu0 0.0
    %2250 = vmatprep.subr.mxu0 0.0
    %2251 = vmatpush2.msra.mxu0 0.0
    %2252 = vmatprep.subr.mxu0 0.0
    %2253 = vmatpush2.msra.mxu0 0.0
    %2254 = vmatprep.subr.mxu0 0.0
    %2255 = vmatpush2.msra.mxu0 0.0
    %2256 = vmatprep.subr.mxu0 0.0
    %2257 = vmatpush2.msra.mxu0 0.0
    %2258 = vmatprep.subr.mxu0 0.0
    %2259 = vmatpush2.msra.mxu0 0.0
    %2260 = vmatprep.subr.mxu0 0.0
    %2261 = vmatpush2.msra.mxu0 0.0
    %2262 = vmatprep.subr.mxu0 0.0
    %2263 = vmatpush2.msra.mxu0 0.0
    %2264 = vmatprep.subr.mxu0 0.0
    %2265 = vmatpush2.msra.mxu0 0.0
    %2266 = vmatprep.mubr.f32.mxu0 0.0
    %2267 = vmatmul.mubr.f32.gmra.mxu0 %v1801
    %v2268 = vpop.f32.mrf.mxu0
    %v2269 = vadd.f32 0.0, %v2268
    %v2270 = vpop.f32.mrf.mxu0
    %2271 = vdwg.mxu0
    %v2272 = vadd.f32 %v2193, %v2269
    %2273 = vrot.lane.b32.xlu0 %v2046, 125
    %v2274 = vpop.permute.xlu0 %2273
    %2275 = vrot.lane.b32.xlu0 %v2047, 125
    %v2276 = vpop.permute.xlu0 %2275
    %v2277 = vsel %vm1026, %v2274, %v2276
    %2279 = vmatprep.subr.mxu0 0.0
    %2280 = vmatpush1.msra.mxu0 0.0
    %2281 = vmatprep.subr.mxu0 0.0
    %2282 = vmatpush1.msra.mxu0 0.0
    %2283 = vmatprep.subr.mxu0 0.0
    %2284 = vmatpush1.msra.mxu0 0.0
    %2285 = vmatprep.subr.mxu0 0.0
    %2286 = vmatpush1.msra.mxu0 0.0
    %2287 = vmatprep.subr.mxu0 0.0
    %2288 = vmatpush1.msra.mxu0 0.0
    %2289 = vmatprep.subr.mxu0 0.0
    %2290 = vmatpush1.msra.mxu0 0.0
    %2291 = vmatprep.subr.mxu0 0.0
    %2292 = vmatpush1.msra.mxu0 0.0
    %2293 = vmatprep.subr.mxu0 0.0
    %2294 = vmatpush1.msra.mxu0 0.0
    %2295 = vmatprep.subr.mxu0 0.0
    %2296 = vmatpush1.msra.mxu0 0.0
    %2297 = vmatprep.subr.mxu0 0.0
    %2298 = vmatpush1.msra.mxu0 0.0
    %2299 = vmatprep.subr.mxu0 0.0
    %2300 = vmatpush1.msra.mxu0 0.0
    %2301 = vmatprep.subr.mxu0 0.0
    %2302 = vmatpush1.msra.mxu0 0.0
    %2303 = vmatprep.subr.mxu0 0.0
    %2304 = vmatpush1.msra.mxu0 0.0
    %2305 = vmatprep.subr.mxu0 0.0
    %2306 = vmatpush1.msra.mxu0 0.0
    %2307 = vmatprep.subr.mxu0 0.0
    %2308 = vmatpush1.msra.mxu0 0.0
    %2309 = vmatprep.subr.mxu0 0.0
    %2310 = vmatpush1.msra.mxu0 %v2277
    %2311 = vmatprep.subr.mxu0 0.0
    %2312 = vmatpush2.msra.mxu0 0.0
    %2313 = vmatprep.subr.mxu0 0.0
    %2314 = vmatpush2.msra.mxu0 0.0
    %2315 = vmatprep.subr.mxu0 0.0
    %2316 = vmatpush2.msra.mxu0 0.0
    %2317 = vmatprep.subr.mxu0 0.0
    %2318 = vmatpush2.msra.mxu0 0.0
    %2319 = vmatprep.subr.mxu0 0.0
    %2320 = vmatpush2.msra.mxu0 0.0
    %2321 = vmatprep.subr.mxu0 0.0
    %2322 = vmatpush2.msra.mxu0 0.0
    %2323 = vmatprep.subr.mxu0 0.0
    %2324 = vmatpush2.msra.mxu0 0.0
    %2325 = vmatprep.subr.mxu0 0.0
    %2326 = vmatpush2.msra.mxu0 0.0
    %2327 = vmatprep.subr.mxu0 0.0
    %2328 = vmatpush2.msra.mxu0 0.0
    %2329 = vmatprep.subr.mxu0 0.0
    %2330 = vmatpush2.msra.mxu0 0.0
    %2331 = vmatprep.subr.mxu0 0.0
    %2332 = vmatpush2.msra.mxu0 0.0
    %2333 = vmatprep.subr.mxu0 0.0
    %2334 = vmatpush2.msra.mxu0 0.0
    %2335 = vmatprep.subr.mxu0 0.0
    %2336 = vmatpush2.msra.mxu0 0.0
    %2337 = vmatprep.subr.mxu0 0.0
    %2338 = vmatpush2.msra.mxu0 0.0
    %2339 = vmatprep.subr.mxu0 0.0
    %2340 = vmatpush2.msra.mxu0 0.0
    %2341 = vmatprep.subr.mxu0 0.0
    %2342 = vmatpush2.msra.mxu0 0.0
    %2343 = vmatprep.mubr.f32.mxu0 0.0
    %2344 = vmatmul.mubr.f32.gmra.mxu0 %v1883
    %v2345 = vpop.f32.mrf.mxu0
    %v2346 = vadd.f32 0.0, %v2345
    %v2347 = vpop.f32.mrf.mxu0
    %2348 = vdwg.mxu0
    %v2349 = vadd.f32 %v2272, %v2346
    %2350 = vrot.lane.b32.xlu0 %v2046, 124
    %v2351 = vpop.permute.xlu0 %2350
    %2352 = vrot.lane.b32.xlu0 %v2047, 124
    %v2353 = vpop.permute.xlu0 %2352
    %v2354 = vsel %vm1109, %v2351, %v2353
    %2356 = vmatprep.subr.mxu0 0.0
    %2357 = vmatpush1.msra.mxu0 0.0
    %2358 = vmatprep.subr.mxu0 0.0
    %2359 = vmatpush1.msra.mxu0 0.0
    %2360 = vmatprep.subr.mxu0 0.0
    %2361 = vmatpush1.msra.mxu0 0.0
    %2362 = vmatprep.subr.mxu0 0.0
    %2363 = vmatpush1.msra.mxu0 0.0
    %2364 = vmatprep.subr.mxu0 0.0
    %2365 = vmatpush1.msra.mxu0 0.0
    %2366 = vmatprep.subr.mxu0 0.0
    %2367 = vmatpush1.msra.mxu0 0.0
    %2368 = vmatprep.subr.mxu0 0.0
    %2369 = vmatpush1.msra.mxu0 0.0
    %2370 = vmatprep.subr.mxu0 0.0
    %2371 = vmatpush1.msra.mxu0 0.0
    %2372 = vmatprep.subr.mxu0 0.0
    %2373 = vmatpush1.msra.mxu0 0.0
    %2374 = vmatprep.subr.mxu0 0.0
    %2375 = vmatpush1.msra.mxu0 0.0
    %2376 = vmatprep.subr.mxu0 0.0
    %2377 = vmatpush1.msra.mxu0 0.0
    %2378 = vmatprep.subr.mxu0 0.0
    %2379 = vmatpush1.msra.mxu0 0.0
    %2380 = vmatprep.subr.mxu0 0.0
    %2381 = vmatpush1.msra.mxu0 0.0
    %2382 = vmatprep.subr.mxu0 0.0
    %2383 = vmatpush1.msra.mxu0 0.0
    %2384 = vmatprep.subr.mxu0 0.0
    %2385 = vmatpush1.msra.mxu0 0.0
    %2386 = vmatprep.subr.mxu0 0.0
    %2387 = vmatpush1.msra.mxu0 %v2354
    %2388 = vmatprep.subr.mxu0 0.0
    %2389 = vmatpush2.msra.mxu0 0.0
    %2390 = vmatprep.subr.mxu0 0.0
    %2391 = vmatpush2.msra.mxu0 0.0
    %2392 = vmatprep.subr.mxu0 0.0
    %2393 = vmatpush2.msra.mxu0 0.0
    %2394 = vmatprep.subr.mxu0 0.0
    %2395 = vmatpush2.msra.mxu0 0.0
    %2396 = vmatprep.subr.mxu0 0.0
    %2397 = vmatpush2.msra.mxu0 0.0
    %2398 = vmatprep.subr.mxu0 0.0
    %2399 = vmatpush2.msra.mxu0 0.0
    %2400 = vmatprep.subr.mxu0 0.0
    %2401 = vmatpush2.msra.mxu0 0.0
    %2402 = vmatprep.subr.mxu0 0.0
    %2403 = vmatpush2.msra.mxu0 0.0
    %2404 = vmatprep.subr.mxu0 0.0
    %2405 = vmatpush2.msra.mxu0 0.0
    %2406 = vmatprep.subr.mxu0 0.0
    %2407 = vmatpush2.msra.mxu0 0.0
    %2408 = vmatprep.subr.mxu0 0.0
    %2409 = vmatpush2.msra.mxu0 0.0
    %2410 = vmatprep.subr.mxu0 0.0
    %2411 = vmatpush2.msra.mxu0 0.0
    %2412 = vmatprep.subr.mxu0 0.0
    %2413 = vmatpush2.msra.mxu0 0.0
    %2414 = vmatprep.subr.mxu0 0.0
    %2415 = vmatpush2.msra.mxu0 0.0
    %2416 = vmatprep.subr.mxu0 0.0
    %2417 = vmatpush2.msra.mxu0 0.0
    %2418 = vmatprep.subr.mxu0 0.0
    %2419 = vmatpush2.msra.mxu0 0.0
    %2420 = vmatprep.mubr.f32.mxu0 0.0
    %2421 = vmatmul.mubr.f32.gmra.mxu0 %v1965
    %v2422 = vpop.f32.mrf.mxu0
    %v2423 = vadd.f32 0.0, %v2422
    %v2424 = vpop.f32.mrf.mxu0
    %2425 = vdwg.mxu0
    %v2426 = vadd.f32 %v2349, %v2423
    %v2427 = vadd.f32 %v2426, %v2042
    %v2428 = vmax.f32 %v2427, 0.0
    %2429 = vadd.xlane.f32.xlu0 %v2045
    %v2430 = vpop.xlane.xlu0 %2429
    %v2431 = vadd.f32 %v2430, 0.0
    %2432 = vadd.xlane.f32.xlu0 %v2428
    %v2433 = vpop.xlane.xlu0 %2432
    %v2434 = vadd.f32 %v2431, %v2433
    %v2435 = vmul.f32 %v2434, 0.00390625
    %v2436 = vsub.f32 %v2045, %v2435
    %v2437 = vmul.f32 %v2436, %v2436
    %2438 = vadd.xlane.f32.xlu0 %v2437
    %v2439 = vpop.xlane.xlu0 %2438
    %v2440 = vadd.f32 %v2439, 0.0
    %v2441 = vsub.f32 %v2428, %v2435
    %v2442 = vmul.f32 %v2441, %v2441
    %2443 = vadd.xlane.f32.xlu0 %v2442
    %v2444 = vpop.xlane.xlu0 %2443
    %v2445 = vadd.f32 %v2440, %v2444
    %v2446 = vmul.f32 %v2445, 0.00390625
    %v2447 = vadd.f32 %v2446, 1e-05
    %v2448 = vrsqrt.pop %v2447
    %v2449 = vld [vmem:[%s9] sm:$0xff]
    %v2450 = vmul.f32 %v2448, %v2449
    %2452 = vset.pattern.permute.xlu0 0
    %2453 = vperm.xlu0 %2452, %v2450
    %v2454 = vpop.permute.xlu0 %2453
    %v2456 = vmul.f32 %v2436, %v2454
    %v2457 = vld [vmem:[%s10] sm:$0xff]
    %2459 = vset.pattern.permute.xlu0 0
    %2460 = vperm.xlu0 %2459, %v2457
    %v2461 = vpop.permute.xlu0 %2460
    %v2463 = vadd.f32 %v2456, %v2461
    %2464 = vst [vmem:[#allocation9] sm:$0xff] %v2463
    %v2465 = vmul.f32 %v2441, %v2454
    %v2466 = vld [vmem:[%s10] sm:$0xff]
    %2468 = vset.pattern.permute.xlu0 0
    %2469 = vperm.xlu0 %2468, %v2466
    %v2470 = vpop.permute.xlu0 %2469
    %v2472 = vadd.f32 %v2465, %v2470
    %s2473 = scalar_lea.vmem [#allocation9], 8
    %2474 = vst [vmem:[%s2473] sm:$0xff] %v2472
    // Predicated region
    $region54: #{outconv_forward.1} parent=1 // pred_check
      _
    $region55: #{outconv_forward.1} parent=1 // pred_check_branch
      %2476 = sbr.rel (0) target = $region57
    $region56: #{outconv_forward.1} parent=1 // pred_region
      %s2478 = ssub.s32 256, 256
      %2479 = vsyncadd [#allocation6], %s2478
      %s2480 = sshll.u32 [#allocation9], 4
      %s2481 = int_to_ptr.vmem [resolvable:$true] %s2480
      %2486 = dma.vmem_to_hbm [thread:$0]  %s2481, 256, %s11, [#allocation6], 128, 128, 8
    $region57: #{outconv_forward.1} parent=1 // pred_fallthru
      _
    // Predicated region
    $region58: #{outconv_forward.1} parent=1 // pred_check
      _
    $region59: #{outconv_forward.1} parent=1 // pred_check_branch
      %2488 = sbr.rel (0) target = $region61
    $region60: #{outconv_forward.1} parent=1 // pred_region
      %2489 = dma.done [#allocation6], 256
    $region61: #{outconv_forward.1} parent=1 // pred_fallthru
      _
    %2490 = vsyncpa [#allocation5], 1
    %2491 = vsyncpa [#allocation8], 1
    %2492 = vsyncpa [#allocation6], 1

</llo_original>
